<compile_context>
chip_gen: v5e
topology: v5e:2x2
jax: 0.10.0
libtpu: 0.0.40
codegen_flags: <defaults>
</compile_context>

<pallas_src>
import functools
import math

import jax
import jax.numpy as jnp
import numpy as np
from jax import lax
from jax.experimental import pallas as pl
from jax.experimental.pallas import tpu as pltpu


def _conv_t3d_batch_kernel(x_ref, t_ref, o_ref, *, K, D_out, H_blk):
    # x_ref: (D_pad, H_pad2, WCpad)         padded volume of one batch (f32)
    # t_ref: (K*K*WCpad, W_out*Cout_g)      banded (scattered) flipped weight (bf16)
    # o_ref: (D_out*H_blk, W_out*Cout_g)    full output volume, rows = (z, h)
    x = x_ref[...]                                         # f32 gather; bf16 cast is late
    slabs = []
    for kd in range(K):
        for kh in range(K):
            # (D_out, H_blk, WCpad); kh-offset slice is a plain f32 sublane move
            slabs.append(x[kd:kd + D_out, kh:kh + H_blk, :])
    band = jnp.concatenate(slabs, axis=-1)                 # (D_out, H_blk, K*K*WCpad)
    band = band.reshape(D_out * H_blk, band.shape[-1])     # tile-aligned (H_blk % 8 == 0)
    o_ref[...] = jnp.dot(band.astype(t_ref.dtype), t_ref[...],
                         preferred_element_type=jnp.float32).astype(o_ref.dtype)


def conv_transpose3d(x, weight, bias=None, stride=1, padding=0,
                     output_padding=0, groups=1, compute_dtype=jnp.bfloat16):
    """x: (N, Cin, D, H, W); weight: (Cin, Cout // groups, K, K, K)."""
    N, Cin, D, H, W = x.shape
    K = weight.shape[2]
    Cout_g = weight.shape[1]
    s, p, op = stride, padding, output_padding
    D_out = (D - 1) * s - 2 * p + K + op
    H_out = (H - 1) * s - 2 * p + K + op
    W_out = (W - 1) * s - 2 * p + K + op

    # conv_transpose == VALID correlation of the (stride-dilated, (K-1-p)-padded)
    # input with the spatially flipped kernel.
    lo, hi = K - 1 - p, K - 1 - p + op
    pad_cfg = [(0, 0, 0), (0, 0, 0)] + [(lo, hi, s - 1)] * 3
    x_pad = lax.pad(x.astype(jnp.float32), jnp.zeros((), jnp.float32), pad_cfg)
    xp = jnp.transpose(x_pad, (0, 2, 3, 4, 1))             # -> NDHWC (f32)
    D_pad, H_pad, W_pad = xp.shape[1], xp.shape[2], xp.shape[3]

    Cin_g = Cin // groups
    WC = W_pad * Cin_g                                     # merged (w_in, ci) lane axis
    WCpad = -(-WC // 128) * 128                            # 128-lane-aligned band segments
    H_blk = -(-H_out // 8) * 8                             # sublane-aligned rows per plane
    H_pad2 = H_blk + K - 1                                 # >= H_pad (extra rows are zero)
    WCout = W_out * Cout_g                                 # merged (w_out, co) lane axis
    KKWC = K * K * WCpad
    out_dtype = x.dtype

    # flip spatial dims, move channels last: (K, K, K, Cin, Cout_g)
    w_f = jnp.transpose(weight[:, :, ::-1, ::-1, ::-1],
                        (2, 3, 4, 0, 1)).astype(jnp.float32)

    # Scatter taps into a banded weight:
    #   T[(kd*K+kh)*WCpad + (w_out+kw)*Cin_g + ci, w_out*Cout_g + co]
    #     = w_f[kd, kh, kw, ci, co];  zeros elsewhere (incl. lane padding rows).
    r_idx = jnp.arange(WCpad)[None, None, None, :]
    kw_idx = jnp.arange(K)[:, None, None, None]
    c_idx = jnp.arange(Cin_g)[None, :, None, None]
    w_idx = jnp.arange(W_out)[None, None, :, None]
    sel = (r_idx == (w_idx + kw_idx) * Cin_g + c_idx).astype(jnp.float32)  # (K,Cin_g,W_out,WCpad)

    def build_T(w_fg):                                     # w_fg: (K, K, K, Cin_g, Cout_g)
        T = jnp.einsum('kcwr,dhkco->dhrwo', sel, w_fg)     # (K, K, WCpad, W_out, Cout_g)
        return T.reshape(KKWC, WCout).astype(compute_dtype)

    kernel = functools.partial(_conv_t3d_batch_kernel, K=K, D_out=D_out, H_blk=H_blk)

    def run_group(xg, Tg):
        # Resident VMEM per step ~6 MB (x 110 KB x2, T 1.4 MB x2, out 0.4 MB x2,
        # band scratch ~1.5 MB) -> well under every generation's scoped limit.
        return pl.pallas_call(
            kernel,
            out_shape=jax.ShapeDtypeStruct((N, D_out * H_blk, WCout), out_dtype),
            grid=(N,),
            in_specs=[
                pl.BlockSpec((None, D_pad, H_pad2, WCpad), lambda n: (n, 0, 0, 0)),
                pl.BlockSpec((KKWC, WCout), lambda n: (0, 0)),
            ],
            out_specs=pl.BlockSpec((None, D_out * H_blk, WCout), lambda n: (n, 0, 0)),
            compiler_params=pltpu.CompilerParams(
                dimension_semantics=("parallel",)),
        )(xg, Tg)

    outs = []
    for g in range(groups):
        xg = xp[..., g * Cin_g:(g + 1) * Cin_g].reshape(N, D_pad, H_pad, WC)
        # zero-pad: H_pad -> H_pad2 (sublane-align rows), WC -> WCpad (lane-align)
        xg = jnp.pad(xg, ((0, 0), (0, 0), (0, H_pad2 - H_pad), (0, WCpad - WC)))
        Tg = build_T(w_f[:, :, :, g * Cin_g:(g + 1) * Cin_g, :])
        og = run_group(xg, Tg)                             # (N, D_out*H_blk, WCout)
        og = og.reshape(N, D_out, H_blk, W_out, Cout_g)[:, :, :H_out]
        outs.append(og)
    out = outs[0] if groups == 1 else jnp.concatenate(outs, axis=-1)

    out = jnp.transpose(out, (0, 4, 1, 2, 3))              # back to NCDHW (XLA, ~free here)
    if bias is not None:
        out = out + bias[None, :, None, None, None]
    return out


if __name__ == "__main__":
    # Module config (defaults): stride=1, padding=0, output_padding=0, groups=1, bias=False
    in_channels, out_channels, K = 3, 64, 3
    stride, padding, output_padding, groups = 1, 0, 0, 1
    N, S = 2, 8                                            # small square input 8x8x8

    key = jax.random.PRNGKey(0)
    kx, kw = jax.random.split(key)
    x = jax.random.normal(kx, (N, in_channels, S, S, S), dtype=jnp.float32)
    fan_in = (out_channels // groups) * K ** 3
    bound = 1.0 / math.sqrt(fan_in)
    weight = jax.random.uniform(kw, (in_channels, out_channels // groups, K, K, K),
                                dtype=jnp.float32, minval=-bound, maxval=bound)

    out = conv_transpose3d(x, weight, None, stride, padding, output_padding, groups)
    out = jax.block_until_ready(out)

    S_out = (S - 1) * stride - 2 * padding + K + output_padding
    assert out.shape == (N, out_channels, S_out, S_out, S_out), out.shape

    # reference via XLA (groups == 1), on bf16-rounded operands to match the
    # kernel's bf16-operand / f32-accumulate compute.
    x_c = x.astype(jnp.bfloat16).astype(jnp.float32)
    w_c = weight.astype(jnp.bfloat16).astype(jnp.float32)
    ref = lax.conv_general_dilated(
        x_c,
        jnp.transpose(w_c[:, :, ::-1, ::-1, ::-1], (1, 0, 2, 3, 4)),
        window_strides=(1, 1, 1),
        padding=[(K - 1 - padding, K - 1 - padding + output_padding)] * 3,
        lhs_dilation=(stride,) * 3,
        dimension_numbers=("NCDHW", "OIDHW", "NCDHW"),
    )
    np.testing.assert_allclose(np.asarray(out), np.asarray(ref), rtol=2e-2, atol=2e-2)
    print("KERNEL_OK")
</pallas_src>

<mosaic_0001>
module attributes {stable_mosaic.version = 11 : i64} {
  func.func @_conv_t3d_batch_kernel(%arg0: i32, %arg1: memref<1x12x18x128xf32, #tpu.memory_space<vmem>>, %arg2: memref<1152x640xbf16, #tpu.memory_space<vmem>>, %arg3: memref<1x160x640xf32, #tpu.memory_space<vmem>>) attributes {dimension_semantics = [#tpu.dimension_semantics<parallel>], iteration_bounds = array<i64: 2>, scalar_prefetch = 0 : i64, scratch_operands = 0 : i64, tpu.core_type = #tpu.core_type<tc>, window_params = [{transform_indices = @transform_0, window_bounds = array<i64: 1, 12, 18, 128>}, {pipeline_mode = #tpu.pipeline_mode<synchronous>, transform_indices = @transform_1, window_bounds = array<i64: 1152, 640>}, {transform_indices = @transform_2, window_bounds = array<i64: 1, 160, 640>}]} {
    %c0 = arith.constant 0 : index
    %c0_0 = arith.constant 0 : index
    %c0_1 = arith.constant 0 : index
    %c0_2 = arith.constant 0 : index
    %0 = vector.load %arg1[%c0, %c0_0, %c0_1, %c0_2] : memref<1x12x18x128xf32, #tpu.memory_space<vmem>>, vector<1x12x18x128xf32>
    %1 = vector.shape_cast %0 : vector<1x12x18x128xf32> to vector<12x18x128xf32>
    %2 = vector.extract_strided_slice %1 {offsets = [0, 0, 0], sizes = [10, 16, 128], strides = [1, 1, 1]} : vector<12x18x128xf32> to vector<10x16x128xf32>
    %3 = vector.extract_strided_slice %1 {offsets = [0, 1, 0], sizes = [10, 16, 128], strides = [1, 1, 1]} : vector<12x18x128xf32> to vector<10x16x128xf32>
    %4 = vector.extract_strided_slice %1 {offsets = [0, 2, 0], sizes = [10, 16, 128], strides = [1, 1, 1]} : vector<12x18x128xf32> to vector<10x16x128xf32>
    %5 = vector.extract_strided_slice %1 {offsets = [1, 0, 0], sizes = [10, 16, 128], strides = [1, 1, 1]} : vector<12x18x128xf32> to vector<10x16x128xf32>
    %6 = vector.extract_strided_slice %1 {offsets = [1, 1, 0], sizes = [10, 16, 128], strides = [1, 1, 1]} : vector<12x18x128xf32> to vector<10x16x128xf32>
    %7 = vector.extract_strided_slice %1 {offsets = [1, 2, 0], sizes = [10, 16, 128], strides = [1, 1, 1]} : vector<12x18x128xf32> to vector<10x16x128xf32>
    %8 = vector.extract_strided_slice %1 {offsets = [2, 0, 0], sizes = [10, 16, 128], strides = [1, 1, 1]} : vector<12x18x128xf32> to vector<10x16x128xf32>
    %9 = vector.extract_strided_slice %1 {offsets = [2, 1, 0], sizes = [10, 16, 128], strides = [1, 1, 1]} : vector<12x18x128xf32> to vector<10x16x128xf32>
    %10 = vector.extract_strided_slice %1 {offsets = [2, 2, 0], sizes = [10, 16, 128], strides = [1, 1, 1]} : vector<12x18x128xf32> to vector<10x16x128xf32>
    %11 = tpu.concatenate %2, %3, %4, %5, %6, %7, %8, %9, %10 in 2 : vector<10x16x128xf32>, vector<10x16x128xf32>, vector<10x16x128xf32>, vector<10x16x128xf32>, vector<10x16x128xf32>, vector<10x16x128xf32>, vector<10x16x128xf32>, vector<10x16x128xf32>, vector<10x16x128xf32> -> vector<10x16x1152xf32>
    %12 = vector.shape_cast %11 : vector<10x16x1152xf32> to vector<160x1152xf32>
    %13 = arith.truncf %12 : vector<160x1152xf32> to vector<160x1152xbf16>
    %c0_3 = arith.constant 0 : index
    %c0_4 = arith.constant 0 : index
    %14 = vector.load %arg2[%c0_3, %c0_4] : memref<1152x640xbf16, #tpu.memory_space<vmem>>, vector<1152x640xbf16>
    %cst = arith.constant dense<0.000000e+00> : vector<160x640xf32>
    %15 = tpu.matmul %13, %14, %cst {dimension_numbers = #tpu.dot_dimension_numbers<[1], [0], [0], [1], [0, 0, 1, 1], [], []>} : vector<160x1152xbf16>, vector<1152x640xbf16>, vector<160x640xf32> -> vector<160x640xf32>
    %c0_5 = arith.constant 0 : index
    %c0_6 = arith.constant 0 : index
    %c0_7 = arith.constant 0 : index
    %16 = vector.load %arg3[%c0_5, %c0_6, %c0_7] : memref<1x160x640xf32, #tpu.memory_space<vmem>>, vector<1x160x640xf32>
    %17 = vector.shape_cast %16 : vector<1x160x640xf32> to vector<160x640xf32>
    %18 = vector.shape_cast %15 : vector<160x640xf32> to vector<1x160x640xf32>
    tpu.vector_store %arg3[%c0_5, %c0_6, %c0_7], %18 {strides = array<i32>} : memref<1x160x640xf32, #tpu.memory_space<vmem>>, vector<1x160x640xf32>,
    return
  }
  func.func @transform_0(%arg0: i32) -> (i32, i32, i32, i32) {
    %c0_i32 = arith.constant 0 : i32
    %c0_i32_0 = arith.constant 0 : i32
    %c0_i32_1 = arith.constant 0 : i32
    %c0_i32_2 = arith.constant 0 : i32
    return %arg0, %c0_i32, %c0_i32_0, %c0_i32_1 : i32, i32, i32, i32
  }
  func.func @transform_1(%arg0: i32) -> (i32, i32) {
    %c0_i32 = arith.constant 0 : i32
    %c0_i32_0 = arith.constant 0 : i32
    %c0_i32_1 = arith.constant 0 : i32
    return %c0_i32, %c0_i32_0 : i32, i32
  }
  func.func @transform_2(%arg0: i32) -> (i32, i32, i32) {
    %c0_i32 = arith.constant 0 : i32
    %c0_i32_0 = arith.constant 0 : i32
    %c0_i32_1 = arith.constant 0 : i32
    return %arg0, %c0_i32, %c0_i32_0 : i32, i32, i32
  }
}

</mosaic_0001>

<llo_original>
// kernel: tpu_custom_call.1
$region0: #{tpu_custom_call.1}
  #allocation0 [shape = 'u32[]', space=smem, size = 0x4, offset = 0x4, fixed_abs, tag = 'smem constant byte address 0x4 - core index']
  #allocation1 [shape = 'u32[72,128]{1,0:T(1,128)}', space=vmem, size = 0x9000, scoped, tag = 'internal scratch']
  %s0 = inlined_call_operand.vmem [shape: f32[2,12,18,128], index: 0, kind: input, shape index: {}]
  %s1 = inlined_call_operand.hbm [shape: bf16[1152,640], index: 1, kind: input, shape index: {}]
  %s2 = inlined_call_operand.hbm [shape: f32[2,160,640], index: 2, kind: output, shape index: {}]
  %s3 = sld [smem:[#allocation0]]
  $region45: #{tpu_custom_call.1} parent=0
    _
  %s5 = ssub.s32 1, %s3
  %s6 = scalar_select 0, %s5, %s3
  $region1: #{tpu_custom_call.1} parent=0
    #allocation2 [shape = 'u8[1474560]{0}', space=vmem, size = 0x168000, scoped, tag = 'input window, operand 1, single buffered']
    #allocation3 [shape = 's32[2]{0}', space=sflag, size = 0x8, scoped, tag = 'scoped memory for tpu_custom_call.1']
    #allocation4 [shape = 's32[2]{0}', space=sflag, size = 0x8, scoped, tag = 'scoped memory for tpu_custom_call.1']
    #allocation5 [shape = 'u8[819200]{0}', space=vmem, size = 0xc8000, scoped, tag = 'output window, operand 0']
    %7 = vsyncpa [#allocation3], 0
    %8 = vsyncpa [#allocation4], 0
    %s9 = scalar_lea.sflag [#allocation4], 1
    %10 = vsyncpa %s9, 0
    loop: start=0, step=1, limit=4
    $region2: #{tpu_custom_call.1} parent=1 // loop_pre_header
      _
    $region3: #{tpu_custom_call.1} parent=1 // loop_header
      %s12 = sphi 0, %s16
      %p13 = scmp.ge.s32.totalorder %s12, 4
      %s22 = sphi 0, %s24
      %s25 = sphi 0, %s22
      %s26 = sphi 0, %s25
      %s42 = sphi 0, %s26
      %s46 = sphi 0, %s46
      %s48 = sphi 0, %s46
      %s49 = sphi 0, %s48
      %s63 = sphi 0, %s49
      %s69 = sphi 0, %s71
      %s72 = sphi 0, %s69
      %s73 = sphi 0, %s72
      %s89 = sphi 0, %s73
    $region4: #{tpu_custom_call.1} parent=1 // loop_header_branch
      %15 = sbr.rel (%p13) target = $region8
    $region5: #{tpu_custom_call.1} parent=1 // loop_body
      %s17 = ssub.s32 %s12, 1
      %s18 = ssub.s32 %s12, 2
      %s19 = sadd.s32 %s12, 1
      %s20 = ssub.s32 %s12, %s19
      %p21 = scmp.eq.s32.totalorder %s20, 0
      %s23 = sadd.s32 %s22, 1
      %s24 = scalar_select %p21, %s22, %s23
      %p27 = pneg %p21
      %p28 = scmp.eq.s32.totalorder %s12, 1
      %p29 = por %p27, %p28
      %p30 = scmp.ne.s32.totalorder %s22, %s25
      %p31 = scmp.eq.s32.totalorder %s12, 0
      %p32 = por %p30, %p31
      %p33 = scmp.ne.s32.totalorder %s22, %s25
      %p34 = scmp.eq.s32.totalorder %s17, 1
      %p35 = por %p33, %p34
      %p36 = scmp.ne.s32.totalorder %s25, %s26
      %p37 = scmp.eq.s32.totalorder %s17, 0
      %p38 = por %p36, %p37
      %p39 = scmp.ne.s32.totalorder %s25, %s26
      %p40 = scmp.eq.s32.totalorder %s18, 1
      %p41 = por %p39, %p40
      %p43 = scmp.ne.s32.totalorder %s26, %s42
      %p44 = scmp.eq.s32.totalorder %s18, 0
      %p45 = por %p43, %p44
      %s47 = sadd.s32 %s46, 1
      %p50 = scmp.eq.s32.totalorder %s12, 1
      %p51 = scmp.ne.s32.totalorder %s46, %s48
      %p52 = scmp.eq.s32.totalorder %s12, 0
      %p53 = por %p51, %p52
      %p54 = scmp.ne.s32.totalorder %s46, %s48
      %p55 = scmp.eq.s32.totalorder %s17, 1
      %p56 = por %p54, %p55
      %p57 = scmp.ne.s32.totalorder %s48, %s49
      %p58 = scmp.eq.s32.totalorder %s17, 0
      %p59 = por %p57, %p58
      %p60 = scmp.ne.s32.totalorder %s48, %s49
      %p61 = scmp.eq.s32.totalorder %s18, 1
      %p62 = por %p60, %p61
      %p64 = scmp.ne.s32.totalorder %s49, %s63
      %p65 = scmp.eq.s32.totalorder %s18, 0
      %p66 = por %p64, %p65
      %s67 = ssub.s32 %s12, %s19
      %p68 = scmp.eq.s32.totalorder %s67, 0
      %s70 = sadd.s32 %s69, 1
      %s71 = scalar_select %p68, %s69, %s70
      %p74 = pneg %p68
      %p75 = scmp.eq.s32.totalorder %s12, 1
      %p76 = por %p74, %p75
      %p77 = scmp.ne.s32.totalorder %s69, %s72
      %p78 = scmp.eq.s32.totalorder %s12, 0
      %p79 = por %p77, %p78
      %p80 = scmp.ne.s32.totalorder %s69, %s72
      %p81 = scmp.eq.s32.totalorder %s17, 1
      %p82 = por %p80, %p81
      %p83 = scmp.ne.s32.totalorder %s72, %s73
      %p84 = scmp.eq.s32.totalorder %s17, 0
      %p85 = por %p83, %p84
      %p86 = scmp.ne.s32.totalorder %s72, %s73
      %p87 = scmp.eq.s32.totalorder %s18, 1
      %p88 = por %p86, %p87
      %p90 = scmp.ne.s32.totalorder %s73, %s89
      %p91 = scmp.eq.s32.totalorder %s18, 0
      %p92 = por %p90, %p91
      %p93 = scmp.le.s32.totalorder 1, %s12
      %p94 = scmp.lt.s32.totalorder %s12, 3
      %p95 = pnand %p93, %p94
      %p96 = pneg %p95
      // Predicated region
      $region9: #{tpu_custom_call.1} parent=5 // pred_check
        _
      $region10: #{tpu_custom_call.1} parent=5 // pred_check_branch
        %98 = sbr.rel (%p95) target = $region12
      $region11: #{tpu_custom_call.1} parent=5 // pred_region
        %s99 = ssub.s32 %s12, 1
        // Predicated region
        $region13: #{tpu_custom_call.1} parent=11 // pred_check
          %p100 = pneg %p59
        $region14: #{tpu_custom_call.1} parent=11 // pred_check_branch
          %102 = sbr.rel (%p100) target = $region16
        $region15: #{tpu_custom_call.1} parent=11 // pred_region
          %104 = vsyncadd [#allocation3], 0
          %s105 = sshll.u32 %s1, 4
          %s106 = int_to_ptr.hbm [resolvable:$true] %s105
          %s107 = sshll.u32 [#allocation2], 4
          %s108 = int_to_ptr.vmem [resolvable:$true] %s107
          %113 = dma.hbm_to_vmem [thread:$0]  %s106, 46080, %s108, [#allocation3], 320, 320, 20
        $region16: #{tpu_custom_call.1} parent=11 // pred_fallthru
          _
      $region12: #{tpu_custom_call.1} parent=5 // pred_fallthru
        _
      %p114 = scmp.lt.s32.totalorder %s12, 2
      // Predicated region
      $region17: #{tpu_custom_call.1} parent=5 // pred_check
        %p115 = pneg %p114
      $region18: #{tpu_custom_call.1} parent=5 // pred_check_branch
        %117 = sbr.rel (%p115) target = $region20
      $region19: #{tpu_custom_call.1} parent=5 // pred_region
        // Predicated region
        $region21: #{tpu_custom_call.1} parent=19 // pred_check
          %p118 = pneg %p32
        $region22: #{tpu_custom_call.1} parent=19 // pred_check_branch
          %120 = sbr.rel (%p118) target = $region24
        $region23: #{tpu_custom_call.1} parent=19 // pred_region
          %p121 = scmp.lt.s32.totalorder %s12, 1
          %s122 = scalar_select %p121, %s12, 1
          %s123 = smul.addr %s122, 36
          %s124 = smul.addr %s123, 8
          %s125 = scalar_lea.vmem %s0, %s124
        $region24: #{tpu_custom_call.1} parent=19 // pred_fallthru
          _
      $region20: #{tpu_custom_call.1} parent=5 // pred_fallthru
        _
      %p126 = scmp.le.s32.totalorder 1, %s12
      %p127 = scmp.lt.s32.totalorder %s12, 3
      %p128 = pnand %p126, %p127
      %p129 = pneg %p128
      // Predicated region
      $region25: #{tpu_custom_call.1} parent=5 // pred_check
        _
      $region26: #{tpu_custom_call.1} parent=5 // pred_check_branch
        %131 = sbr.rel (%p128) target = $region28
      $region27: #{tpu_custom_call.1} parent=5 // pred_region
        %s132 = ssub.s32 %s12, 1
        // Predicated region
        $region29: #{tpu_custom_call.1} parent=27 // pred_check
          %p133 = pneg %p59
        $region30: #{tpu_custom_call.1} parent=27 // pred_check_branch
          %135 = sbr.rel (%p133) target = $region32
        $region31: #{tpu_custom_call.1} parent=27 // pred_region
          %137 = dma.done [#allocation3], 46080
        $region32: #{tpu_custom_call.1} parent=27 // pred_fallthru
          _
        %p138 = scmp.lt.s32.totalorder %s17, 1
        %s139 = scalar_select %p138, %s17, 1
        %s140 = smul.addr %s139, 36
        %s141 = smul.addr %s140, 8
        %s142 = scalar_lea.vmem %s0, %s141
        %p143 = pneg %p38
        %p144 = pneg %p35
        %p145 = pneg %p59
        %p146 = pneg %p56
        %p147 = pneg %p85
        %p148 = pneg %p82
        %s149 = sand.u32 %s72, 1
        %s150 = scalar_lea.sflag [#allocation4], %s149
        %s151 = sand.u32 %s72, 1
        %s152 = smul.addr %s151, 800
        %s153 = scalar_lea.vmem [#allocation5], %s152
        %p154 = scmp.lt.s32.totalorder %s17, 1
        %s155 = scalar_select %p154, %s17, 1
        %s156 = smul.addr %s155, 36
        %s157 = smul.addr %s156, 8
        %s158 = scalar_lea.vmem %s0, %s157
        %v159 = vld [vmem:[%s158] sm:$0xff]
        %v160 = vld [vmem:[%s158 + $0x8] sm:$0xff]
        %v161 = vld [vmem:[%s158 + $0x10] sm:$0x3]
        %v162 = vld [vmem:[%s158 + $0x18] sm:$0xff]
        %v163 = vld [vmem:[%s158 + $0x20] sm:$0xff]
        %v164 = vld [vmem:[%s158 + $0x28] sm:$0x3]
        %v165 = vld [vmem:[%s158 + $0x30] sm:$0xff]
        %v166 = vld [vmem:[%s158 + $0x38] sm:$0xff]
        %v167 = vld [vmem:[%s158 + $0x40] sm:$0x3]
        %v168 = vld [vmem:[%s158 + $0x48] sm:$0xff]
        %v169 = vld [vmem:[%s158 + $0x50] sm:$0xff]
        %v170 = vld [vmem:[%s158 + $0x58] sm:$0x3]
        %v171 = vld [vmem:[%s158 + $0x60] sm:$0xff]
        %v172 = vld [vmem:[%s158 + $0x68] sm:$0xff]
        %v173 = vld [vmem:[%s158 + $0x70] sm:$0x3]
        %v174 = vld [vmem:[%s158 + $0x78] sm:$0xff]
        %v175 = vld [vmem:[%s158 + $0x80] sm:$0xff]
        %v176 = vld [vmem:[%s158 + $0x88] sm:$0x3]
        %v177 = vld [vmem:[%s158 + $0x90] sm:$0xff]
        %v178 = vld [vmem:[%s158 + $0x98] sm:$0xff]
        %v179 = vld [vmem:[%s158 + $0xa0] sm:$0x3]
        %v180 = vld [vmem:[%s158 + $0xa8] sm:$0xff]
        %v181 = vld [vmem:[%s158 + $0xb0] sm:$0xff]
        %v182 = vld [vmem:[%s158 + $0xb8] sm:$0x3]
        %v183 = vld [vmem:[%s158 + $0xc0] sm:$0xff]
        %v184 = vld [vmem:[%s158 + $0xc8] sm:$0xff]
        %v185 = vld [vmem:[%s158 + $0xd0] sm:$0x3]
        %v186 = vld [vmem:[%s158 + $0xd8] sm:$0xff]
        %v187 = vld [vmem:[%s158 + $0xe0] sm:$0xff]
        %v188 = vld [vmem:[%s158 + $0xe8] sm:$0x3]
        %v189 = vld [vmem:[%s158 + $0xf0] sm:$0xff]
        %v190 = vld [vmem:[%s158 + $0xf8] sm:$0xff]
        %v191 = vld [vmem:[%s158 + $0x100] sm:$0x3]
        %v192 = vld [vmem:[%s158 + $0x108] sm:$0xff]
        %v193 = vld [vmem:[%s158 + $0x110] sm:$0xff]
        %v194 = vld [vmem:[%s158 + $0x118] sm:$0x3]
        %vm225 = vcmask 1046528
        %v226 = vrot.slane %v159, 1
        %v227 = vrot.slane %v160, 1
        %v228 = vsel %vm225, %v226, %v227
        %v229 = vrot.slane %v161, 1
        %v230 = vsel %vm225, %v227, %v229
        %v231 = vrot.slane %v162, 1
        %v232 = vrot.slane %v163, 1
        %v233 = vsel %vm225, %v231, %v232
        %v234 = vrot.slane %v164, 1
        %v235 = vsel %vm225, %v232, %v234
        %v236 = vrot.slane %v165, 1
        %v237 = vrot.slane %v166, 1
        %v238 = vsel %vm225, %v236, %v237
        %v239 = vrot.slane %v167, 1
        %v240 = vsel %vm225, %v237, %v239
        %v241 = vrot.slane %v168, 1
        %v242 = vrot.slane %v169, 1
        %v243 = vsel %vm225, %v241, %v242
        %v244 = vrot.slane %v170, 1
        %v245 = vsel %vm225, %v242, %v244
        %v246 = vrot.slane %v171, 1
        %v247 = vrot.slane %v172, 1
        %v248 = vsel %vm225, %v246, %v247
        %v249 = vrot.slane %v173, 1
        %v250 = vsel %vm225, %v247, %v249
        %v251 = vrot.slane %v174, 1
        %v252 = vrot.slane %v175, 1
        %v253 = vsel %vm225, %v251, %v252
        %v254 = vrot.slane %v176, 1
        %v255 = vsel %vm225, %v252, %v254
        %v256 = vrot.slane %v177, 1
        %v257 = vrot.slane %v178, 1
        %v258 = vsel %vm225, %v256, %v257
        %v259 = vrot.slane %v179, 1
        %v260 = vsel %vm225, %v257, %v259
        %v261 = vrot.slane %v180, 1
        %v262 = vrot.slane %v181, 1
        %v263 = vsel %vm225, %v261, %v262
        %v264 = vrot.slane %v182, 1
        %v265 = vsel %vm225, %v262, %v264
        %v266 = vrot.slane %v183, 1
        %v267 = vrot.slane %v184, 1
        %v268 = vsel %vm225, %v266, %v267
        %v269 = vrot.slane %v185, 1
        %v270 = vsel %vm225, %v267, %v269
        %v271 = vrot.slane %v186, 1
        %v272 = vrot.slane %v187, 1
        %v273 = vsel %vm225, %v271, %v272
        %v274 = vrot.slane %v188, 1
        %v275 = vsel %vm225, %v272, %v274
        %vm296 = vcmask 1045504
        %v297 = vrot.slane %v159, 2
        %v298 = vrot.slane %v160, 2
        %v299 = vsel %vm296, %v297, %v298
        %v300 = vrot.slane %v161, 2
        %v301 = vsel %vm296, %v298, %v300
        %v302 = vrot.slane %v162, 2
        %v303 = vrot.slane %v163, 2
        %v304 = vsel %vm296, %v302, %v303
        %v305 = vrot.slane %v164, 2
        %v306 = vsel %vm296, %v303, %v305
        %v307 = vrot.slane %v165, 2
        %v308 = vrot.slane %v166, 2
        %v309 = vsel %vm296, %v307, %v308
        %v310 = vrot.slane %v167, 2
        %v311 = vsel %vm296, %v308, %v310
        %v312 = vrot.slane %v168, 2
        %v313 = vrot.slane %v169, 2
        %v314 = vsel %vm296, %v312, %v313
        %v315 = vrot.slane %v170, 2
        %v316 = vsel %vm296, %v313, %v315
        %v317 = vrot.slane %v171, 2
        %v318 = vrot.slane %v172, 2
        %v319 = vsel %vm296, %v317, %v318
        %v320 = vrot.slane %v173, 2
        %v321 = vsel %vm296, %v318, %v320
        %v322 = vrot.slane %v174, 2
        %v323 = vrot.slane %v175, 2
        %v324 = vsel %vm296, %v322, %v323
        %v325 = vrot.slane %v176, 2
        %v326 = vsel %vm296, %v323, %v325
        %v327 = vrot.slane %v177, 2
        %v328 = vrot.slane %v178, 2
        %v329 = vsel %vm296, %v327, %v328
        %v330 = vrot.slane %v179, 2
        %v331 = vsel %vm296, %v328, %v330
        %v332 = vrot.slane %v180, 2
        %v333 = vrot.slane %v181, 2
        %v334 = vsel %vm296, %v332, %v333
        %v335 = vrot.slane %v182, 2
        %v336 = vsel %vm296, %v333, %v335
        %v337 = vrot.slane %v183, 2
        %v338 = vrot.slane %v184, 2
        %v339 = vsel %vm296, %v337, %v338
        %v340 = vrot.slane %v185, 2
        %v341 = vsel %vm296, %v338, %v340
        %v342 = vrot.slane %v186, 2
        %v343 = vrot.slane %v187, 2
        %v344 = vsel %vm296, %v342, %v343
        %v345 = vrot.slane %v188, 2
        %v346 = vsel %vm296, %v343, %v345
        %v370 = vrot.slane %v189, 1
        %v371 = vrot.slane %v190, 1
        %v372 = vsel %vm225, %v370, %v371
        %v373 = vrot.slane %v191, 1
        %v374 = vsel %vm225, %v371, %v373
        %v377 = vrot.slane %v189, 2
        %v378 = vrot.slane %v190, 2
        %v379 = vsel %vm296, %v377, %v378
        %v380 = vrot.slane %v191, 2
        %v381 = vsel %vm296, %v378, %v380
        %v387 = vrot.slane %v192, 1
        %v388 = vrot.slane %v193, 1
        %v389 = vsel %vm225, %v387, %v388
        %v390 = vrot.slane %v194, 1
        %v391 = vsel %vm225, %v388, %v390
        %v394 = vrot.slane %v192, 2
        %v395 = vrot.slane %v193, 2
        %v396 = vsel %vm296, %v394, %v395
        %v397 = vrot.slane %v194, 2
        %v398 = vsel %vm296, %v395, %v397
        %v401 = vpack.c.bf16 %v160, %v159
        %v402 = vpack.c.bf16 %v230, %v228
        %v403 = vpack.c.bf16 %v301, %v299
        %v404 = vpack.c.bf16 %v163, %v162
        %v405 = vpack.c.bf16 %v235, %v233
        %v406 = vpack.c.bf16 %v306, %v304
        %v407 = vpack.c.bf16 %v166, %v165
        %v408 = vpack.c.bf16 %v240, %v238
        %v409 = vpack.c.bf16 %v311, %v309
        %v410 = vpack.c.bf16 %v169, %v168
        %v411 = vpack.c.bf16 %v245, %v243
        %v412 = vpack.c.bf16 %v316, %v314
        %v413 = vpack.c.bf16 %v172, %v171
        %v414 = vpack.c.bf16 %v250, %v248
        %v415 = vpack.c.bf16 %v321, %v319
        %v416 = vpack.c.bf16 %v175, %v174
        %v417 = vpack.c.bf16 %v255, %v253
        %v418 = vpack.c.bf16 %v326, %v324
        %v419 = vpack.c.bf16 %v178, %v177
        %v420 = vpack.c.bf16 %v260, %v258
        %v421 = vpack.c.bf16 %v331, %v329
        %v422 = vpack.c.bf16 %v181, %v180
        %v423 = vpack.c.bf16 %v265, %v263
        %v424 = vpack.c.bf16 %v336, %v334
        %v425 = vpack.c.bf16 %v184, %v183
        %v426 = vpack.c.bf16 %v270, %v268
        %v427 = vpack.c.bf16 %v341, %v339
        %v428 = vpack.c.bf16 %v187, %v186
        %v429 = vpack.c.bf16 %v275, %v273
        %v430 = vpack.c.bf16 %v346, %v344
        %v431 = vpack.c.bf16 %v190, %v189
        %v432 = vpack.c.bf16 %v374, %v372
        %v433 = vpack.c.bf16 %v381, %v379
        %v434 = vpack.c.bf16 %v193, %v192
        %v435 = vpack.c.bf16 %v391, %v389
        %v436 = vpack.c.bf16 %v398, %v396
        %v437 = vld [vmem:[#allocation2] sm:$0xff]
        %v438 = vld [vmem:[#allocation2 + $0x8] sm:$0xff]
        %v439 = vld [vmem:[#allocation2 + $0x10] sm:$0xf]
        %v440 = vld [vmem:[#allocation2 + $0x14] sm:$0xff]
        %v441 = vld [vmem:[#allocation2 + $0x1c] sm:$0xff]
        %v442 = vld [vmem:[#allocation2 + $0x24] sm:$0xf]
        %v443 = vld [vmem:[#allocation2 + $0x28] sm:$0xff]
        %v444 = vld [vmem:[#allocation2 + $0x30] sm:$0xff]
        %v445 = vld [vmem:[#allocation2 + $0x38] sm:$0xf]
        %v446 = vld [vmem:[#allocation2 + $0x3c] sm:$0xff]
        %v447 = vld [vmem:[#allocation2 + $0x44] sm:$0xff]
        %v448 = vld [vmem:[#allocation2 + $0x4c] sm:$0xf]
        %v449 = vld [vmem:[#allocation2 + $0x50] sm:$0xff]
        %v450 = vld [vmem:[#allocation2 + $0x58] sm:$0xff]
        %v451 = vld [vmem:[#allocation2 + $0x60] sm:$0xf]
        %v452 = vld [vmem:[#allocation2 + $0x64] sm:$0xff]
        %v453 = vld [vmem:[#allocation2 + $0x6c] sm:$0xff]
        %v454 = vld [vmem:[#allocation2 + $0x74] sm:$0xf]
        %v455 = vld [vmem:[#allocation2 + $0x78] sm:$0xff]
        %v456 = vld [vmem:[#allocation2 + $0x80] sm:$0xff]
        %v457 = vld [vmem:[#allocation2 + $0x88] sm:$0xf]
        %v458 = vld [vmem:[#allocation2 + $0x8c] sm:$0xff]
        %v459 = vld [vmem:[#allocation2 + $0x94] sm:$0xff]
        %v460 = vld [vmem:[#allocation2 + $0x9c] sm:$0xf]
        %v461 = vld [vmem:[#allocation2 + $0xa0] sm:$0xff]
        %v462 = vld [vmem:[#allocation2 + $0xa8] sm:$0xff]
        %v463 = vld [vmem:[#allocation2 + $0xb0] sm:$0xf]
        %v464 = vld [vmem:[#allocation2 + $0xb4] sm:$0xff]
        %v465 = vld [vmem:[#allocation2 + $0xbc] sm:$0xff]
        %v466 = vld [vmem:[#allocation2 + $0xc4] sm:$0xf]
        %v467 = vld [vmem:[#allocation2 + $0xc8] sm:$0xff]
        %v468 = vld [vmem:[#allocation2 + $0xd0] sm:$0xff]
        %v469 = vld [vmem:[#allocation2 + $0xd8] sm:$0xf]
        %v470 = vld [vmem:[#allocation2 + $0xdc] sm:$0xff]
        %v471 = vld [vmem:[#allocation2 + $0xe4] sm:$0xff]
        %v472 = vld [vmem:[#allocation2 + $0xec] sm:$0xf]
        %v473 = vld [vmem:[#allocation2 + $0xf0] sm:$0xff]
        %v474 = vld [vmem:[#allocation2 + $0xf8] sm:$0xff]
        %v475 = vld [vmem:[#allocation2 + $0x100] sm:$0xf]
        %v476 = vld [vmem:[#allocation2 + $0x104] sm:$0xff]
        %v477 = vld [vmem:[#allocation2 + $0x10c] sm:$0xff]
        %v478 = vld [vmem:[#allocation2 + $0x114] sm:$0xf]
        %v479 = vld [vmem:[#allocation2 + $0x118] sm:$0xff]
        %v480 = vld [vmem:[#allocation2 + $0x120] sm:$0xff]
        %v481 = vld [vmem:[#allocation2 + $0x128] sm:$0xf]
        %v482 = vld [vmem:[#allocation2 + $0x12c] sm:$0xff]
        %v483 = vld [vmem:[#allocation2 + $0x134] sm:$0xff]
        %v484 = vld [vmem:[#allocation2 + $0x13c] sm:$0xf]
        %v485 = vld [vmem:[#allocation2 + $0x140] sm:$0xff]
        %v486 = vld [vmem:[#allocation2 + $0x148] sm:$0xff]
        %v487 = vld [vmem:[#allocation2 + $0x150] sm:$0xf]
        %v488 = vld [vmem:[#allocation2 + $0x154] sm:$0xff]
        %v489 = vld [vmem:[#allocation2 + $0x15c] sm:$0xff]
        %v490 = vld [vmem:[#allocation2 + $0x164] sm:$0xf]
        %v491 = vld [vmem:[#allocation2 + $0x168] sm:$0xff]
        %v492 = vld [vmem:[#allocation2 + $0x170] sm:$0xff]
        %v493 = vld [vmem:[#allocation2 + $0x178] sm:$0xf]
        %v494 = vld [vmem:[#allocation2 + $0x17c] sm:$0xff]
        %v495 = vld [vmem:[#allocation2 + $0x184] sm:$0xff]
        %v496 = vld [vmem:[#allocation2 + $0x18c] sm:$0xf]
        %v497 = vld [vmem:[#allocation2 + $0x190] sm:$0xff]
        %v498 = vld [vmem:[#allocation2 + $0x198] sm:$0xff]
        %v499 = vld [vmem:[#allocation2 + $0x1a0] sm:$0xf]
        %v500 = vld [vmem:[#allocation2 + $0x1a4] sm:$0xff]
        %v501 = vld [vmem:[#allocation2 + $0x1ac] sm:$0xff]
        %v502 = vld [vmem:[#allocation2 + $0x1b4] sm:$0xf]
        %v503 = vld [vmem:[#allocation2 + $0x1b8] sm:$0xff]
        %v504 = vld [vmem:[#allocation2 + $0x1c0] sm:$0xff]
        %v505 = vld [vmem:[#allocation2 + $0x1c8] sm:$0xf]
        %v506 = vld [vmem:[#allocation2 + $0x1cc] sm:$0xff]
        %v507 = vld [vmem:[#allocation2 + $0x1d4] sm:$0xff]
        %v508 = vld [vmem:[#allocation2 + $0x1dc] sm:$0xf]
        %v509 = vld [vmem:[#allocation2 + $0x1e0] sm:$0xff]
        %v510 = vld [vmem:[#allocation2 + $0x1e8] sm:$0xff]
        %v511 = vld [vmem:[#allocation2 + $0x1f0] sm:$0xf]
        %v512 = vld [vmem:[#allocation2 + $0x1f4] sm:$0xff]
        %v513 = vld [vmem:[#allocation2 + $0x1fc] sm:$0xff]
        %v514 = vld [vmem:[#allocation2 + $0x204] sm:$0xf]
        %v515 = vld [vmem:[#allocation2 + $0x208] sm:$0xff]
        %v516 = vld [vmem:[#allocation2 + $0x210] sm:$0xff]
        %v517 = vld [vmem:[#allocation2 + $0x218] sm:$0xf]
        %v518 = vld [vmem:[#allocation2 + $0x21c] sm:$0xff]
        %v519 = vld [vmem:[#allocation2 + $0x224] sm:$0xff]
        %v520 = vld [vmem:[#allocation2 + $0x22c] sm:$0xf]
        %v521 = vld [vmem:[#allocation2 + $0x230] sm:$0xff]
        %v522 = vld [vmem:[#allocation2 + $0x238] sm:$0xff]
        %v523 = vld [vmem:[#allocation2 + $0x240] sm:$0xf]
        %v524 = vld [vmem:[#allocation2 + $0x244] sm:$0xff]
        %v525 = vld [vmem:[#allocation2 + $0x24c] sm:$0xff]
        %v526 = vld [vmem:[#allocation2 + $0x254] sm:$0xf]
        %v527 = vld [vmem:[#allocation2 + $0x258] sm:$0xff]
        %v528 = vld [vmem:[#allocation2 + $0x260] sm:$0xff]
        %v529 = vld [vmem:[#allocation2 + $0x268] sm:$0xf]
        %v530 = vld [vmem:[#allocation2 + $0x26c] sm:$0xff]
        %v531 = vld [vmem:[#allocation2 + $0x274] sm:$0xff]
        %v532 = vld [vmem:[#allocation2 + $0x27c] sm:$0xf]
        %v533 = vld [vmem:[#allocation2 + $0x280] sm:$0xff]
        %v534 = vld [vmem:[#allocation2 + $0x288] sm:$0xff]
        %v535 = vld [vmem:[#allocation2 + $0x290] sm:$0xf]
        %v536 = vld [vmem:[#allocation2 + $0x294] sm:$0xff]
        %v537 = vld [vmem:[#allocation2 + $0x29c] sm:$0xff]
        %v538 = vld [vmem:[#allocation2 + $0x2a4] sm:$0xf]
        %v539 = vld [vmem:[#allocation2 + $0x2a8] sm:$0xff]
        %v540 = vld [vmem:[#allocation2 + $0x2b0] sm:$0xff]
        %v541 = vld [vmem:[#allocation2 + $0x2b8] sm:$0xf]
        %v542 = vld [vmem:[#allocation2 + $0x2bc] sm:$0xff]
        %v543 = vld [vmem:[#allocation2 + $0x2c4] sm:$0xff]
        %v544 = vld [vmem:[#allocation2 + $0x2cc] sm:$0xf]
        %v545 = vld [vmem:[#allocation2 + $0x2d0] sm:$0xff]
        %v546 = vld [vmem:[#allocation2 + $0x2d8] sm:$0xff]
        %v547 = vld [vmem:[#allocation2 + $0x2e0] sm:$0xf]
        %v548 = vld [vmem:[#allocation2 + $0x2e4] sm:$0xff]
        %v549 = vld [vmem:[#allocation2 + $0x2ec] sm:$0xff]
        %v550 = vld [vmem:[#allocation2 + $0x2f4] sm:$0xf]
        %v551 = vld [vmem:[#allocation2 + $0x2f8] sm:$0xff]
        %v552 = vld [vmem:[#allocation2 + $0x300] sm:$0xff]
        %v553 = vld [vmem:[#allocation2 + $0x308] sm:$0xf]
        %v554 = vld [vmem:[#allocation2 + $0x30c] sm:$0xff]
        %v555 = vld [vmem:[#allocation2 + $0x314] sm:$0xff]
        %v556 = vld [vmem:[#allocation2 + $0x31c] sm:$0xf]
        %v557 = vld [vmem:[#allocation2 + $0x320] sm:$0xff]
        %v558 = vld [vmem:[#allocation2 + $0x328] sm:$0xff]
        %v559 = vld [vmem:[#allocation2 + $0x330] sm:$0xf]
        %v560 = vld [vmem:[#allocation2 + $0x334] sm:$0xff]
        %v561 = vld [vmem:[#allocation2 + $0x33c] sm:$0xff]
        %v562 = vld [vmem:[#allocation2 + $0x344] sm:$0xf]
        %v563 = vld [vmem:[#allocation2 + $0x348] sm:$0xff]
        %v564 = vld [vmem:[#allocation2 + $0x350] sm:$0xff]
        %v565 = vld [vmem:[#allocation2 + $0x358] sm:$0xf]
        %v566 = vld [vmem:[#allocation2 + $0x35c] sm:$0xff]
        %v567 = vld [vmem:[#allocation2 + $0x364] sm:$0xff]
        %v568 = vld [vmem:[#allocation2 + $0x36c] sm:$0xf]
        %v569 = vld [vmem:[#allocation2 + $0x370] sm:$0xff]
        %v570 = vld [vmem:[#allocation2 + $0x378] sm:$0xff]
        %v571 = vld [vmem:[#allocation2 + $0x380] sm:$0xf]
        %v572 = vld [vmem:[#allocation2 + $0x384] sm:$0xff]
        %v573 = vld [vmem:[#allocation2 + $0x38c] sm:$0xff]
        %v574 = vld [vmem:[#allocation2 + $0x394] sm:$0xf]
        %v575 = vld [vmem:[#allocation2 + $0x398] sm:$0xff]
        %v576 = vld [vmem:[#allocation2 + $0x3a0] sm:$0xff]
        %v577 = vld [vmem:[#allocation2 + $0x3a8] sm:$0xf]
        %v578 = vld [vmem:[#allocation2 + $0x3ac] sm:$0xff]
        %v579 = vld [vmem:[#allocation2 + $0x3b4] sm:$0xff]
        %v580 = vld [vmem:[#allocation2 + $0x3bc] sm:$0xf]
        %v581 = vld [vmem:[#allocation2 + $0x3c0] sm:$0xff]
        %v582 = vld [vmem:[#allocation2 + $0x3c8] sm:$0xff]
        %v583 = vld [vmem:[#allocation2 + $0x3d0] sm:$0xf]
        %v584 = vld [vmem:[#allocation2 + $0x3d4] sm:$0xff]
        %v585 = vld [vmem:[#allocation2 + $0x3dc] sm:$0xff]
        %v586 = vld [vmem:[#allocation2 + $0x3e4] sm:$0xf]
        %v587 = vld [vmem:[#allocation2 + $0x3e8] sm:$0xff]
        %v588 = vld [vmem:[#allocation2 + $0x3f0] sm:$0xff]
        %v589 = vld [vmem:[#allocation2 + $0x3f8] sm:$0xf]
        %v590 = vld [vmem:[#allocation2 + $0x3fc] sm:$0xff]
        %v591 = vld [vmem:[#allocation2 + $0x404] sm:$0xff]
        %v592 = vld [vmem:[#allocation2 + $0x40c] sm:$0xf]
        %v593 = vld [vmem:[#allocation2 + $0x410] sm:$0xff]
        %v594 = vld [vmem:[#allocation2 + $0x418] sm:$0xff]
        %v595 = vld [vmem:[#allocation2 + $0x420] sm:$0xf]
        %v596 = vld [vmem:[#allocation2 + $0x424] sm:$0xff]
        %v597 = vld [vmem:[#allocation2 + $0x42c] sm:$0xff]
        %v598 = vld [vmem:[#allocation2 + $0x434] sm:$0xf]
        %v599 = vld [vmem:[#allocation2 + $0x438] sm:$0xff]
        %v600 = vld [vmem:[#allocation2 + $0x440] sm:$0xff]
        %v601 = vld [vmem:[#allocation2 + $0x448] sm:$0xf]
        %v602 = vld [vmem:[#allocation2 + $0x44c] sm:$0xff]
        %v603 = vld [vmem:[#allocation2 + $0x454] sm:$0xff]
        %v604 = vld [vmem:[#allocation2 + $0x45c] sm:$0xf]
        %v605 = vld [vmem:[#allocation2 + $0x460] sm:$0xff]
        %v606 = vld [vmem:[#allocation2 + $0x468] sm:$0xff]
        %v607 = vld [vmem:[#allocation2 + $0x470] sm:$0xf]
        %v608 = vld [vmem:[#allocation2 + $0x474] sm:$0xff]
        %v609 = vld [vmem:[#allocation2 + $0x47c] sm:$0xff]
        %v610 = vld [vmem:[#allocation2 + $0x484] sm:$0xf]
        %v611 = vld [vmem:[#allocation2 + $0x488] sm:$0xff]
        %v612 = vld [vmem:[#allocation2 + $0x490] sm:$0xff]
        %v613 = vld [vmem:[#allocation2 + $0x498] sm:$0xf]
        %v614 = vld [vmem:[#allocation2 + $0x49c] sm:$0xff]
        %v615 = vld [vmem:[#allocation2 + $0x4a4] sm:$0xff]
        %v616 = vld [vmem:[#allocation2 + $0x4ac] sm:$0xf]
        %v617 = vld [vmem:[#allocation2 + $0x4b0] sm:$0xff]
        %v618 = vld [vmem:[#allocation2 + $0x4b8] sm:$0xff]
        %v619 = vld [vmem:[#allocation2 + $0x4c0] sm:$0xf]
        %v620 = vld [vmem:[#allocation2 + $0x4c4] sm:$0xff]
        %v621 = vld [vmem:[#allocation2 + $0x4cc] sm:$0xff]
        %v622 = vld [vmem:[#allocation2 + $0x4d4] sm:$0xf]
        %v623 = vld [vmem:[#allocation2 + $0x4d8] sm:$0xff]
        %v624 = vld [vmem:[#allocation2 + $0x4e0] sm:$0xff]
        %v625 = vld [vmem:[#allocation2 + $0x4e8] sm:$0xf]
        %v626 = vld [vmem:[#allocation2 + $0x4ec] sm:$0xff]
        %v627 = vld [vmem:[#allocation2 + $0x4f4] sm:$0xff]
        %v628 = vld [vmem:[#allocation2 + $0x4fc] sm:$0xf]
        %v629 = vld [vmem:[#allocation2 + $0x500] sm:$0xff]
        %v630 = vld [vmem:[#allocation2 + $0x508] sm:$0xff]
        %v631 = vld [vmem:[#allocation2 + $0x510] sm:$0xf]
        %v632 = vld [vmem:[#allocation2 + $0x514] sm:$0xff]
        %v633 = vld [vmem:[#allocation2 + $0x51c] sm:$0xff]
        %v634 = vld [vmem:[#allocation2 + $0x524] sm:$0xf]
        %v635 = vld [vmem:[#allocation2 + $0x528] sm:$0xff]
        %v636 = vld [vmem:[#allocation2 + $0x530] sm:$0xff]
        %v637 = vld [vmem:[#allocation2 + $0x538] sm:$0xf]
        %v638 = vld [vmem:[#allocation2 + $0x53c] sm:$0xff]
        %v639 = vld [vmem:[#allocation2 + $0x544] sm:$0xff]
        %v640 = vld [vmem:[#allocation2 + $0x54c] sm:$0xf]
        %v641 = vld [vmem:[#allocation2 + $0x550] sm:$0xff]
        %v642 = vld [vmem:[#allocation2 + $0x558] sm:$0xff]
        %v643 = vld [vmem:[#allocation2 + $0x560] sm:$0xf]
        %v644 = vld [vmem:[#allocation2 + $0x564] sm:$0xff]
        %v645 = vld [vmem:[#allocation2 + $0x56c] sm:$0xff]
        %v646 = vld [vmem:[#allocation2 + $0x574] sm:$0xf]
        %v647 = vld [vmem:[#allocation2 + $0x578] sm:$0xff]
        %v648 = vld [vmem:[#allocation2 + $0x580] sm:$0xff]
        %v649 = vld [vmem:[#allocation2 + $0x588] sm:$0xf]
        %v650 = vld [vmem:[#allocation2 + $0x58c] sm:$0xff]
        %v651 = vld [vmem:[#allocation2 + $0x594] sm:$0xff]
        %v652 = vld [vmem:[#allocation2 + $0x59c] sm:$0xf]
        %v653 = vld [vmem:[#allocation2 + $0x5a0] sm:$0xff]
        %v654 = vld [vmem:[#allocation2 + $0x5a8] sm:$0xff]
        %v655 = vld [vmem:[#allocation2 + $0x5b0] sm:$0xf]
        %v656 = vld [vmem:[#allocation2 + $0x5b4] sm:$0xff]
        %v657 = vld [vmem:[#allocation2 + $0x5bc] sm:$0xff]
        %v658 = vld [vmem:[#allocation2 + $0x5c4] sm:$0xf]
        %v659 = vld [vmem:[#allocation2 + $0x5c8] sm:$0xff]
        %v660 = vld [vmem:[#allocation2 + $0x5d0] sm:$0xff]
        %v661 = vld [vmem:[#allocation2 + $0x5d8] sm:$0xf]
        %v662 = vld [vmem:[#allocation2 + $0x5dc] sm:$0xff]
        %v663 = vld [vmem:[#allocation2 + $0x5e4] sm:$0xff]
        %v664 = vld [vmem:[#allocation2 + $0x5ec] sm:$0xf]
        %v665 = vld [vmem:[#allocation2 + $0x5f0] sm:$0xff]
        %v666 = vld [vmem:[#allocation2 + $0x5f8] sm:$0xff]
        %v667 = vld [vmem:[#allocation2 + $0x600] sm:$0xf]
        %v668 = vld [vmem:[#allocation2 + $0x604] sm:$0xff]
        %v669 = vld [vmem:[#allocation2 + $0x60c] sm:$0xff]
        %v670 = vld [vmem:[#allocation2 + $0x614] sm:$0xf]
        %v671 = vld [vmem:[#allocation2 + $0x618] sm:$0xff]
        %v672 = vld [vmem:[#allocation2 + $0x620] sm:$0xff]
        %v673 = vld [vmem:[#allocation2 + $0x628] sm:$0xf]
        %v674 = vld [vmem:[#allocation2 + $0x62c] sm:$0xff]
        %v675 = vld [vmem:[#allocation2 + $0x634] sm:$0xff]
        %v676 = vld [vmem:[#allocation2 + $0x63c] sm:$0xf]
        %v677 = vld [vmem:[#allocation2 + $0x640] sm:$0xff]
        %v678 = vld [vmem:[#allocation2 + $0x648] sm:$0xff]
        %v679 = vld [vmem:[#allocation2 + $0x650] sm:$0xf]
        %v680 = vld [vmem:[#allocation2 + $0x654] sm:$0xff]
        %v681 = vld [vmem:[#allocation2 + $0x65c] sm:$0xff]
        %v682 = vld [vmem:[#allocation2 + $0x664] sm:$0xf]
        %v683 = vld [vmem:[#allocation2 + $0x668] sm:$0xff]
        %v684 = vld [vmem:[#allocation2 + $0x670] sm:$0xff]
        %v685 = vld [vmem:[#allocation2 + $0x678] sm:$0xf]
        %v686 = vld [vmem:[#allocation2 + $0x67c] sm:$0xff]
        %v687 = vld [vmem:[#allocation2 + $0x684] sm:$0xff]
        %v688 = vld [vmem:[#allocation2 + $0x68c] sm:$0xf]
        %v689 = vld [vmem:[#allocation2 + $0x690] sm:$0xff]
        %v690 = vld [vmem:[#allocation2 + $0x698] sm:$0xff]
        %v691 = vld [vmem:[#allocation2 + $0x6a0] sm:$0xf]
        %v692 = vld [vmem:[#allocation2 + $0x6a4] sm:$0xff]
        %v693 = vld [vmem:[#allocation2 + $0x6ac] sm:$0xff]
        %v694 = vld [vmem:[#allocation2 + $0x6b4] sm:$0xf]
        %v695 = vld [vmem:[#allocation2 + $0x6b8] sm:$0xff]
        %v696 = vld [vmem:[#allocation2 + $0x6c0] sm:$0xff]
        %v697 = vld [vmem:[#allocation2 + $0x6c8] sm:$0xf]
        %v698 = vld [vmem:[#allocation2 + $0x6cc] sm:$0xff]
        %v699 = vld [vmem:[#allocation2 + $0x6d4] sm:$0xff]
        %v700 = vld [vmem:[#allocation2 + $0x6dc] sm:$0xf]
        %v701 = vld [vmem:[#allocation2 + $0x6e0] sm:$0xff]
        %v702 = vld [vmem:[#allocation2 + $0x6e8] sm:$0xff]
        %v703 = vld [vmem:[#allocation2 + $0x6f0] sm:$0xf]
        %v704 = vld [vmem:[#allocation2 + $0x6f4] sm:$0xff]
        %v705 = vld [vmem:[#allocation2 + $0x6fc] sm:$0xff]
        %v706 = vld [vmem:[#allocation2 + $0x704] sm:$0xf]
        %v707 = vld [vmem:[#allocation2 + $0x708] sm:$0xff]
        %v708 = vld [vmem:[#allocation2 + $0x710] sm:$0xff]
        %v709 = vld [vmem:[#allocation2 + $0x718] sm:$0xf]
        %v710 = vld [vmem:[#allocation2 + $0x71c] sm:$0xff]
        %v711 = vld [vmem:[#allocation2 + $0x724] sm:$0xff]
        %v712 = vld [vmem:[#allocation2 + $0x72c] sm:$0xf]
        %v713 = vld [vmem:[#allocation2 + $0x730] sm:$0xff]
        %v714 = vld [vmem:[#allocation2 + $0x738] sm:$0xff]
        %v715 = vld [vmem:[#allocation2 + $0x740] sm:$0xf]
        %v716 = vld [vmem:[#allocation2 + $0x744] sm:$0xff]
        %v717 = vld [vmem:[#allocation2 + $0x74c] sm:$0xff]
        %v718 = vld [vmem:[#allocation2 + $0x754] sm:$0xf]
        %v719 = vld [vmem:[#allocation2 + $0x758] sm:$0xff]
        %v720 = vld [vmem:[#allocation2 + $0x760] sm:$0xff]
        %v721 = vld [vmem:[#allocation2 + $0x768] sm:$0xf]
        %v722 = vld [vmem:[#allocation2 + $0x76c] sm:$0xff]
        %v723 = vld [vmem:[#allocation2 + $0x774] sm:$0xff]
        %v724 = vld [vmem:[#allocation2 + $0x77c] sm:$0xf]
        %v725 = vld [vmem:[#allocation2 + $0x780] sm:$0xff]
        %v726 = vld [vmem:[#allocation2 + $0x788] sm:$0xff]
        %v727 = vld [vmem:[#allocation2 + $0x790] sm:$0xf]
        %v728 = vld [vmem:[#allocation2 + $0x794] sm:$0xff]
        %v729 = vld [vmem:[#allocation2 + $0x79c] sm:$0xff]
        %v730 = vld [vmem:[#allocation2 + $0x7a4] sm:$0xf]
        %v731 = vld [vmem:[#allocation2 + $0x7a8] sm:$0xff]
        %v732 = vld [vmem:[#allocation2 + $0x7b0] sm:$0xff]
        %v733 = vld [vmem:[#allocation2 + $0x7b8] sm:$0xf]
        %v734 = vld [vmem:[#allocation2 + $0x7bc] sm:$0xff]
        %v735 = vld [vmem:[#allocation2 + $0x7c4] sm:$0xff]
        %v736 = vld [vmem:[#allocation2 + $0x7cc] sm:$0xf]
        %v737 = vld [vmem:[#allocation2 + $0x7d0] sm:$0xff]
        %v738 = vld [vmem:[#allocation2 + $0x7d8] sm:$0xff]
        %v739 = vld [vmem:[#allocation2 + $0x7e0] sm:$0xf]
        %v740 = vld [vmem:[#allocation2 + $0x7e4] sm:$0xff]
        %v741 = vld [vmem:[#allocation2 + $0x7ec] sm:$0xff]
        %v742 = vld [vmem:[#allocation2 + $0x7f4] sm:$0xf]
        %v743 = vld [vmem:[#allocation2 + $0x7f8] sm:$0xff]
        %v744 = vld [vmem:[#allocation2 + $0x800] sm:$0xff]
        %v745 = vld [vmem:[#allocation2 + $0x808] sm:$0xf]
        %v746 = vld [vmem:[#allocation2 + $0x80c] sm:$0xff]
        %v747 = vld [vmem:[#allocation2 + $0x814] sm:$0xff]
        %v748 = vld [vmem:[#allocation2 + $0x81c] sm:$0xf]
        %v749 = vld [vmem:[#allocation2 + $0x820] sm:$0xff]
        %v750 = vld [vmem:[#allocation2 + $0x828] sm:$0xff]
        %v751 = vld [vmem:[#allocation2 + $0x830] sm:$0xf]
        %v752 = vld [vmem:[#allocation2 + $0x834] sm:$0xff]
        %v753 = vld [vmem:[#allocation2 + $0x83c] sm:$0xff]
        %v754 = vld [vmem:[#allocation2 + $0x844] sm:$0xf]
        %v755 = vld [vmem:[#allocation2 + $0x848] sm:$0xff]
        %v756 = vld [vmem:[#allocation2 + $0x850] sm:$0xff]
        %v757 = vld [vmem:[#allocation2 + $0x858] sm:$0xf]
        %v758 = vld [vmem:[#allocation2 + $0x85c] sm:$0xff]
        %v759 = vld [vmem:[#allocation2 + $0x864] sm:$0xff]
        %v760 = vld [vmem:[#allocation2 + $0x86c] sm:$0xf]
        %v761 = vld [vmem:[#allocation2 + $0x870] sm:$0xff]
        %v762 = vld [vmem:[#allocation2 + $0x878] sm:$0xff]
        %v763 = vld [vmem:[#allocation2 + $0x880] sm:$0xf]
        %v764 = vld [vmem:[#allocation2 + $0x884] sm:$0xff]
        %v765 = vld [vmem:[#allocation2 + $0x88c] sm:$0xff]
        %v766 = vld [vmem:[#allocation2 + $0x894] sm:$0xf]
        %v767 = vld [vmem:[#allocation2 + $0x898] sm:$0xff]
        %v768 = vld [vmem:[#allocation2 + $0x8a0] sm:$0xff]
        %v769 = vld [vmem:[#allocation2 + $0x8a8] sm:$0xf]
        %v770 = vld [vmem:[#allocation2 + $0x8ac] sm:$0xff]
        %v771 = vld [vmem:[#allocation2 + $0x8b4] sm:$0xff]
        %v772 = vld [vmem:[#allocation2 + $0x8bc] sm:$0xf]
        %v773 = vld [vmem:[#allocation2 + $0x8c0] sm:$0xff]
        %v774 = vld [vmem:[#allocation2 + $0x8c8] sm:$0xff]
        %v775 = vld [vmem:[#allocation2 + $0x8d0] sm:$0xf]
        %v776 = vld [vmem:[#allocation2 + $0x8d4] sm:$0xff]
        %v777 = vld [vmem:[#allocation2 + $0x8dc] sm:$0xff]
        %v778 = vld [vmem:[#allocation2 + $0x8e4] sm:$0xf]
        %v779 = vld [vmem:[#allocation2 + $0x8e8] sm:$0xff]
        %v780 = vld [vmem:[#allocation2 + $0x8f0] sm:$0xff]
        %v781 = vld [vmem:[#allocation2 + $0x8f8] sm:$0xf]
        %v782 = vld [vmem:[#allocation2 + $0x8fc] sm:$0xff]
        %v783 = vld [vmem:[#allocation2 + $0x904] sm:$0xff]
        %v784 = vld [vmem:[#allocation2 + $0x90c] sm:$0xf]
        %v785 = vld [vmem:[#allocation2 + $0x910] sm:$0xff]
        %v786 = vld [vmem:[#allocation2 + $0x918] sm:$0xff]
        %v787 = vld [vmem:[#allocation2 + $0x920] sm:$0xf]
        %v788 = vld [vmem:[#allocation2 + $0x924] sm:$0xff]
        %v789 = vld [vmem:[#allocation2 + $0x92c] sm:$0xff]
        %v790 = vld [vmem:[#allocation2 + $0x934] sm:$0xf]
        %v791 = vld [vmem:[#allocation2 + $0x938] sm:$0xff]
        %v792 = vld [vmem:[#allocation2 + $0x940] sm:$0xff]
        %v793 = vld [vmem:[#allocation2 + $0x948] sm:$0xf]
        %v794 = vld [vmem:[#allocation2 + $0x94c] sm:$0xff]
        %v795 = vld [vmem:[#allocation2 + $0x954] sm:$0xff]
        %v796 = vld [vmem:[#allocation2 + $0x95c] sm:$0xf]
        %v797 = vld [vmem:[#allocation2 + $0x960] sm:$0xff]
        %v798 = vld [vmem:[#allocation2 + $0x968] sm:$0xff]
        %v799 = vld [vmem:[#allocation2 + $0x970] sm:$0xf]
        %v800 = vld [vmem:[#allocation2 + $0x974] sm:$0xff]
        %v801 = vld [vmem:[#allocation2 + $0x97c] sm:$0xff]
        %v802 = vld [vmem:[#allocation2 + $0x984] sm:$0xf]
        %v803 = vld [vmem:[#allocation2 + $0x988] sm:$0xff]
        %v804 = vld [vmem:[#allocation2 + $0x990] sm:$0xff]
        %v805 = vld [vmem:[#allocation2 + $0x998] sm:$0xf]
        %v806 = vld [vmem:[#allocation2 + $0x99c] sm:$0xff]
        %v807 = vld [vmem:[#allocation2 + $0x9a4] sm:$0xff]
        %v808 = vld [vmem:[#allocation2 + $0x9ac] sm:$0xf]
        %v809 = vld [vmem:[#allocation2 + $0x9b0] sm:$0xff]
        %v810 = vld [vmem:[#allocation2 + $0x9b8] sm:$0xff]
        %v811 = vld [vmem:[#allocation2 + $0x9c0] sm:$0xf]
        %v812 = vld [vmem:[#allocation2 + $0x9c4] sm:$0xff]
        %v813 = vld [vmem:[#allocation2 + $0x9cc] sm:$0xff]
        %v814 = vld [vmem:[#allocation2 + $0x9d4] sm:$0xf]
        %v815 = vld [vmem:[#allocation2 + $0x9d8] sm:$0xff]
        %v816 = vld [vmem:[#allocation2 + $0x9e0] sm:$0xff]
        %v817 = vld [vmem:[#allocation2 + $0x9e8] sm:$0xf]
        %v818 = vld [vmem:[#allocation2 + $0x9ec] sm:$0xff]
        %v819 = vld [vmem:[#allocation2 + $0x9f4] sm:$0xff]
        %v820 = vld [vmem:[#allocation2 + $0x9fc] sm:$0xf]
        %v821 = vld [vmem:[#allocation2 + $0xa00] sm:$0xff]
        %v822 = vld [vmem:[#allocation2 + $0xa08] sm:$0xff]
        %v823 = vld [vmem:[#allocation2 + $0xa10] sm:$0xf]
        %v824 = vld [vmem:[#allocation2 + $0xa14] sm:$0xff]
        %v825 = vld [vmem:[#allocation2 + $0xa1c] sm:$0xff]
        %v826 = vld [vmem:[#allocation2 + $0xa24] sm:$0xf]
        %v827 = vld [vmem:[#allocation2 + $0xa28] sm:$0xff]
        %v828 = vld [vmem:[#allocation2 + $0xa30] sm:$0xff]
        %v829 = vld [vmem:[#allocation2 + $0xa38] sm:$0xf]
        %v830 = vld [vmem:[#allocation2 + $0xa3c] sm:$0xff]
        %v831 = vld [vmem:[#allocation2 + $0xa44] sm:$0xff]
        %v832 = vld [vmem:[#allocation2 + $0xa4c] sm:$0xf]
        %v833 = vld [vmem:[#allocation2 + $0xa50] sm:$0xff]
        %v834 = vld [vmem:[#allocation2 + $0xa58] sm:$0xff]
        %v835 = vld [vmem:[#allocation2 + $0xa60] sm:$0xf]
        %v836 = vld [vmem:[#allocation2 + $0xa64] sm:$0xff]
        %v837 = vld [vmem:[#allocation2 + $0xa6c] sm:$0xff]
        %v838 = vld [vmem:[#allocation2 + $0xa74] sm:$0xf]
        %v839 = vld [vmem:[#allocation2 + $0xa78] sm:$0xff]
        %v840 = vld [vmem:[#allocation2 + $0xa80] sm:$0xff]
        %v841 = vld [vmem:[#allocation2 + $0xa88] sm:$0xf]
        %v842 = vld [vmem:[#allocation2 + $0xa8c] sm:$0xff]
        %v843 = vld [vmem:[#allocation2 + $0xa94] sm:$0xff]
        %v844 = vld [vmem:[#allocation2 + $0xa9c] sm:$0xf]
        %v845 = vld [vmem:[#allocation2 + $0xaa0] sm:$0xff]
        %v846 = vld [vmem:[#allocation2 + $0xaa8] sm:$0xff]
        %v847 = vld [vmem:[#allocation2 + $0xab0] sm:$0xf]
        %v848 = vld [vmem:[#allocation2 + $0xab4] sm:$0xff]
        %v849 = vld [vmem:[#allocation2 + $0xabc] sm:$0xff]
        %v850 = vld [vmem:[#allocation2 + $0xac4] sm:$0xf]
        %v851 = vld [vmem:[#allocation2 + $0xac8] sm:$0xff]
        %v852 = vld [vmem:[#allocation2 + $0xad0] sm:$0xff]
        %v853 = vld [vmem:[#allocation2 + $0xad8] sm:$0xf]
        %v854 = vld [vmem:[#allocation2 + $0xadc] sm:$0xff]
        %v855 = vld [vmem:[#allocation2 + $0xae4] sm:$0xff]
        %v856 = vld [vmem:[#allocation2 + $0xaec] sm:$0xf]
        %v857 = vld [vmem:[#allocation2 + $0xaf0] sm:$0xff]
        %v858 = vld [vmem:[#allocation2 + $0xaf8] sm:$0xff]
        %v859 = vld [vmem:[#allocation2 + $0xb00] sm:$0xf]
        %v860 = vld [vmem:[#allocation2 + $0xb04] sm:$0xff]
        %v861 = vld [vmem:[#allocation2 + $0xb0c] sm:$0xff]
        %v862 = vld [vmem:[#allocation2 + $0xb14] sm:$0xf]
        %v863 = vld [vmem:[#allocation2 + $0xb18] sm:$0xff]
        %v864 = vld [vmem:[#allocation2 + $0xb20] sm:$0xff]
        %v865 = vld [vmem:[#allocation2 + $0xb28] sm:$0xf]
        %v866 = vld [vmem:[#allocation2 + $0xb2c] sm:$0xff]
        %v867 = vld [vmem:[#allocation2 + $0xb34] sm:$0xff]
        %v868 = vld [vmem:[#allocation2 + $0xb3c] sm:$0xf]
        %v1301 = vunpack.c.l.b16 %v437
        %v1302 = vunpack.c.h.b16 %v437
        %v1303 = vunpack.c.l.b16 %v438
        %v1304 = vunpack.c.h.b16 %v438
        %v1305 = vunpack.c.l.b16 %v439
        %v1306 = vunpack.c.l.b16 %v440
        %v1307 = vunpack.c.h.b16 %v440
        %v1308 = vunpack.c.l.b16 %v441
        %v1309 = vunpack.c.h.b16 %v441
        %v1310 = vunpack.c.l.b16 %v442
        %v1311 = vunpack.c.l.b16 %v443
        %v1312 = vunpack.c.h.b16 %v443
        %v1313 = vunpack.c.l.b16 %v444
        %v1314 = vunpack.c.h.b16 %v444
        %v1315 = vunpack.c.l.b16 %v445
        %v1316 = vunpack.c.l.b16 %v446
        %v1317 = vunpack.c.h.b16 %v446
        %v1318 = vunpack.c.l.b16 %v447
        %v1319 = vunpack.c.h.b16 %v447
        %v1320 = vunpack.c.l.b16 %v448
        %v1321 = vunpack.c.l.b16 %v449
        %v1322 = vunpack.c.h.b16 %v449
        %v1323 = vunpack.c.l.b16 %v450
        %v1324 = vunpack.c.h.b16 %v450
        %v1325 = vunpack.c.l.b16 %v451
        %v1326 = vunpack.c.l.b16 %v452
        %v1327 = vunpack.c.h.b16 %v452
        %v1328 = vunpack.c.l.b16 %v453
        %v1329 = vunpack.c.h.b16 %v453
        %v1330 = vunpack.c.l.b16 %v454
        %v1331 = vunpack.c.l.b16 %v455
        %v1332 = vunpack.c.h.b16 %v455
        %v1333 = vunpack.c.l.b16 %v456
        %v1334 = vunpack.c.h.b16 %v456
        %v1335 = vunpack.c.l.b16 %v457
        %v1336 = vunpack.c.l.b16 %v458
        %v1337 = vunpack.c.h.b16 %v458
        %v1338 = vunpack.c.l.b16 %v459
        %v1339 = vunpack.c.h.b16 %v459
        %v1340 = vunpack.c.l.b16 %v460
        %v1341 = vunpack.c.l.b16 %v461
        %v1342 = vunpack.c.h.b16 %v461
        %v1343 = vunpack.c.l.b16 %v462
        %v1344 = vunpack.c.h.b16 %v462
        %v1345 = vunpack.c.l.b16 %v463
        %v1346 = vunpack.c.l.b16 %v464
        %v1347 = vunpack.c.h.b16 %v464
        %v1348 = vunpack.c.l.b16 %v465
        %v1349 = vunpack.c.h.b16 %v465
        %v1350 = vunpack.c.l.b16 %v466
        %v1351 = vunpack.c.l.b16 %v467
        %v1352 = vunpack.c.h.b16 %v467
        %v1353 = vunpack.c.l.b16 %v468
        %v1354 = vunpack.c.h.b16 %v468
        %v1355 = vunpack.c.l.b16 %v469
        %v1356 = vunpack.c.l.b16 %v470
        %v1357 = vunpack.c.h.b16 %v470
        %v1358 = vunpack.c.l.b16 %v471
        %v1359 = vunpack.c.h.b16 %v471
        %v1360 = vunpack.c.l.b16 %v472
        %v1361 = vunpack.c.l.b16 %v473
        %v1362 = vunpack.c.h.b16 %v473
        %v1363 = vunpack.c.l.b16 %v474
        %v1364 = vunpack.c.h.b16 %v474
        %v1365 = vunpack.c.l.b16 %v475
        %v1366 = vunpack.c.l.b16 %v476
        %v1367 = vunpack.c.h.b16 %v476
        %v1368 = vunpack.c.l.b16 %v477
        %v1369 = vunpack.c.h.b16 %v477
        %v1370 = vunpack.c.l.b16 %v478
        %v1371 = vunpack.c.l.b16 %v479
        %v1372 = vunpack.c.h.b16 %v479
        %v1373 = vunpack.c.l.b16 %v480
        %v1374 = vunpack.c.h.b16 %v480
        %v1375 = vunpack.c.l.b16 %v481
        %v1376 = vunpack.c.l.b16 %v482
        %v1377 = vunpack.c.h.b16 %v482
        %v1378 = vunpack.c.l.b16 %v483
        %v1379 = vunpack.c.h.b16 %v483
        %v1380 = vunpack.c.l.b16 %v484
        %v1381 = vunpack.c.l.b16 %v485
        %v1382 = vunpack.c.h.b16 %v485
        %v1383 = vunpack.c.l.b16 %v486
        %v1384 = vunpack.c.h.b16 %v486
        %v1385 = vunpack.c.l.b16 %v487
        %v1386 = vunpack.c.l.b16 %v488
        %v1387 = vunpack.c.h.b16 %v488
        %v1388 = vunpack.c.l.b16 %v489
        %v1389 = vunpack.c.h.b16 %v489
        %v1390 = vunpack.c.l.b16 %v490
        %v1391 = vunpack.c.l.b16 %v491
        %v1392 = vunpack.c.h.b16 %v491
        %v1393 = vunpack.c.l.b16 %v492
        %v1394 = vunpack.c.h.b16 %v492
        %v1395 = vunpack.c.l.b16 %v493
        %v1396 = vunpack.c.l.b16 %v494
        %v1397 = vunpack.c.h.b16 %v494
        %v1398 = vunpack.c.l.b16 %v495
        %v1399 = vunpack.c.h.b16 %v495
        %v1400 = vunpack.c.l.b16 %v496
        %v1401 = vunpack.c.l.b16 %v497
        %v1402 = vunpack.c.h.b16 %v497
        %v1403 = vunpack.c.l.b16 %v498
        %v1404 = vunpack.c.h.b16 %v498
        %v1405 = vunpack.c.l.b16 %v499
        %v1406 = vunpack.c.l.b16 %v500
        %v1407 = vunpack.c.h.b16 %v500
        %v1408 = vunpack.c.l.b16 %v501
        %v1409 = vunpack.c.h.b16 %v501
        %v1410 = vunpack.c.l.b16 %v502
        %v1411 = vunpack.c.l.b16 %v503
        %v1412 = vunpack.c.h.b16 %v503
        %v1413 = vunpack.c.l.b16 %v504
        %v1414 = vunpack.c.h.b16 %v504
        %v1415 = vunpack.c.l.b16 %v505
        %v1416 = vunpack.c.l.b16 %v506
        %v1417 = vunpack.c.h.b16 %v506
        %v1418 = vunpack.c.l.b16 %v507
        %v1419 = vunpack.c.h.b16 %v507
        %v1420 = vunpack.c.l.b16 %v508
        %v1421 = vunpack.c.l.b16 %v509
        %v1422 = vunpack.c.h.b16 %v509
        %v1423 = vunpack.c.l.b16 %v510
        %v1424 = vunpack.c.h.b16 %v510
        %v1425 = vunpack.c.l.b16 %v511
        %v1426 = vunpack.c.l.b16 %v512
        %v1427 = vunpack.c.h.b16 %v512
        %v1428 = vunpack.c.l.b16 %v513
        %v1429 = vunpack.c.h.b16 %v513
        %v1430 = vunpack.c.l.b16 %v514
        %v1431 = vunpack.c.l.b16 %v515
        %v1432 = vunpack.c.h.b16 %v515
        %v1433 = vunpack.c.l.b16 %v516
        %v1434 = vunpack.c.h.b16 %v516
        %v1435 = vunpack.c.l.b16 %v517
        %v1436 = vunpack.c.l.b16 %v518
        %v1437 = vunpack.c.h.b16 %v518
        %v1438 = vunpack.c.l.b16 %v519
        %v1439 = vunpack.c.h.b16 %v519
        %v1440 = vunpack.c.l.b16 %v520
        %v1441 = vunpack.c.l.b16 %v521
        %v1442 = vunpack.c.h.b16 %v521
        %v1443 = vunpack.c.l.b16 %v522
        %v1444 = vunpack.c.h.b16 %v522
        %v1445 = vunpack.c.l.b16 %v523
        %v1446 = vunpack.c.l.b16 %v524
        %v1447 = vunpack.c.h.b16 %v524
        %v1448 = vunpack.c.l.b16 %v525
        %v1449 = vunpack.c.h.b16 %v525
        %v1450 = vunpack.c.l.b16 %v526
        %v1451 = vunpack.c.l.b16 %v527
        %v1452 = vunpack.c.h.b16 %v527
        %v1453 = vunpack.c.l.b16 %v528
        %v1454 = vunpack.c.h.b16 %v528
        %v1455 = vunpack.c.l.b16 %v529
        %v1456 = vunpack.c.l.b16 %v530
        %v1457 = vunpack.c.h.b16 %v530
        %v1458 = vunpack.c.l.b16 %v531
        %v1459 = vunpack.c.h.b16 %v531
        %v1460 = vunpack.c.l.b16 %v532
        %v1461 = vunpack.c.l.b16 %v533
        %v1462 = vunpack.c.h.b16 %v533
        %v1463 = vunpack.c.l.b16 %v534
        %v1464 = vunpack.c.h.b16 %v534
        %v1465 = vunpack.c.l.b16 %v535
        %v1466 = vunpack.c.l.b16 %v536
        %v1467 = vunpack.c.h.b16 %v536
        %v1468 = vunpack.c.l.b16 %v537
        %v1469 = vunpack.c.h.b16 %v537
        %v1470 = vunpack.c.l.b16 %v538
        %v1471 = vunpack.c.l.b16 %v539
        %v1472 = vunpack.c.h.b16 %v539
        %v1473 = vunpack.c.l.b16 %v540
        %v1474 = vunpack.c.h.b16 %v540
        %v1475 = vunpack.c.l.b16 %v541
        %v1476 = vunpack.c.l.b16 %v542
        %v1477 = vunpack.c.h.b16 %v542
        %v1478 = vunpack.c.l.b16 %v543
        %v1479 = vunpack.c.h.b16 %v543
        %v1480 = vunpack.c.l.b16 %v544
        %v1481 = vunpack.c.l.b16 %v545
        %v1482 = vunpack.c.h.b16 %v545
        %v1483 = vunpack.c.l.b16 %v546
        %v1484 = vunpack.c.h.b16 %v546
        %v1485 = vunpack.c.l.b16 %v547
        %v1486 = vunpack.c.l.b16 %v548
        %v1487 = vunpack.c.h.b16 %v548
        %v1488 = vunpack.c.l.b16 %v549
        %v1489 = vunpack.c.h.b16 %v549
        %v1490 = vunpack.c.l.b16 %v550
        %v1491 = vunpack.c.l.b16 %v551
        %v1492 = vunpack.c.h.b16 %v551
        %v1493 = vunpack.c.l.b16 %v552
        %v1494 = vunpack.c.h.b16 %v552
        %v1495 = vunpack.c.l.b16 %v553
        %v1496 = vunpack.c.l.b16 %v554
        %v1497 = vunpack.c.h.b16 %v554
        %v1498 = vunpack.c.l.b16 %v555
        %v1499 = vunpack.c.h.b16 %v555
        %v1500 = vunpack.c.l.b16 %v556
        %v1501 = vunpack.c.l.b16 %v557
        %v1502 = vunpack.c.h.b16 %v557
        %v1503 = vunpack.c.l.b16 %v558
        %v1504 = vunpack.c.h.b16 %v558
        %v1505 = vunpack.c.l.b16 %v559
        %v1506 = vunpack.c.l.b16 %v560
        %v1507 = vunpack.c.h.b16 %v560
        %v1508 = vunpack.c.l.b16 %v561
        %v1509 = vunpack.c.h.b16 %v561
        %v1510 = vunpack.c.l.b16 %v562
        %v1511 = vunpack.c.l.b16 %v563
        %v1512 = vunpack.c.h.b16 %v563
        %v1513 = vunpack.c.l.b16 %v564
        %v1514 = vunpack.c.h.b16 %v564
        %v1515 = vunpack.c.l.b16 %v565
        %v1516 = vunpack.c.l.b16 %v566
        %v1517 = vunpack.c.h.b16 %v566
        %v1518 = vunpack.c.l.b16 %v567
        %v1519 = vunpack.c.h.b16 %v567
        %v1520 = vunpack.c.l.b16 %v568
        %v1521 = vunpack.c.l.b16 %v569
        %v1522 = vunpack.c.h.b16 %v569
        %v1523 = vunpack.c.l.b16 %v570
        %v1524 = vunpack.c.h.b16 %v570
        %v1525 = vunpack.c.l.b16 %v571
        %v1526 = vunpack.c.l.b16 %v572
        %v1527 = vunpack.c.h.b16 %v572
        %v1528 = vunpack.c.l.b16 %v573
        %v1529 = vunpack.c.h.b16 %v573
        %v1530 = vunpack.c.l.b16 %v574
        %v1531 = vunpack.c.l.b16 %v575
        %v1532 = vunpack.c.h.b16 %v575
        %v1533 = vunpack.c.l.b16 %v576
        %v1534 = vunpack.c.h.b16 %v576
        %v1535 = vunpack.c.l.b16 %v577
        %v1536 = vunpack.c.l.b16 %v578
        %v1537 = vunpack.c.h.b16 %v578
        %v1538 = vunpack.c.l.b16 %v579
        %v1539 = vunpack.c.h.b16 %v579
        %v1540 = vunpack.c.l.b16 %v580
        %v1541 = vunpack.c.l.b16 %v581
        %v1542 = vunpack.c.h.b16 %v581
        %v1543 = vunpack.c.l.b16 %v582
        %v1544 = vunpack.c.h.b16 %v582
        %v1545 = vunpack.c.l.b16 %v583
        %v1546 = vunpack.c.l.b16 %v584
        %v1547 = vunpack.c.h.b16 %v584
        %v1548 = vunpack.c.l.b16 %v585
        %v1549 = vunpack.c.h.b16 %v585
        %v1550 = vunpack.c.l.b16 %v586
        %v1551 = vunpack.c.l.b16 %v587
        %v1552 = vunpack.c.h.b16 %v587
        %v1553 = vunpack.c.l.b16 %v588
        %v1554 = vunpack.c.h.b16 %v588
        %v1555 = vunpack.c.l.b16 %v589
        %v1556 = vunpack.c.l.b16 %v590
        %v1557 = vunpack.c.h.b16 %v590
        %v1558 = vunpack.c.l.b16 %v591
        %v1559 = vunpack.c.h.b16 %v591
        %v1560 = vunpack.c.l.b16 %v592
        %v1561 = vunpack.c.l.b16 %v593
        %v1562 = vunpack.c.h.b16 %v593
        %v1563 = vunpack.c.l.b16 %v594
        %v1564 = vunpack.c.h.b16 %v594
        %v1565 = vunpack.c.l.b16 %v595
        %v1566 = vunpack.c.l.b16 %v596
        %v1567 = vunpack.c.h.b16 %v596
        %v1568 = vunpack.c.l.b16 %v597
        %v1569 = vunpack.c.h.b16 %v597
        %v1570 = vunpack.c.l.b16 %v598
        %v1571 = vunpack.c.l.b16 %v599
        %v1572 = vunpack.c.h.b16 %v599
        %v1573 = vunpack.c.l.b16 %v600
        %v1574 = vunpack.c.h.b16 %v600
        %v1575 = vunpack.c.l.b16 %v601
        %v1576 = vunpack.c.l.b16 %v602
        %v1577 = vunpack.c.h.b16 %v602
        %v1578 = vunpack.c.l.b16 %v603
        %v1579 = vunpack.c.h.b16 %v603
        %v1580 = vunpack.c.l.b16 %v604
        %v1581 = vunpack.c.l.b16 %v605
        %v1582 = vunpack.c.h.b16 %v605
        %v1583 = vunpack.c.l.b16 %v606
        %v1584 = vunpack.c.h.b16 %v606
        %v1585 = vunpack.c.l.b16 %v607
        %v1586 = vunpack.c.l.b16 %v608
        %v1587 = vunpack.c.h.b16 %v608
        %v1588 = vunpack.c.l.b16 %v609
        %v1589 = vunpack.c.h.b16 %v609
        %v1590 = vunpack.c.l.b16 %v610
        %v1591 = vunpack.c.l.b16 %v611
        %v1592 = vunpack.c.h.b16 %v611
        %v1593 = vunpack.c.l.b16 %v612
        %v1594 = vunpack.c.h.b16 %v612
        %v1595 = vunpack.c.l.b16 %v613
        %v1596 = vunpack.c.l.b16 %v614
        %v1597 = vunpack.c.h.b16 %v614
        %v1598 = vunpack.c.l.b16 %v615
        %v1599 = vunpack.c.h.b16 %v615
        %v1600 = vunpack.c.l.b16 %v616
        %v1601 = vunpack.c.l.b16 %v617
        %v1602 = vunpack.c.h.b16 %v617
        %v1603 = vunpack.c.l.b16 %v618
        %v1604 = vunpack.c.h.b16 %v618
        %v1605 = vunpack.c.l.b16 %v619
        %v1606 = vunpack.c.l.b16 %v620
        %v1607 = vunpack.c.h.b16 %v620
        %v1608 = vunpack.c.l.b16 %v621
        %v1609 = vunpack.c.h.b16 %v621
        %v1610 = vunpack.c.l.b16 %v622
        %v1611 = vunpack.c.l.b16 %v623
        %v1612 = vunpack.c.h.b16 %v623
        %v1613 = vunpack.c.l.b16 %v624
        %v1614 = vunpack.c.h.b16 %v624
        %v1615 = vunpack.c.l.b16 %v625
        %v1616 = vunpack.c.l.b16 %v626
        %v1617 = vunpack.c.h.b16 %v626
        %v1618 = vunpack.c.l.b16 %v627
        %v1619 = vunpack.c.h.b16 %v627
        %v1620 = vunpack.c.l.b16 %v628
        %v1621 = vunpack.c.l.b16 %v629
        %v1622 = vunpack.c.h.b16 %v629
        %v1623 = vunpack.c.l.b16 %v630
        %v1624 = vunpack.c.h.b16 %v630
        %v1625 = vunpack.c.l.b16 %v631
        %v1626 = vunpack.c.l.b16 %v632
        %v1627 = vunpack.c.h.b16 %v632
        %v1628 = vunpack.c.l.b16 %v633
        %v1629 = vunpack.c.h.b16 %v633
        %v1630 = vunpack.c.l.b16 %v634
        %v1631 = vunpack.c.l.b16 %v635
        %v1632 = vunpack.c.h.b16 %v635
        %v1633 = vunpack.c.l.b16 %v636
        %v1634 = vunpack.c.h.b16 %v636
        %v1635 = vunpack.c.l.b16 %v637
        %v1636 = vunpack.c.l.b16 %v638
        %v1637 = vunpack.c.h.b16 %v638
        %v1638 = vunpack.c.l.b16 %v639
        %v1639 = vunpack.c.h.b16 %v639
        %v1640 = vunpack.c.l.b16 %v640
        %v1641 = vunpack.c.l.b16 %v641
        %v1642 = vunpack.c.h.b16 %v641
        %v1643 = vunpack.c.l.b16 %v642
        %v1644 = vunpack.c.h.b16 %v642
        %v1645 = vunpack.c.l.b16 %v643
        %v1646 = vunpack.c.l.b16 %v644
        %v1647 = vunpack.c.h.b16 %v644
        %v1648 = vunpack.c.l.b16 %v645
        %v1649 = vunpack.c.h.b16 %v645
        %v1650 = vunpack.c.l.b16 %v646
        %v1651 = vunpack.c.l.b16 %v647
        %v1652 = vunpack.c.h.b16 %v647
        %v1653 = vunpack.c.l.b16 %v648
        %v1654 = vunpack.c.h.b16 %v648
        %v1655 = vunpack.c.l.b16 %v649
        %v1656 = vunpack.c.l.b16 %v650
        %v1657 = vunpack.c.h.b16 %v650
        %v1658 = vunpack.c.l.b16 %v651
        %v1659 = vunpack.c.h.b16 %v651
        %v1660 = vunpack.c.l.b16 %v652
        %v1661 = vunpack.c.l.b16 %v653
        %v1662 = vunpack.c.h.b16 %v653
        %v1663 = vunpack.c.l.b16 %v654
        %v1664 = vunpack.c.h.b16 %v654
        %v1665 = vunpack.c.l.b16 %v655
        %v1666 = vunpack.c.l.b16 %v656
        %v1667 = vunpack.c.h.b16 %v656
        %v1668 = vunpack.c.l.b16 %v657
        %v1669 = vunpack.c.h.b16 %v657
        %v1670 = vunpack.c.l.b16 %v658
        %v1671 = vunpack.c.l.b16 %v659
        %v1672 = vunpack.c.h.b16 %v659
        %v1673 = vunpack.c.l.b16 %v660
        %v1674 = vunpack.c.h.b16 %v660
        %v1675 = vunpack.c.l.b16 %v661
        %v1676 = vunpack.c.l.b16 %v662
        %v1677 = vunpack.c.h.b16 %v662
        %v1678 = vunpack.c.l.b16 %v663
        %v1679 = vunpack.c.h.b16 %v663
        %v1680 = vunpack.c.l.b16 %v664
        %v1681 = vunpack.c.l.b16 %v665
        %v1682 = vunpack.c.h.b16 %v665
        %v1683 = vunpack.c.l.b16 %v666
        %v1684 = vunpack.c.h.b16 %v666
        %v1685 = vunpack.c.l.b16 %v667
        %v1686 = vunpack.c.l.b16 %v668
        %v1687 = vunpack.c.h.b16 %v668
        %v1688 = vunpack.c.l.b16 %v669
        %v1689 = vunpack.c.h.b16 %v669
        %v1690 = vunpack.c.l.b16 %v670
        %v1691 = vunpack.c.l.b16 %v671
        %v1692 = vunpack.c.h.b16 %v671
        %v1693 = vunpack.c.l.b16 %v672
        %v1694 = vunpack.c.h.b16 %v672
        %v1695 = vunpack.c.l.b16 %v673
        %v1696 = vunpack.c.l.b16 %v674
        %v1697 = vunpack.c.h.b16 %v674
        %v1698 = vunpack.c.l.b16 %v675
        %v1699 = vunpack.c.h.b16 %v675
        %v1700 = vunpack.c.l.b16 %v676
        %v1701 = vunpack.c.l.b16 %v677
        %v1702 = vunpack.c.h.b16 %v677
        %v1703 = vunpack.c.l.b16 %v678
        %v1704 = vunpack.c.h.b16 %v678
        %v1705 = vunpack.c.l.b16 %v679
        %v1706 = vunpack.c.l.b16 %v680
        %v1707 = vunpack.c.h.b16 %v680
        %v1708 = vunpack.c.l.b16 %v681
        %v1709 = vunpack.c.h.b16 %v681
        %v1710 = vunpack.c.l.b16 %v682
        %v1711 = vunpack.c.l.b16 %v683
        %v1712 = vunpack.c.h.b16 %v683
        %v1713 = vunpack.c.l.b16 %v684
        %v1714 = vunpack.c.h.b16 %v684
        %v1715 = vunpack.c.l.b16 %v685
        %v1716 = vunpack.c.l.b16 %v686
        %v1717 = vunpack.c.h.b16 %v686
        %v1718 = vunpack.c.l.b16 %v687
        %v1719 = vunpack.c.h.b16 %v687
        %v1720 = vunpack.c.l.b16 %v688
        %v1721 = vunpack.c.l.b16 %v689
        %v1722 = vunpack.c.h.b16 %v689
        %v1723 = vunpack.c.l.b16 %v690
        %v1724 = vunpack.c.h.b16 %v690
        %v1725 = vunpack.c.l.b16 %v691
        %v1726 = vunpack.c.l.b16 %v692
        %v1727 = vunpack.c.h.b16 %v692
        %v1728 = vunpack.c.l.b16 %v693
        %v1729 = vunpack.c.h.b16 %v693
        %v1730 = vunpack.c.l.b16 %v694
        %v1731 = vunpack.c.l.b16 %v695
        %v1732 = vunpack.c.h.b16 %v695
        %v1733 = vunpack.c.l.b16 %v696
        %v1734 = vunpack.c.h.b16 %v696
        %v1735 = vunpack.c.l.b16 %v697
        %v1736 = vunpack.c.l.b16 %v698
        %v1737 = vunpack.c.h.b16 %v698
        %v1738 = vunpack.c.l.b16 %v699
        %v1739 = vunpack.c.h.b16 %v699
        %v1740 = vunpack.c.l.b16 %v700
        %v1741 = vunpack.c.l.b16 %v701
        %v1742 = vunpack.c.h.b16 %v701
        %v1743 = vunpack.c.l.b16 %v702
        %v1744 = vunpack.c.h.b16 %v702
        %v1745 = vunpack.c.l.b16 %v703
        %v1746 = vunpack.c.l.b16 %v704
        %v1747 = vunpack.c.h.b16 %v704
        %v1748 = vunpack.c.l.b16 %v705
        %v1749 = vunpack.c.h.b16 %v705
        %v1750 = vunpack.c.l.b16 %v706
        %v1751 = vunpack.c.l.b16 %v707
        %v1752 = vunpack.c.h.b16 %v707
        %v1753 = vunpack.c.l.b16 %v708
        %v1754 = vunpack.c.h.b16 %v708
        %v1755 = vunpack.c.l.b16 %v709
        %v1756 = vunpack.c.l.b16 %v710
        %v1757 = vunpack.c.h.b16 %v710
        %v1758 = vunpack.c.l.b16 %v711
        %v1759 = vunpack.c.h.b16 %v711
        %v1760 = vunpack.c.l.b16 %v712
        %v1761 = vunpack.c.l.b16 %v713
        %v1762 = vunpack.c.h.b16 %v713
        %v1763 = vunpack.c.l.b16 %v714
        %v1764 = vunpack.c.h.b16 %v714
        %v1765 = vunpack.c.l.b16 %v715
        %v1766 = vunpack.c.l.b16 %v716
        %v1767 = vunpack.c.h.b16 %v716
        %v1768 = vunpack.c.l.b16 %v717
        %v1769 = vunpack.c.h.b16 %v717
        %v1770 = vunpack.c.l.b16 %v718
        %v1771 = vunpack.c.l.b16 %v719
        %v1772 = vunpack.c.h.b16 %v719
        %v1773 = vunpack.c.l.b16 %v720
        %v1774 = vunpack.c.h.b16 %v720
        %v1775 = vunpack.c.l.b16 %v721
        %v1776 = vunpack.c.l.b16 %v722
        %v1777 = vunpack.c.h.b16 %v722
        %v1778 = vunpack.c.l.b16 %v723
        %v1779 = vunpack.c.h.b16 %v723
        %v1780 = vunpack.c.l.b16 %v724
        %v1781 = vunpack.c.l.b16 %v725
        %v1782 = vunpack.c.h.b16 %v725
        %v1783 = vunpack.c.l.b16 %v726
        %v1784 = vunpack.c.h.b16 %v726
        %v1785 = vunpack.c.l.b16 %v727
        %v1786 = vunpack.c.l.b16 %v728
        %v1787 = vunpack.c.h.b16 %v728
        %v1788 = vunpack.c.l.b16 %v729
        %v1789 = vunpack.c.h.b16 %v729
        %v1790 = vunpack.c.l.b16 %v730
        %v1791 = vunpack.c.l.b16 %v731
        %v1792 = vunpack.c.h.b16 %v731
        %v1793 = vunpack.c.l.b16 %v732
        %v1794 = vunpack.c.h.b16 %v732
        %v1795 = vunpack.c.l.b16 %v733
        %v1796 = vunpack.c.l.b16 %v734
        %v1797 = vunpack.c.h.b16 %v734
        %v1798 = vunpack.c.l.b16 %v735
        %v1799 = vunpack.c.h.b16 %v735
        %v1800 = vunpack.c.l.b16 %v736
        %v1801 = vunpack.c.l.b16 %v737
        %v1802 = vunpack.c.h.b16 %v737
        %v1803 = vunpack.c.l.b16 %v738
        %v1804 = vunpack.c.h.b16 %v738
        %v1805 = vunpack.c.l.b16 %v739
        %v1806 = vunpack.c.l.b16 %v740
        %v1807 = vunpack.c.h.b16 %v740
        %v1808 = vunpack.c.l.b16 %v741
        %v1809 = vunpack.c.h.b16 %v741
        %v1810 = vunpack.c.l.b16 %v742
        %v1811 = vunpack.c.l.b16 %v743
        %v1812 = vunpack.c.h.b16 %v743
        %v1813 = vunpack.c.l.b16 %v744
        %v1814 = vunpack.c.h.b16 %v744
        %v1815 = vunpack.c.l.b16 %v745
        %v1816 = vunpack.c.l.b16 %v746
        %v1817 = vunpack.c.h.b16 %v746
        %v1818 = vunpack.c.l.b16 %v747
        %v1819 = vunpack.c.h.b16 %v747
        %v1820 = vunpack.c.l.b16 %v748
        %v1821 = vunpack.c.l.b16 %v749
        %v1822 = vunpack.c.h.b16 %v749
        %v1823 = vunpack.c.l.b16 %v750
        %v1824 = vunpack.c.h.b16 %v750
        %v1825 = vunpack.c.l.b16 %v751
        %v1826 = vunpack.c.l.b16 %v752
        %v1827 = vunpack.c.h.b16 %v752
        %v1828 = vunpack.c.l.b16 %v753
        %v1829 = vunpack.c.h.b16 %v753
        %v1830 = vunpack.c.l.b16 %v754
        %v1831 = vunpack.c.l.b16 %v755
        %v1832 = vunpack.c.h.b16 %v755
        %v1833 = vunpack.c.l.b16 %v756
        %v1834 = vunpack.c.h.b16 %v756
        %v1835 = vunpack.c.l.b16 %v757
        %v1836 = vunpack.c.l.b16 %v758
        %v1837 = vunpack.c.h.b16 %v758
        %v1838 = vunpack.c.l.b16 %v759
        %v1839 = vunpack.c.h.b16 %v759
        %v1840 = vunpack.c.l.b16 %v760
        %v1841 = vunpack.c.l.b16 %v761
        %v1842 = vunpack.c.h.b16 %v761
        %v1843 = vunpack.c.l.b16 %v762
        %v1844 = vunpack.c.h.b16 %v762
        %v1845 = vunpack.c.l.b16 %v763
        %v1846 = vunpack.c.l.b16 %v764
        %v1847 = vunpack.c.h.b16 %v764
        %v1848 = vunpack.c.l.b16 %v765
        %v1849 = vunpack.c.h.b16 %v765
        %v1850 = vunpack.c.l.b16 %v766
        %v1851 = vunpack.c.l.b16 %v767
        %v1852 = vunpack.c.h.b16 %v767
        %v1853 = vunpack.c.l.b16 %v768
        %v1854 = vunpack.c.h.b16 %v768
        %v1855 = vunpack.c.l.b16 %v769
        %v1856 = vunpack.c.l.b16 %v770
        %v1857 = vunpack.c.h.b16 %v770
        %v1858 = vunpack.c.l.b16 %v771
        %v1859 = vunpack.c.h.b16 %v771
        %v1860 = vunpack.c.l.b16 %v772
        %v1861 = vunpack.c.l.b16 %v773
        %v1862 = vunpack.c.h.b16 %v773
        %v1863 = vunpack.c.l.b16 %v774
        %v1864 = vunpack.c.h.b16 %v774
        %v1865 = vunpack.c.l.b16 %v775
        %v1866 = vunpack.c.l.b16 %v776
        %v1867 = vunpack.c.h.b16 %v776
        %v1868 = vunpack.c.l.b16 %v777
        %v1869 = vunpack.c.h.b16 %v777
        %v1870 = vunpack.c.l.b16 %v778
        %v1871 = vunpack.c.l.b16 %v779
        %v1872 = vunpack.c.h.b16 %v779
        %v1873 = vunpack.c.l.b16 %v780
        %v1874 = vunpack.c.h.b16 %v780
        %v1875 = vunpack.c.l.b16 %v781
        %v1876 = vunpack.c.l.b16 %v782
        %v1877 = vunpack.c.h.b16 %v782
        %v1878 = vunpack.c.l.b16 %v783
        %v1879 = vunpack.c.h.b16 %v783
        %v1880 = vunpack.c.l.b16 %v784
        %v1881 = vunpack.c.l.b16 %v785
        %v1882 = vunpack.c.h.b16 %v785
        %v1883 = vunpack.c.l.b16 %v786
        %v1884 = vunpack.c.h.b16 %v786
        %v1885 = vunpack.c.l.b16 %v787
        %v1886 = vunpack.c.l.b16 %v788
        %v1887 = vunpack.c.h.b16 %v788
        %v1888 = vunpack.c.l.b16 %v789
        %v1889 = vunpack.c.h.b16 %v789
        %v1890 = vunpack.c.l.b16 %v790
        %v1891 = vunpack.c.l.b16 %v791
        %v1892 = vunpack.c.h.b16 %v791
        %v1893 = vunpack.c.l.b16 %v792
        %v1894 = vunpack.c.h.b16 %v792
        %v1895 = vunpack.c.l.b16 %v793
        %v1896 = vunpack.c.l.b16 %v794
        %v1897 = vunpack.c.h.b16 %v794
        %v1898 = vunpack.c.l.b16 %v795
        %v1899 = vunpack.c.h.b16 %v795
        %v1900 = vunpack.c.l.b16 %v796
        %v1901 = vunpack.c.l.b16 %v797
        %v1902 = vunpack.c.h.b16 %v797
        %v1903 = vunpack.c.l.b16 %v798
        %v1904 = vunpack.c.h.b16 %v798
        %v1905 = vunpack.c.l.b16 %v799
        %v1906 = vunpack.c.l.b16 %v800
        %v1907 = vunpack.c.h.b16 %v800
        %v1908 = vunpack.c.l.b16 %v801
        %v1909 = vunpack.c.h.b16 %v801
        %v1910 = vunpack.c.l.b16 %v802
        %v1911 = vunpack.c.l.b16 %v803
        %v1912 = vunpack.c.h.b16 %v803
        %v1913 = vunpack.c.l.b16 %v804
        %v1914 = vunpack.c.h.b16 %v804
        %v1915 = vunpack.c.l.b16 %v805
        %v1916 = vunpack.c.l.b16 %v806
        %v1917 = vunpack.c.h.b16 %v806
        %v1918 = vunpack.c.l.b16 %v807
        %v1919 = vunpack.c.h.b16 %v807
        %v1920 = vunpack.c.l.b16 %v808
        %v1921 = vunpack.c.l.b16 %v809
        %v1922 = vunpack.c.h.b16 %v809
        %v1923 = vunpack.c.l.b16 %v810
        %v1924 = vunpack.c.h.b16 %v810
        %v1925 = vunpack.c.l.b16 %v811
        %v1926 = vunpack.c.l.b16 %v812
        %v1927 = vunpack.c.h.b16 %v812
        %v1928 = vunpack.c.l.b16 %v813
        %v1929 = vunpack.c.h.b16 %v813
        %v1930 = vunpack.c.l.b16 %v814
        %v1931 = vunpack.c.l.b16 %v815
        %v1932 = vunpack.c.h.b16 %v815
        %v1933 = vunpack.c.l.b16 %v816
        %v1934 = vunpack.c.h.b16 %v816
        %v1935 = vunpack.c.l.b16 %v817
        %v1936 = vunpack.c.l.b16 %v818
        %v1937 = vunpack.c.h.b16 %v818
        %v1938 = vunpack.c.l.b16 %v819
        %v1939 = vunpack.c.h.b16 %v819
        %v1940 = vunpack.c.l.b16 %v820
        %v1941 = vunpack.c.l.b16 %v821
        %v1942 = vunpack.c.h.b16 %v821
        %v1943 = vunpack.c.l.b16 %v822
        %v1944 = vunpack.c.h.b16 %v822
        %v1945 = vunpack.c.l.b16 %v823
        %v1946 = vunpack.c.l.b16 %v824
        %v1947 = vunpack.c.h.b16 %v824
        %v1948 = vunpack.c.l.b16 %v825
        %v1949 = vunpack.c.h.b16 %v825
        %v1950 = vunpack.c.l.b16 %v826
        %v1951 = vunpack.c.l.b16 %v827
        %v1952 = vunpack.c.h.b16 %v827
        %v1953 = vunpack.c.l.b16 %v828
        %v1954 = vunpack.c.h.b16 %v828
        %v1955 = vunpack.c.l.b16 %v829
        %v1956 = vunpack.c.l.b16 %v830
        %v1957 = vunpack.c.h.b16 %v830
        %v1958 = vunpack.c.l.b16 %v831
        %v1959 = vunpack.c.h.b16 %v831
        %v1960 = vunpack.c.l.b16 %v832
        %v1961 = vunpack.c.l.b16 %v833
        %v1962 = vunpack.c.h.b16 %v833
        %v1963 = vunpack.c.l.b16 %v834
        %v1964 = vunpack.c.h.b16 %v834
        %v1965 = vunpack.c.l.b16 %v835
        %v1966 = vunpack.c.l.b16 %v836
        %v1967 = vunpack.c.h.b16 %v836
        %v1968 = vunpack.c.l.b16 %v837
        %v1969 = vunpack.c.h.b16 %v837
        %v1970 = vunpack.c.l.b16 %v838
        %v1971 = vunpack.c.l.b16 %v839
        %v1972 = vunpack.c.h.b16 %v839
        %v1973 = vunpack.c.l.b16 %v840
        %v1974 = vunpack.c.h.b16 %v840
        %v1975 = vunpack.c.l.b16 %v841
        %v1976 = vunpack.c.l.b16 %v842
        %v1977 = vunpack.c.h.b16 %v842
        %v1978 = vunpack.c.l.b16 %v843
        %v1979 = vunpack.c.h.b16 %v843
        %v1980 = vunpack.c.l.b16 %v844
        %v1981 = vunpack.c.l.b16 %v845
        %v1982 = vunpack.c.h.b16 %v845
        %v1983 = vunpack.c.l.b16 %v846
        %v1984 = vunpack.c.h.b16 %v846
        %v1985 = vunpack.c.l.b16 %v847
        %v1986 = vunpack.c.l.b16 %v848
        %v1987 = vunpack.c.h.b16 %v848
        %v1988 = vunpack.c.l.b16 %v849
        %v1989 = vunpack.c.h.b16 %v849
        %v1990 = vunpack.c.l.b16 %v850
        %v1991 = vunpack.c.l.b16 %v851
        %v1992 = vunpack.c.h.b16 %v851
        %v1993 = vunpack.c.l.b16 %v852
        %v1994 = vunpack.c.h.b16 %v852
        %v1995 = vunpack.c.l.b16 %v853
        %v1996 = vunpack.c.l.b16 %v854
        %v1997 = vunpack.c.h.b16 %v854
        %v1998 = vunpack.c.l.b16 %v855
        %v1999 = vunpack.c.h.b16 %v855
        %v2000 = vunpack.c.l.b16 %v856
        %v2001 = vunpack.c.l.b16 %v857
        %v2002 = vunpack.c.h.b16 %v857
        %v2003 = vunpack.c.l.b16 %v858
        %v2004 = vunpack.c.h.b16 %v858
        %v2005 = vunpack.c.l.b16 %v859
        %v2006 = vunpack.c.l.b16 %v860
        %v2007 = vunpack.c.h.b16 %v860
        %v2008 = vunpack.c.l.b16 %v861
        %v2009 = vunpack.c.h.b16 %v861
        %v2010 = vunpack.c.l.b16 %v862
        %v2011 = vunpack.c.l.b16 %v863
        %v2012 = vunpack.c.h.b16 %v863
        %v2013 = vunpack.c.l.b16 %v864
        %v2014 = vunpack.c.h.b16 %v864
        %v2015 = vunpack.c.l.b16 %v865
        %v2016 = vunpack.c.l.b16 %v866
        %v2017 = vunpack.c.h.b16 %v866
        %v2018 = vunpack.c.l.b16 %v867
        %v2019 = vunpack.c.h.b16 %v867
        %v2020 = vunpack.c.l.b16 %v868
        %v2021 = vpack.c.b16 %v1306, %v1301
        %v2022 = vpack.c.b16 %v1307, %v1302
        %v2023 = vpack.c.b16 %v1308, %v1303
        %v2024 = vpack.c.b16 %v1309, %v1304
        %v2025 = vpack.c.b16 %v1310, %v1305
        %v2026 = vpack.c.b16 %v1316, %v1311
        %v2027 = vpack.c.b16 %v1317, %v1312
        %v2028 = vpack.c.b16 %v1318, %v1313
        %v2029 = vpack.c.b16 %v1319, %v1314
        %v2030 = vpack.c.b16 %v1320, %v1315
        %v2031 = vpack.c.b16 %v1326, %v1321
        %v2032 = vpack.c.b16 %v1327, %v1322
        %v2033 = vpack.c.b16 %v1328, %v1323
        %v2034 = vpack.c.b16 %v1329, %v1324
        %v2035 = vpack.c.b16 %v1330, %v1325
        %v2036 = vpack.c.b16 %v1336, %v1331
        %v2037 = vpack.c.b16 %v1337, %v1332
        %v2038 = vpack.c.b16 %v1338, %v1333
        %v2039 = vpack.c.b16 %v1339, %v1334
        %v2040 = vpack.c.b16 %v1340, %v1335
        %v2041 = vpack.c.b16 %v1346, %v1341
        %v2042 = vpack.c.b16 %v1347, %v1342
        %v2043 = vpack.c.b16 %v1348, %v1343
        %v2044 = vpack.c.b16 %v1349, %v1344
        %v2045 = vpack.c.b16 %v1350, %v1345
        %v2046 = vpack.c.b16 %v1356, %v1351
        %v2047 = vpack.c.b16 %v1357, %v1352
        %v2048 = vpack.c.b16 %v1358, %v1353
        %v2049 = vpack.c.b16 %v1359, %v1354
        %v2050 = vpack.c.b16 %v1360, %v1355
        %v2051 = vpack.c.b16 %v1366, %v1361
        %v2052 = vpack.c.b16 %v1367, %v1362
        %v2053 = vpack.c.b16 %v1368, %v1363
        %v2054 = vpack.c.b16 %v1369, %v1364
        %v2055 = vpack.c.b16 %v1370, %v1365
        %v2056 = vpack.c.b16 %v1376, %v1371
        %v2057 = vpack.c.b16 %v1377, %v1372
        %v2058 = vpack.c.b16 %v1378, %v1373
        %v2059 = vpack.c.b16 %v1379, %v1374
        %v2060 = vpack.c.b16 %v1380, %v1375
        %v2061 = vpack.c.b16 %v1386, %v1381
        %v2062 = vpack.c.b16 %v1387, %v1382
        %v2063 = vpack.c.b16 %v1388, %v1383
        %v2064 = vpack.c.b16 %v1389, %v1384
        %v2065 = vpack.c.b16 %v1390, %v1385
        %v2066 = vpack.c.b16 %v1396, %v1391
        %v2067 = vpack.c.b16 %v1397, %v1392
        %v2068 = vpack.c.b16 %v1398, %v1393
        %v2069 = vpack.c.b16 %v1399, %v1394
        %v2070 = vpack.c.b16 %v1400, %v1395
        %v2071 = vpack.c.b16 %v1406, %v1401
        %v2072 = vpack.c.b16 %v1407, %v1402
        %v2073 = vpack.c.b16 %v1408, %v1403
        %v2074 = vpack.c.b16 %v1409, %v1404
        %v2075 = vpack.c.b16 %v1410, %v1405
        %v2076 = vpack.c.b16 %v1416, %v1411
        %v2077 = vpack.c.b16 %v1417, %v1412
        %v2078 = vpack.c.b16 %v1418, %v1413
        %v2079 = vpack.c.b16 %v1419, %v1414
        %v2080 = vpack.c.b16 %v1420, %v1415
        %v2081 = vpack.c.b16 %v1426, %v1421
        %v2082 = vpack.c.b16 %v1427, %v1422
        %v2083 = vpack.c.b16 %v1428, %v1423
        %v2084 = vpack.c.b16 %v1429, %v1424
        %v2085 = vpack.c.b16 %v1430, %v1425
        %v2086 = vpack.c.b16 %v1436, %v1431
        %v2087 = vpack.c.b16 %v1437, %v1432
        %v2088 = vpack.c.b16 %v1438, %v1433
        %v2089 = vpack.c.b16 %v1439, %v1434
        %v2090 = vpack.c.b16 %v1440, %v1435
        %v2091 = vpack.c.b16 %v1446, %v1441
        %v2092 = vpack.c.b16 %v1447, %v1442
        %v2093 = vpack.c.b16 %v1448, %v1443
        %v2094 = vpack.c.b16 %v1449, %v1444
        %v2095 = vpack.c.b16 %v1450, %v1445
        %v2096 = vpack.c.b16 %v1456, %v1451
        %v2097 = vpack.c.b16 %v1457, %v1452
        %v2098 = vpack.c.b16 %v1458, %v1453
        %v2099 = vpack.c.b16 %v1459, %v1454
        %v2100 = vpack.c.b16 %v1460, %v1455
        %v2101 = vpack.c.b16 %v1466, %v1461
        %v2102 = vpack.c.b16 %v1467, %v1462
        %v2103 = vpack.c.b16 %v1468, %v1463
        %v2104 = vpack.c.b16 %v1469, %v1464
        %v2105 = vpack.c.b16 %v1470, %v1465
        %v2106 = vpack.c.b16 %v1476, %v1471
        %v2107 = vpack.c.b16 %v1477, %v1472
        %v2108 = vpack.c.b16 %v1478, %v1473
        %v2109 = vpack.c.b16 %v1479, %v1474
        %v2110 = vpack.c.b16 %v1480, %v1475
        %v2111 = vpack.c.b16 %v1486, %v1481
        %v2112 = vpack.c.b16 %v1487, %v1482
        %v2113 = vpack.c.b16 %v1488, %v1483
        %v2114 = vpack.c.b16 %v1489, %v1484
        %v2115 = vpack.c.b16 %v1490, %v1485
        %v2116 = vpack.c.b16 %v1496, %v1491
        %v2117 = vpack.c.b16 %v1497, %v1492
        %v2118 = vpack.c.b16 %v1498, %v1493
        %v2119 = vpack.c.b16 %v1499, %v1494
        %v2120 = vpack.c.b16 %v1500, %v1495
        %v2121 = vpack.c.b16 %v1506, %v1501
        %v2122 = vpack.c.b16 %v1507, %v1502
        %v2123 = vpack.c.b16 %v1508, %v1503
        %v2124 = vpack.c.b16 %v1509, %v1504
        %v2125 = vpack.c.b16 %v1510, %v1505
        %v2126 = vpack.c.b16 %v1516, %v1511
        %v2127 = vpack.c.b16 %v1517, %v1512
        %v2128 = vpack.c.b16 %v1518, %v1513
        %v2129 = vpack.c.b16 %v1519, %v1514
        %v2130 = vpack.c.b16 %v1520, %v1515
        %v2131 = vpack.c.b16 %v1526, %v1521
        %v2132 = vpack.c.b16 %v1527, %v1522
        %v2133 = vpack.c.b16 %v1528, %v1523
        %v2134 = vpack.c.b16 %v1529, %v1524
        %v2135 = vpack.c.b16 %v1530, %v1525
        %v2136 = vpack.c.b16 %v1536, %v1531
        %v2137 = vpack.c.b16 %v1537, %v1532
        %v2138 = vpack.c.b16 %v1538, %v1533
        %v2139 = vpack.c.b16 %v1539, %v1534
        %v2140 = vpack.c.b16 %v1540, %v1535
        %v2141 = vpack.c.b16 %v1546, %v1541
        %v2142 = vpack.c.b16 %v1547, %v1542
        %v2143 = vpack.c.b16 %v1548, %v1543
        %v2144 = vpack.c.b16 %v1549, %v1544
        %v2145 = vpack.c.b16 %v1550, %v1545
        %v2146 = vpack.c.b16 %v1556, %v1551
        %v2147 = vpack.c.b16 %v1557, %v1552
        %v2148 = vpack.c.b16 %v1558, %v1553
        %v2149 = vpack.c.b16 %v1559, %v1554
        %v2150 = vpack.c.b16 %v1560, %v1555
        %v2151 = vpack.c.b16 %v1566, %v1561
        %v2152 = vpack.c.b16 %v1567, %v1562
        %v2153 = vpack.c.b16 %v1568, %v1563
        %v2154 = vpack.c.b16 %v1569, %v1564
        %v2155 = vpack.c.b16 %v1570, %v1565
        %v2156 = vpack.c.b16 %v1576, %v1571
        %v2157 = vpack.c.b16 %v1577, %v1572
        %v2158 = vpack.c.b16 %v1578, %v1573
        %v2159 = vpack.c.b16 %v1579, %v1574
        %v2160 = vpack.c.b16 %v1580, %v1575
        %v2161 = vpack.c.b16 %v1586, %v1581
        %v2162 = vpack.c.b16 %v1587, %v1582
        %v2163 = vpack.c.b16 %v1588, %v1583
        %v2164 = vpack.c.b16 %v1589, %v1584
        %v2165 = vpack.c.b16 %v1590, %v1585
        %v2166 = vpack.c.b16 %v1596, %v1591
        %v2167 = vpack.c.b16 %v1597, %v1592
        %v2168 = vpack.c.b16 %v1598, %v1593
        %v2169 = vpack.c.b16 %v1599, %v1594
        %v2170 = vpack.c.b16 %v1600, %v1595
        %v2171 = vpack.c.b16 %v1606, %v1601
        %v2172 = vpack.c.b16 %v1607, %v1602
        %v2173 = vpack.c.b16 %v1608, %v1603
        %v2174 = vpack.c.b16 %v1609, %v1604
        %v2175 = vpack.c.b16 %v1610, %v1605
        %v2176 = vpack.c.b16 %v1616, %v1611
        %v2177 = vpack.c.b16 %v1617, %v1612
        %v2178 = vpack.c.b16 %v1618, %v1613
        %v2179 = vpack.c.b16 %v1619, %v1614
        %v2180 = vpack.c.b16 %v1620, %v1615
        %v2181 = vpack.c.b16 %v1626, %v1621
        %v2182 = vpack.c.b16 %v1627, %v1622
        %v2183 = vpack.c.b16 %v1628, %v1623
        %v2184 = vpack.c.b16 %v1629, %v1624
        %v2185 = vpack.c.b16 %v1630, %v1625
        %v2186 = vpack.c.b16 %v1636, %v1631
        %v2187 = vpack.c.b16 %v1637, %v1632
        %v2188 = vpack.c.b16 %v1638, %v1633
        %v2189 = vpack.c.b16 %v1639, %v1634
        %v2190 = vpack.c.b16 %v1640, %v1635
        %v2191 = vpack.c.b16 %v1646, %v1641
        %v2192 = vpack.c.b16 %v1647, %v1642
        %v2193 = vpack.c.b16 %v1648, %v1643
        %v2194 = vpack.c.b16 %v1649, %v1644
        %v2195 = vpack.c.b16 %v1650, %v1645
        %v2196 = vpack.c.b16 %v1656, %v1651
        %v2197 = vpack.c.b16 %v1657, %v1652
        %v2198 = vpack.c.b16 %v1658, %v1653
        %v2199 = vpack.c.b16 %v1659, %v1654
        %v2200 = vpack.c.b16 %v1660, %v1655
        %v2201 = vpack.c.b16 %v1666, %v1661
        %v2202 = vpack.c.b16 %v1667, %v1662
        %v2203 = vpack.c.b16 %v1668, %v1663
        %v2204 = vpack.c.b16 %v1669, %v1664
        %v2205 = vpack.c.b16 %v1670, %v1665
        %v2206 = vpack.c.b16 %v1676, %v1671
        %v2207 = vpack.c.b16 %v1677, %v1672
        %v2208 = vpack.c.b16 %v1678, %v1673
        %v2209 = vpack.c.b16 %v1679, %v1674
        %v2210 = vpack.c.b16 %v1680, %v1675
        %v2211 = vpack.c.b16 %v1686, %v1681
        %v2212 = vpack.c.b16 %v1687, %v1682
        %v2213 = vpack.c.b16 %v1688, %v1683
        %v2214 = vpack.c.b16 %v1689, %v1684
        %v2215 = vpack.c.b16 %v1690, %v1685
        %v2216 = vpack.c.b16 %v1696, %v1691
        %v2217 = vpack.c.b16 %v1697, %v1692
        %v2218 = vpack.c.b16 %v1698, %v1693
        %v2219 = vpack.c.b16 %v1699, %v1694
        %v2220 = vpack.c.b16 %v1700, %v1695
        %v2221 = vpack.c.b16 %v1706, %v1701
        %v2222 = vpack.c.b16 %v1707, %v1702
        %v2223 = vpack.c.b16 %v1708, %v1703
        %v2224 = vpack.c.b16 %v1709, %v1704
        %v2225 = vpack.c.b16 %v1710, %v1705
        %v2226 = vpack.c.b16 %v1716, %v1711
        %v2227 = vpack.c.b16 %v1717, %v1712
        %v2228 = vpack.c.b16 %v1718, %v1713
        %v2229 = vpack.c.b16 %v1719, %v1714
        %v2230 = vpack.c.b16 %v1720, %v1715
        %v2231 = vpack.c.b16 %v1726, %v1721
        %v2232 = vpack.c.b16 %v1727, %v1722
        %v2233 = vpack.c.b16 %v1728, %v1723
        %v2234 = vpack.c.b16 %v1729, %v1724
        %v2235 = vpack.c.b16 %v1730, %v1725
        %v2236 = vpack.c.b16 %v1736, %v1731
        %v2237 = vpack.c.b16 %v1737, %v1732
        %v2238 = vpack.c.b16 %v1738, %v1733
        %v2239 = vpack.c.b16 %v1739, %v1734
        %v2240 = vpack.c.b16 %v1740, %v1735
        %v2241 = vpack.c.b16 %v1746, %v1741
        %v2242 = vpack.c.b16 %v1747, %v1742
        %v2243 = vpack.c.b16 %v1748, %v1743
        %v2244 = vpack.c.b16 %v1749, %v1744
        %v2245 = vpack.c.b16 %v1750, %v1745
        %v2246 = vpack.c.b16 %v1756, %v1751
        %v2247 = vpack.c.b16 %v1757, %v1752
        %v2248 = vpack.c.b16 %v1758, %v1753
        %v2249 = vpack.c.b16 %v1759, %v1754
        %v2250 = vpack.c.b16 %v1760, %v1755
        %v2251 = vpack.c.b16 %v1766, %v1761
        %v2252 = vpack.c.b16 %v1767, %v1762
        %v2253 = vpack.c.b16 %v1768, %v1763
        %v2254 = vpack.c.b16 %v1769, %v1764
        %v2255 = vpack.c.b16 %v1770, %v1765
        %v2256 = vpack.c.b16 %v1776, %v1771
        %v2257 = vpack.c.b16 %v1777, %v1772
        %v2258 = vpack.c.b16 %v1778, %v1773
        %v2259 = vpack.c.b16 %v1779, %v1774
        %v2260 = vpack.c.b16 %v1780, %v1775
        %v2261 = vpack.c.b16 %v1786, %v1781
        %v2262 = vpack.c.b16 %v1787, %v1782
        %v2263 = vpack.c.b16 %v1788, %v1783
        %v2264 = vpack.c.b16 %v1789, %v1784
        %v2265 = vpack.c.b16 %v1790, %v1785
        %v2266 = vpack.c.b16 %v1796, %v1791
        %v2267 = vpack.c.b16 %v1797, %v1792
        %v2268 = vpack.c.b16 %v1798, %v1793
        %v2269 = vpack.c.b16 %v1799, %v1794
        %v2270 = vpack.c.b16 %v1800, %v1795
        %v2271 = vpack.c.b16 %v1806, %v1801
        %v2272 = vpack.c.b16 %v1807, %v1802
        %v2273 = vpack.c.b16 %v1808, %v1803
        %v2274 = vpack.c.b16 %v1809, %v1804
        %v2275 = vpack.c.b16 %v1810, %v1805
        %v2276 = vpack.c.b16 %v1816, %v1811
        %v2277 = vpack.c.b16 %v1817, %v1812
        %v2278 = vpack.c.b16 %v1818, %v1813
        %v2279 = vpack.c.b16 %v1819, %v1814
        %v2280 = vpack.c.b16 %v1820, %v1815
        %v2281 = vpack.c.b16 %v1826, %v1821
        %v2282 = vpack.c.b16 %v1827, %v1822
        %v2283 = vpack.c.b16 %v1828, %v1823
        %v2284 = vpack.c.b16 %v1829, %v1824
        %v2285 = vpack.c.b16 %v1830, %v1825
        %v2286 = vpack.c.b16 %v1836, %v1831
        %v2287 = vpack.c.b16 %v1837, %v1832
        %v2288 = vpack.c.b16 %v1838, %v1833
        %v2289 = vpack.c.b16 %v1839, %v1834
        %v2290 = vpack.c.b16 %v1840, %v1835
        %v2291 = vpack.c.b16 %v1846, %v1841
        %v2292 = vpack.c.b16 %v1847, %v1842
        %v2293 = vpack.c.b16 %v1848, %v1843
        %v2294 = vpack.c.b16 %v1849, %v1844
        %v2295 = vpack.c.b16 %v1850, %v1845
        %v2296 = vpack.c.b16 %v1856, %v1851
        %v2297 = vpack.c.b16 %v1857, %v1852
        %v2298 = vpack.c.b16 %v1858, %v1853
        %v2299 = vpack.c.b16 %v1859, %v1854
        %v2300 = vpack.c.b16 %v1860, %v1855
        %v2301 = vpack.c.b16 %v1866, %v1861
        %v2302 = vpack.c.b16 %v1867, %v1862
        %v2303 = vpack.c.b16 %v1868, %v1863
        %v2304 = vpack.c.b16 %v1869, %v1864
        %v2305 = vpack.c.b16 %v1870, %v1865
        %v2306 = vpack.c.b16 %v1876, %v1871
        %v2307 = vpack.c.b16 %v1877, %v1872
        %v2308 = vpack.c.b16 %v1878, %v1873
        %v2309 = vpack.c.b16 %v1879, %v1874
        %v2310 = vpack.c.b16 %v1880, %v1875
        %v2311 = vpack.c.b16 %v1886, %v1881
        %v2312 = vpack.c.b16 %v1887, %v1882
        %v2313 = vpack.c.b16 %v1888, %v1883
        %v2314 = vpack.c.b16 %v1889, %v1884
        %v2315 = vpack.c.b16 %v1890, %v1885
        %v2316 = vpack.c.b16 %v1896, %v1891
        %v2317 = vpack.c.b16 %v1897, %v1892
        %v2318 = vpack.c.b16 %v1898, %v1893
        %v2319 = vpack.c.b16 %v1899, %v1894
        %v2320 = vpack.c.b16 %v1900, %v1895
        %v2321 = vpack.c.b16 %v1906, %v1901
        %v2322 = vpack.c.b16 %v1907, %v1902
        %v2323 = vpack.c.b16 %v1908, %v1903
        %v2324 = vpack.c.b16 %v1909, %v1904
        %v2325 = vpack.c.b16 %v1910, %v1905
        %v2326 = vpack.c.b16 %v1916, %v1911
        %v2327 = vpack.c.b16 %v1917, %v1912
        %v2328 = vpack.c.b16 %v1918, %v1913
        %v2329 = vpack.c.b16 %v1919, %v1914
        %v2330 = vpack.c.b16 %v1920, %v1915
        %v2331 = vpack.c.b16 %v1926, %v1921
        %v2332 = vpack.c.b16 %v1927, %v1922
        %v2333 = vpack.c.b16 %v1928, %v1923
        %v2334 = vpack.c.b16 %v1929, %v1924
        %v2335 = vpack.c.b16 %v1930, %v1925
        %v2336 = vpack.c.b16 %v1936, %v1931
        %v2337 = vpack.c.b16 %v1937, %v1932
        %v2338 = vpack.c.b16 %v1938, %v1933
        %v2339 = vpack.c.b16 %v1939, %v1934
        %v2340 = vpack.c.b16 %v1940, %v1935
        %v2341 = vpack.c.b16 %v1946, %v1941
        %v2342 = vpack.c.b16 %v1947, %v1942
        %v2343 = vpack.c.b16 %v1948, %v1943
        %v2344 = vpack.c.b16 %v1949, %v1944
        %v2345 = vpack.c.b16 %v1950, %v1945
        %v2346 = vpack.c.b16 %v1956, %v1951
        %v2347 = vpack.c.b16 %v1957, %v1952
        %v2348 = vpack.c.b16 %v1958, %v1953
        %v2349 = vpack.c.b16 %v1959, %v1954
        %v2350 = vpack.c.b16 %v1960, %v1955
        %v2351 = vpack.c.b16 %v1966, %v1961
        %v2352 = vpack.c.b16 %v1967, %v1962
        %v2353 = vpack.c.b16 %v1968, %v1963
        %v2354 = vpack.c.b16 %v1969, %v1964
        %v2355 = vpack.c.b16 %v1970, %v1965
        %v2356 = vpack.c.b16 %v1976, %v1971
        %v2357 = vpack.c.b16 %v1977, %v1972
        %v2358 = vpack.c.b16 %v1978, %v1973
        %v2359 = vpack.c.b16 %v1979, %v1974
        %v2360 = vpack.c.b16 %v1980, %v1975
        %v2361 = vpack.c.b16 %v1986, %v1981
        %v2362 = vpack.c.b16 %v1987, %v1982
        %v2363 = vpack.c.b16 %v1988, %v1983
        %v2364 = vpack.c.b16 %v1989, %v1984
        %v2365 = vpack.c.b16 %v1990, %v1985
        %v2366 = vpack.c.b16 %v1996, %v1991
        %v2367 = vpack.c.b16 %v1997, %v1992
        %v2368 = vpack.c.b16 %v1998, %v1993
        %v2369 = vpack.c.b16 %v1999, %v1994
        %v2370 = vpack.c.b16 %v2000, %v1995
        %v2371 = vpack.c.b16 %v2006, %v2001
        %v2372 = vpack.c.b16 %v2007, %v2002
        %v2373 = vpack.c.b16 %v2008, %v2003
        %v2374 = vpack.c.b16 %v2009, %v2004
        %v2375 = vpack.c.b16 %v2010, %v2005
        %v2376 = vpack.c.b16 %v2016, %v2011
        %v2377 = vpack.c.b16 %v2017, %v2012
        %v2378 = vpack.c.b16 %v2018, %v2013
        %v2379 = vpack.c.b16 %v2019, %v2014
        %v2380 = vpack.c.b16 %v2020, %v2015
        %2741 = vmatpush.bf16.msra.mxu0 %v2056
        %2742 = vmatpush.bf16.msra.mxu0 %v2051
        %2743 = vmatpush.bf16.msra.mxu0 %v2046
        %2744 = vmatpush.bf16.msra.mxu0 %v2041
        %2745 = vmatpush.bf16.msra.mxu0 %v2036
        %2746 = vmatpush.bf16.msra.mxu0 %v2031
        %2747 = vmatpush.bf16.msra.mxu0 %v2026
        %2748 = vmatpush.bf16.msra.mxu0 %v2021
        %2749 = vmatmul.bf16.gmra.mxu0 %v401
        %v2750 = vpop.f32.mrf.mxu0
        %v2751 = vadd.f32 0.0, %v2750
        %v2752 = vpop.f32.mrf.mxu0
        %v2753 = vadd.f32 0.0, %v2752
        %2754 = vmatmul.bf16.gmra.mxu0 %v404
        %v2755 = vpop.f32.mrf.mxu0
        %v2756 = vadd.f32 0.0, %v2755
        %v2757 = vpop.f32.mrf.mxu0
        %v2758 = vadd.f32 0.0, %v2757
        %2759 = vmatmul.bf16.gmra.mxu0 %v407
        %v2760 = vpop.f32.mrf.mxu0
        %v2761 = vadd.f32 0.0, %v2760
        %v2762 = vpop.f32.mrf.mxu0
        %v2763 = vadd.f32 0.0, %v2762
        %2764 = vmatmul.bf16.gmra.mxu0 %v410
        %v2765 = vpop.f32.mrf.mxu0
        %v2766 = vadd.f32 0.0, %v2765
        %v2767 = vpop.f32.mrf.mxu0
        %v2768 = vadd.f32 0.0, %v2767
        %2769 = vmatmul.bf16.gmra.mxu0 %v413
        %v2770 = vpop.f32.mrf.mxu0
        %v2771 = vadd.f32 0.0, %v2770
        %v2772 = vpop.f32.mrf.mxu0
        %v2773 = vadd.f32 0.0, %v2772
        %2774 = vmatmul.bf16.gmra.mxu0 %v416
        %v2775 = vpop.f32.mrf.mxu0
        %v2776 = vadd.f32 0.0, %v2775
        %v2777 = vpop.f32.mrf.mxu0
        %v2778 = vadd.f32 0.0, %v2777
        %2779 = vmatmul.bf16.gmra.mxu0 %v419
        %v2780 = vpop.f32.mrf.mxu0
        %v2781 = vadd.f32 0.0, %v2780
        %v2782 = vpop.f32.mrf.mxu0
        %v2783 = vadd.f32 0.0, %v2782
        %2784 = vmatmul.bf16.gmra.mxu0 %v422
        %v2785 = vpop.f32.mrf.mxu0
        %v2786 = vadd.f32 0.0, %v2785
        %v2787 = vpop.f32.mrf.mxu0
        %v2788 = vadd.f32 0.0, %v2787
        %2789 = vmatmul.bf16.gmra.mxu0 %v425
        %v2790 = vpop.f32.mrf.mxu0
        %v2791 = vadd.f32 0.0, %v2790
        %v2792 = vpop.f32.mrf.mxu0
        %v2793 = vadd.f32 0.0, %v2792
        %2794 = vmatmul.bf16.gmra.mxu0 %v428
        %v2795 = vpop.f32.mrf.mxu0
        %v2796 = vadd.f32 0.0, %v2795
        %v2797 = vpop.f32.mrf.mxu0
        %v2798 = vadd.f32 0.0, %v2797
        %2799 = vdwg.mxu0
        %2800 = vmatpush.bf16.msra.mxu0 %v2096
        %2801 = vmatpush.bf16.msra.mxu0 %v2091
        %2802 = vmatpush.bf16.msra.mxu0 %v2086
        %2803 = vmatpush.bf16.msra.mxu0 %v2081
        %2804 = vmatpush.bf16.msra.mxu0 %v2076
        %2805 = vmatpush.bf16.msra.mxu0 %v2071
        %2806 = vmatpush.bf16.msra.mxu0 %v2066
        %2807 = vmatpush.bf16.msra.mxu0 %v2061
        %2808 = vmatmul.bf16.gmra.mxu0 %v402
        %v2809 = vpop.f32.mrf.mxu0
        %v2810 = vadd.f32 %v2751, %v2809
        %v2811 = vpop.f32.mrf.mxu0
        %v2812 = vadd.f32 %v2753, %v2811
        %2813 = vmatmul.bf16.gmra.mxu0 %v405
        %v2814 = vpop.f32.mrf.mxu0
        %v2815 = vadd.f32 %v2756, %v2814
        %v2816 = vpop.f32.mrf.mxu0
        %v2817 = vadd.f32 %v2758, %v2816
        %2818 = vmatmul.bf16.gmra.mxu0 %v408
        %v2819 = vpop.f32.mrf.mxu0
        %v2820 = vadd.f32 %v2761, %v2819
        %v2821 = vpop.f32.mrf.mxu0
        %v2822 = vadd.f32 %v2763, %v2821
        %2823 = vmatmul.bf16.gmra.mxu0 %v411
        %v2824 = vpop.f32.mrf.mxu0
        %v2825 = vadd.f32 %v2766, %v2824
        %v2826 = vpop.f32.mrf.mxu0
        %v2827 = vadd.f32 %v2768, %v2826
        %2828 = vmatmul.bf16.gmra.mxu0 %v414
        %v2829 = vpop.f32.mrf.mxu0
        %v2830 = vadd.f32 %v2771, %v2829
        %v2831 = vpop.f32.mrf.mxu0
        %v2832 = vadd.f32 %v2773, %v2831
        %2833 = vmatmul.bf16.gmra.mxu0 %v417
        %v2834 = vpop.f32.mrf.mxu0
        %v2835 = vadd.f32 %v2776, %v2834
        %v2836 = vpop.f32.mrf.mxu0
        %v2837 = vadd.f32 %v2778, %v2836
        %2838 = vmatmul.bf16.gmra.mxu0 %v420
        %v2839 = vpop.f32.mrf.mxu0
        %v2840 = vadd.f32 %v2781, %v2839
        %v2841 = vpop.f32.mrf.mxu0
        %v2842 = vadd.f32 %v2783, %v2841
        %2843 = vmatmul.bf16.gmra.mxu0 %v423
        %v2844 = vpop.f32.mrf.mxu0
        %v2845 = vadd.f32 %v2786, %v2844
        %v2846 = vpop.f32.mrf.mxu0
        %v2847 = vadd.f32 %v2788, %v2846
        %2848 = vmatmul.bf16.gmra.mxu0 %v426
        %v2849 = vpop.f32.mrf.mxu0
        %v2850 = vadd.f32 %v2791, %v2849
        %v2851 = vpop.f32.mrf.mxu0
        %v2852 = vadd.f32 %v2793, %v2851
        %2853 = vmatmul.bf16.gmra.mxu0 %v429
        %v2854 = vpop.f32.mrf.mxu0
        %v2855 = vadd.f32 %v2796, %v2854
        %v2856 = vpop.f32.mrf.mxu0
        %v2857 = vadd.f32 %v2798, %v2856
        %2858 = vdwg.mxu0
        %2859 = vmatpush.bf16.msra.mxu0 %v2136
        %2860 = vmatpush.bf16.msra.mxu0 %v2131
        %2861 = vmatpush.bf16.msra.mxu0 %v2126
        %2862 = vmatpush.bf16.msra.mxu0 %v2121
        %2863 = vmatpush.bf16.msra.mxu0 %v2116
        %2864 = vmatpush.bf16.msra.mxu0 %v2111
        %2865 = vmatpush.bf16.msra.mxu0 %v2106
        %2866 = vmatpush.bf16.msra.mxu0 %v2101
        %2867 = vmatmul.bf16.gmra.mxu0 %v403
        %v2868 = vpop.f32.mrf.mxu0
        %v2869 = vadd.f32 %v2810, %v2868
        %v2870 = vpop.f32.mrf.mxu0
        %v2871 = vadd.f32 %v2812, %v2870
        %2872 = vmatmul.bf16.gmra.mxu0 %v406
        %v2873 = vpop.f32.mrf.mxu0
        %v2874 = vadd.f32 %v2815, %v2873
        %v2875 = vpop.f32.mrf.mxu0
        %v2876 = vadd.f32 %v2817, %v2875
        %2877 = vmatmul.bf16.gmra.mxu0 %v409
        %v2878 = vpop.f32.mrf.mxu0
        %v2879 = vadd.f32 %v2820, %v2878
        %v2880 = vpop.f32.mrf.mxu0
        %v2881 = vadd.f32 %v2822, %v2880
        %2882 = vmatmul.bf16.gmra.mxu0 %v412
        %v2883 = vpop.f32.mrf.mxu0
        %v2884 = vadd.f32 %v2825, %v2883
        %v2885 = vpop.f32.mrf.mxu0
        %v2886 = vadd.f32 %v2827, %v2885
        %2887 = vmatmul.bf16.gmra.mxu0 %v415
        %v2888 = vpop.f32.mrf.mxu0
        %v2889 = vadd.f32 %v2830, %v2888
        %v2890 = vpop.f32.mrf.mxu0
        %v2891 = vadd.f32 %v2832, %v2890
        %2892 = vmatmul.bf16.gmra.mxu0 %v418
        %v2893 = vpop.f32.mrf.mxu0
        %v2894 = vadd.f32 %v2835, %v2893
        %v2895 = vpop.f32.mrf.mxu0
        %v2896 = vadd.f32 %v2837, %v2895
        %2897 = vmatmul.bf16.gmra.mxu0 %v421
        %v2898 = vpop.f32.mrf.mxu0
        %v2899 = vadd.f32 %v2840, %v2898
        %v2900 = vpop.f32.mrf.mxu0
        %v2901 = vadd.f32 %v2842, %v2900
        %2902 = vmatmul.bf16.gmra.mxu0 %v424
        %v2903 = vpop.f32.mrf.mxu0
        %v2904 = vadd.f32 %v2845, %v2903
        %v2905 = vpop.f32.mrf.mxu0
        %v2906 = vadd.f32 %v2847, %v2905
        %2907 = vmatmul.bf16.gmra.mxu0 %v427
        %v2908 = vpop.f32.mrf.mxu0
        %v2909 = vadd.f32 %v2850, %v2908
        %v2910 = vpop.f32.mrf.mxu0
        %v2911 = vadd.f32 %v2852, %v2910
        %2912 = vmatmul.bf16.gmra.mxu0 %v430
        %v2913 = vpop.f32.mrf.mxu0
        %v2914 = vadd.f32 %v2855, %v2913
        %v2915 = vpop.f32.mrf.mxu0
        %v2916 = vadd.f32 %v2857, %v2915
        %2917 = vdwg.mxu0
        %2918 = vmatpush.bf16.msra.mxu0 %v2176
        %2919 = vmatpush.bf16.msra.mxu0 %v2171
        %2920 = vmatpush.bf16.msra.mxu0 %v2166
        %2921 = vmatpush.bf16.msra.mxu0 %v2161
        %2922 = vmatpush.bf16.msra.mxu0 %v2156
        %2923 = vmatpush.bf16.msra.mxu0 %v2151
        %2924 = vmatpush.bf16.msra.mxu0 %v2146
        %2925 = vmatpush.bf16.msra.mxu0 %v2141
        %2926 = vmatmul.bf16.gmra.mxu0 %v404
        %v2927 = vpop.f32.mrf.mxu0
        %v2928 = vadd.f32 %v2869, %v2927
        %v2929 = vpop.f32.mrf.mxu0
        %v2930 = vadd.f32 %v2871, %v2929
        %2931 = vmatmul.bf16.gmra.mxu0 %v407
        %v2932 = vpop.f32.mrf.mxu0
        %v2933 = vadd.f32 %v2874, %v2932
        %v2934 = vpop.f32.mrf.mxu0
        %v2935 = vadd.f32 %v2876, %v2934
        %2936 = vmatmul.bf16.gmra.mxu0 %v410
        %v2937 = vpop.f32.mrf.mxu0
        %v2938 = vadd.f32 %v2879, %v2937
        %v2939 = vpop.f32.mrf.mxu0
        %v2940 = vadd.f32 %v2881, %v2939
        %2941 = vmatmul.bf16.gmra.mxu0 %v413
        %v2942 = vpop.f32.mrf.mxu0
        %v2943 = vadd.f32 %v2884, %v2942
        %v2944 = vpop.f32.mrf.mxu0
        %v2945 = vadd.f32 %v2886, %v2944
        %2946 = vmatmul.bf16.gmra.mxu0 %v416
        %v2947 = vpop.f32.mrf.mxu0
        %v2948 = vadd.f32 %v2889, %v2947
        %v2949 = vpop.f32.mrf.mxu0
        %v2950 = vadd.f32 %v2891, %v2949
        %2951 = vmatmul.bf16.gmra.mxu0 %v419
        %v2952 = vpop.f32.mrf.mxu0
        %v2953 = vadd.f32 %v2894, %v2952
        %v2954 = vpop.f32.mrf.mxu0
        %v2955 = vadd.f32 %v2896, %v2954
        %2956 = vmatmul.bf16.gmra.mxu0 %v422
        %v2957 = vpop.f32.mrf.mxu0
        %v2958 = vadd.f32 %v2899, %v2957
        %v2959 = vpop.f32.mrf.mxu0
        %v2960 = vadd.f32 %v2901, %v2959
        %2961 = vmatmul.bf16.gmra.mxu0 %v425
        %v2962 = vpop.f32.mrf.mxu0
        %v2963 = vadd.f32 %v2904, %v2962
        %v2964 = vpop.f32.mrf.mxu0
        %v2965 = vadd.f32 %v2906, %v2964
        %2966 = vmatmul.bf16.gmra.mxu0 %v428
        %v2967 = vpop.f32.mrf.mxu0
        %v2968 = vadd.f32 %v2909, %v2967
        %v2969 = vpop.f32.mrf.mxu0
        %v2970 = vadd.f32 %v2911, %v2969
        %2971 = vmatmul.bf16.gmra.mxu0 %v431
        %v2972 = vpop.f32.mrf.mxu0
        %v2973 = vadd.f32 %v2914, %v2972
        %v2974 = vpop.f32.mrf.mxu0
        %v2975 = vadd.f32 %v2916, %v2974
        %2976 = vdwg.mxu0
        %2977 = vmatpush.bf16.msra.mxu0 %v2216
        %2978 = vmatpush.bf16.msra.mxu0 %v2211
        %2979 = vmatpush.bf16.msra.mxu0 %v2206
        %2980 = vmatpush.bf16.msra.mxu0 %v2201
        %2981 = vmatpush.bf16.msra.mxu0 %v2196
        %2982 = vmatpush.bf16.msra.mxu0 %v2191
        %2983 = vmatpush.bf16.msra.mxu0 %v2186
        %2984 = vmatpush.bf16.msra.mxu0 %v2181
        %2985 = vmatmul.bf16.gmra.mxu0 %v405
        %v2986 = vpop.f32.mrf.mxu0
        %v2987 = vadd.f32 %v2928, %v2986
        %v2988 = vpop.f32.mrf.mxu0
        %v2989 = vadd.f32 %v2930, %v2988
        %2990 = vmatmul.bf16.gmra.mxu0 %v408
        %v2991 = vpop.f32.mrf.mxu0
        %v2992 = vadd.f32 %v2933, %v2991
        %v2993 = vpop.f32.mrf.mxu0
        %v2994 = vadd.f32 %v2935, %v2993
        %2995 = vmatmul.bf16.gmra.mxu0 %v411
        %v2996 = vpop.f32.mrf.mxu0
        %v2997 = vadd.f32 %v2938, %v2996
        %v2998 = vpop.f32.mrf.mxu0
        %v2999 = vadd.f32 %v2940, %v2998
        %3000 = vmatmul.bf16.gmra.mxu0 %v414
        %v3001 = vpop.f32.mrf.mxu0
        %v3002 = vadd.f32 %v2943, %v3001
        %v3003 = vpop.f32.mrf.mxu0
        %v3004 = vadd.f32 %v2945, %v3003
        %3005 = vmatmul.bf16.gmra.mxu0 %v417
        %v3006 = vpop.f32.mrf.mxu0
        %v3007 = vadd.f32 %v2948, %v3006
        %v3008 = vpop.f32.mrf.mxu0
        %v3009 = vadd.f32 %v2950, %v3008
        %3010 = vmatmul.bf16.gmra.mxu0 %v420
        %v3011 = vpop.f32.mrf.mxu0
        %v3012 = vadd.f32 %v2953, %v3011
        %v3013 = vpop.f32.mrf.mxu0
        %v3014 = vadd.f32 %v2955, %v3013
        %3015 = vmatmul.bf16.gmra.mxu0 %v423
        %v3016 = vpop.f32.mrf.mxu0
        %v3017 = vadd.f32 %v2958, %v3016
        %v3018 = vpop.f32.mrf.mxu0
        %v3019 = vadd.f32 %v2960, %v3018
        %3020 = vmatmul.bf16.gmra.mxu0 %v426
        %v3021 = vpop.f32.mrf.mxu0
        %v3022 = vadd.f32 %v2963, %v3021
        %v3023 = vpop.f32.mrf.mxu0
        %v3024 = vadd.f32 %v2965, %v3023
        %3025 = vmatmul.bf16.gmra.mxu0 %v429
        %v3026 = vpop.f32.mrf.mxu0
        %v3027 = vadd.f32 %v2968, %v3026
        %v3028 = vpop.f32.mrf.mxu0
        %v3029 = vadd.f32 %v2970, %v3028
        %3030 = vmatmul.bf16.gmra.mxu0 %v432
        %v3031 = vpop.f32.mrf.mxu0
        %v3032 = vadd.f32 %v2973, %v3031
        %v3033 = vpop.f32.mrf.mxu0
        %v3034 = vadd.f32 %v2975, %v3033
        %3035 = vdwg.mxu0
        %3036 = vmatpush.bf16.msra.mxu0 %v2256
        %3037 = vmatpush.bf16.msra.mxu0 %v2251
        %3038 = vmatpush.bf16.msra.mxu0 %v2246
        %3039 = vmatpush.bf16.msra.mxu0 %v2241
        %3040 = vmatpush.bf16.msra.mxu0 %v2236
        %3041 = vmatpush.bf16.msra.mxu0 %v2231
        %3042 = vmatpush.bf16.msra.mxu0 %v2226
        %3043 = vmatpush.bf16.msra.mxu0 %v2221
        %3044 = vmatmul.bf16.gmra.mxu0 %v406
        %v3045 = vpop.f32.mrf.mxu0
        %v3046 = vadd.f32 %v2987, %v3045
        %v3047 = vpop.f32.mrf.mxu0
        %v3048 = vadd.f32 %v2989, %v3047
        %3049 = vmatmul.bf16.gmra.mxu0 %v409
        %v3050 = vpop.f32.mrf.mxu0
        %v3051 = vadd.f32 %v2992, %v3050
        %v3052 = vpop.f32.mrf.mxu0
        %v3053 = vadd.f32 %v2994, %v3052
        %3054 = vmatmul.bf16.gmra.mxu0 %v412
        %v3055 = vpop.f32.mrf.mxu0
        %v3056 = vadd.f32 %v2997, %v3055
        %v3057 = vpop.f32.mrf.mxu0
        %v3058 = vadd.f32 %v2999, %v3057
        %3059 = vmatmul.bf16.gmra.mxu0 %v415
        %v3060 = vpop.f32.mrf.mxu0
        %v3061 = vadd.f32 %v3002, %v3060
        %v3062 = vpop.f32.mrf.mxu0
        %v3063 = vadd.f32 %v3004, %v3062
        %3064 = vmatmul.bf16.gmra.mxu0 %v418
        %v3065 = vpop.f32.mrf.mxu0
        %v3066 = vadd.f32 %v3007, %v3065
        %v3067 = vpop.f32.mrf.mxu0
        %v3068 = vadd.f32 %v3009, %v3067
        %3069 = vmatmul.bf16.gmra.mxu0 %v421
        %v3070 = vpop.f32.mrf.mxu0
        %v3071 = vadd.f32 %v3012, %v3070
        %v3072 = vpop.f32.mrf.mxu0
        %v3073 = vadd.f32 %v3014, %v3072
        %3074 = vmatmul.bf16.gmra.mxu0 %v424
        %v3075 = vpop.f32.mrf.mxu0
        %v3076 = vadd.f32 %v3017, %v3075
        %v3077 = vpop.f32.mrf.mxu0
        %v3078 = vadd.f32 %v3019, %v3077
        %3079 = vmatmul.bf16.gmra.mxu0 %v427
        %v3080 = vpop.f32.mrf.mxu0
        %v3081 = vadd.f32 %v3022, %v3080
        %v3082 = vpop.f32.mrf.mxu0
        %v3083 = vadd.f32 %v3024, %v3082
        %3084 = vmatmul.bf16.gmra.mxu0 %v430
        %v3085 = vpop.f32.mrf.mxu0
        %v3086 = vadd.f32 %v3027, %v3085
        %v3087 = vpop.f32.mrf.mxu0
        %v3088 = vadd.f32 %v3029, %v3087
        %3089 = vmatmul.bf16.gmra.mxu0 %v433
        %v3090 = vpop.f32.mrf.mxu0
        %v3091 = vadd.f32 %v3032, %v3090
        %v3092 = vpop.f32.mrf.mxu0
        %v3093 = vadd.f32 %v3034, %v3092
        %3094 = vdwg.mxu0
        %3095 = vmatpush.bf16.msra.mxu0 %v2296
        %3096 = vmatpush.bf16.msra.mxu0 %v2291
        %3097 = vmatpush.bf16.msra.mxu0 %v2286
        %3098 = vmatpush.bf16.msra.mxu0 %v2281
        %3099 = vmatpush.bf16.msra.mxu0 %v2276
        %3100 = vmatpush.bf16.msra.mxu0 %v2271
        %3101 = vmatpush.bf16.msra.mxu0 %v2266
        %3102 = vmatpush.bf16.msra.mxu0 %v2261
        %3103 = vmatmul.bf16.gmra.mxu0 %v407
        %v3104 = vpop.f32.mrf.mxu0
        %v3105 = vadd.f32 %v3046, %v3104
        %v3106 = vpop.f32.mrf.mxu0
        %v3107 = vadd.f32 %v3048, %v3106
        %3108 = vmatmul.bf16.gmra.mxu0 %v410
        %v3109 = vpop.f32.mrf.mxu0
        %v3110 = vadd.f32 %v3051, %v3109
        %v3111 = vpop.f32.mrf.mxu0
        %v3112 = vadd.f32 %v3053, %v3111
        %3113 = vmatmul.bf16.gmra.mxu0 %v413
        %v3114 = vpop.f32.mrf.mxu0
        %v3115 = vadd.f32 %v3056, %v3114
        %v3116 = vpop.f32.mrf.mxu0
        %v3117 = vadd.f32 %v3058, %v3116
        %3118 = vmatmul.bf16.gmra.mxu0 %v416
        %v3119 = vpop.f32.mrf.mxu0
        %v3120 = vadd.f32 %v3061, %v3119
        %v3121 = vpop.f32.mrf.mxu0
        %v3122 = vadd.f32 %v3063, %v3121
        %3123 = vmatmul.bf16.gmra.mxu0 %v419
        %v3124 = vpop.f32.mrf.mxu0
        %v3125 = vadd.f32 %v3066, %v3124
        %v3126 = vpop.f32.mrf.mxu0
        %v3127 = vadd.f32 %v3068, %v3126
        %3128 = vmatmul.bf16.gmra.mxu0 %v422
        %v3129 = vpop.f32.mrf.mxu0
        %v3130 = vadd.f32 %v3071, %v3129
        %v3131 = vpop.f32.mrf.mxu0
        %v3132 = vadd.f32 %v3073, %v3131
        %3133 = vmatmul.bf16.gmra.mxu0 %v425
        %v3134 = vpop.f32.mrf.mxu0
        %v3135 = vadd.f32 %v3076, %v3134
        %v3136 = vpop.f32.mrf.mxu0
        %v3137 = vadd.f32 %v3078, %v3136
        %3138 = vmatmul.bf16.gmra.mxu0 %v428
        %v3139 = vpop.f32.mrf.mxu0
        %v3140 = vadd.f32 %v3081, %v3139
        %v3141 = vpop.f32.mrf.mxu0
        %v3142 = vadd.f32 %v3083, %v3141
        %3143 = vmatmul.bf16.gmra.mxu0 %v431
        %v3144 = vpop.f32.mrf.mxu0
        %v3145 = vadd.f32 %v3086, %v3144
        %v3146 = vpop.f32.mrf.mxu0
        %v3147 = vadd.f32 %v3088, %v3146
        %3148 = vmatmul.bf16.gmra.mxu0 %v434
        %v3149 = vpop.f32.mrf.mxu0
        %v3150 = vadd.f32 %v3091, %v3149
        %v3151 = vpop.f32.mrf.mxu0
        %v3152 = vadd.f32 %v3093, %v3151
        %3153 = vdwg.mxu0
        %3154 = vmatpush.bf16.msra.mxu0 %v2336
        %3155 = vmatpush.bf16.msra.mxu0 %v2331
        %3156 = vmatpush.bf16.msra.mxu0 %v2326
        %3157 = vmatpush.bf16.msra.mxu0 %v2321
        %3158 = vmatpush.bf16.msra.mxu0 %v2316
        %3159 = vmatpush.bf16.msra.mxu0 %v2311
        %3160 = vmatpush.bf16.msra.mxu0 %v2306
        %3161 = vmatpush.bf16.msra.mxu0 %v2301
        %3162 = vmatmul.bf16.gmra.mxu0 %v408
        %v3163 = vpop.f32.mrf.mxu0
        %v3164 = vadd.f32 %v3105, %v3163
        %v3165 = vpop.f32.mrf.mxu0
        %v3166 = vadd.f32 %v3107, %v3165
        %3167 = vmatmul.bf16.gmra.mxu0 %v411
        %v3168 = vpop.f32.mrf.mxu0
        %v3169 = vadd.f32 %v3110, %v3168
        %v3170 = vpop.f32.mrf.mxu0
        %v3171 = vadd.f32 %v3112, %v3170
        %3172 = vmatmul.bf16.gmra.mxu0 %v414
        %v3173 = vpop.f32.mrf.mxu0
        %v3174 = vadd.f32 %v3115, %v3173
        %v3175 = vpop.f32.mrf.mxu0
        %v3176 = vadd.f32 %v3117, %v3175
        %3177 = vmatmul.bf16.gmra.mxu0 %v417
        %v3178 = vpop.f32.mrf.mxu0
        %v3179 = vadd.f32 %v3120, %v3178
        %v3180 = vpop.f32.mrf.mxu0
        %v3181 = vadd.f32 %v3122, %v3180
        %3182 = vmatmul.bf16.gmra.mxu0 %v420
        %v3183 = vpop.f32.mrf.mxu0
        %v3184 = vadd.f32 %v3125, %v3183
        %v3185 = vpop.f32.mrf.mxu0
        %v3186 = vadd.f32 %v3127, %v3185
        %3187 = vmatmul.bf16.gmra.mxu0 %v423
        %v3188 = vpop.f32.mrf.mxu0
        %v3189 = vadd.f32 %v3130, %v3188
        %v3190 = vpop.f32.mrf.mxu0
        %v3191 = vadd.f32 %v3132, %v3190
        %3192 = vmatmul.bf16.gmra.mxu0 %v426
        %v3193 = vpop.f32.mrf.mxu0
        %v3194 = vadd.f32 %v3135, %v3193
        %v3195 = vpop.f32.mrf.mxu0
        %v3196 = vadd.f32 %v3137, %v3195
        %3197 = vmatmul.bf16.gmra.mxu0 %v429
        %v3198 = vpop.f32.mrf.mxu0
        %v3199 = vadd.f32 %v3140, %v3198
        %v3200 = vpop.f32.mrf.mxu0
        %v3201 = vadd.f32 %v3142, %v3200
        %3202 = vmatmul.bf16.gmra.mxu0 %v432
        %v3203 = vpop.f32.mrf.mxu0
        %v3204 = vadd.f32 %v3145, %v3203
        %v3205 = vpop.f32.mrf.mxu0
        %v3206 = vadd.f32 %v3147, %v3205
        %3207 = vmatmul.bf16.gmra.mxu0 %v435
        %v3208 = vpop.f32.mrf.mxu0
        %v3209 = vadd.f32 %v3150, %v3208
        %v3210 = vpop.f32.mrf.mxu0
        %v3211 = vadd.f32 %v3152, %v3210
        %3212 = vdwg.mxu0
        %3213 = vmatpush.bf16.msra.mxu0 %v2376
        %3214 = vmatpush.bf16.msra.mxu0 %v2371
        %3215 = vmatpush.bf16.msra.mxu0 %v2366
        %3216 = vmatpush.bf16.msra.mxu0 %v2361
        %3217 = vmatpush.bf16.msra.mxu0 %v2356
        %3218 = vmatpush.bf16.msra.mxu0 %v2351
        %3219 = vmatpush.bf16.msra.mxu0 %v2346
        %3220 = vmatpush.bf16.msra.mxu0 %v2341
        %3221 = vmatmul.bf16.gmra.mxu0 %v409
        %v3222 = vpop.f32.mrf.mxu0
        %v3223 = vadd.f32 %v3164, %v3222
        %v3224 = vpop.f32.mrf.mxu0
        %v3225 = vadd.f32 %v3166, %v3224
        %3226 = vmatmul.bf16.gmra.mxu0 %v412
        %v3227 = vpop.f32.mrf.mxu0
        %v3228 = vadd.f32 %v3169, %v3227
        %v3229 = vpop.f32.mrf.mxu0
        %v3230 = vadd.f32 %v3171, %v3229
        %3231 = vmatmul.bf16.gmra.mxu0 %v415
        %v3232 = vpop.f32.mrf.mxu0
        %v3233 = vadd.f32 %v3174, %v3232
        %v3234 = vpop.f32.mrf.mxu0
        %v3235 = vadd.f32 %v3176, %v3234
        %3236 = vmatmul.bf16.gmra.mxu0 %v418
        %v3237 = vpop.f32.mrf.mxu0
        %v3238 = vadd.f32 %v3179, %v3237
        %v3239 = vpop.f32.mrf.mxu0
        %v3240 = vadd.f32 %v3181, %v3239
        %3241 = vmatmul.bf16.gmra.mxu0 %v421
        %v3242 = vpop.f32.mrf.mxu0
        %v3243 = vadd.f32 %v3184, %v3242
        %v3244 = vpop.f32.mrf.mxu0
        %v3245 = vadd.f32 %v3186, %v3244
        %3246 = vmatmul.bf16.gmra.mxu0 %v424
        %v3247 = vpop.f32.mrf.mxu0
        %v3248 = vadd.f32 %v3189, %v3247
        %v3249 = vpop.f32.mrf.mxu0
        %v3250 = vadd.f32 %v3191, %v3249
        %3251 = vmatmul.bf16.gmra.mxu0 %v427
        %v3252 = vpop.f32.mrf.mxu0
        %v3253 = vadd.f32 %v3194, %v3252
        %v3254 = vpop.f32.mrf.mxu0
        %v3255 = vadd.f32 %v3196, %v3254
        %3256 = vmatmul.bf16.gmra.mxu0 %v430
        %v3257 = vpop.f32.mrf.mxu0
        %v3258 = vadd.f32 %v3199, %v3257
        %v3259 = vpop.f32.mrf.mxu0
        %v3260 = vadd.f32 %v3201, %v3259
        %3261 = vmatmul.bf16.gmra.mxu0 %v433
        %v3262 = vpop.f32.mrf.mxu0
        %v3263 = vadd.f32 %v3204, %v3262
        %v3264 = vpop.f32.mrf.mxu0
        %v3265 = vadd.f32 %v3206, %v3264
        %3266 = vmatmul.bf16.gmra.mxu0 %v436
        %v3267 = vpop.f32.mrf.mxu0
        %v3268 = vadd.f32 %v3209, %v3267
        %v3269 = vpop.f32.mrf.mxu0
        %v3270 = vadd.f32 %v3211, %v3269
        %3271 = vdwg.mxu0
        %3272 = vmatpush.bf16.msra.mxu0 %v2057
        %3273 = vmatpush.bf16.msra.mxu0 %v2052
        %3274 = vmatpush.bf16.msra.mxu0 %v2047
        %3275 = vmatpush.bf16.msra.mxu0 %v2042
        %3276 = vmatpush.bf16.msra.mxu0 %v2037
        %3277 = vmatpush.bf16.msra.mxu0 %v2032
        %3278 = vmatpush.bf16.msra.mxu0 %v2027
        %3279 = vmatpush.bf16.msra.mxu0 %v2022
        %3280 = vmatmul.bf16.gmra.mxu0 %v401
        %v3281 = vpop.f32.mrf.mxu0
        %v3282 = vadd.f32 0.0, %v3281
        %v3283 = vpop.f32.mrf.mxu0
        %v3284 = vadd.f32 0.0, %v3283
        %3285 = vmatmul.bf16.gmra.mxu0 %v404
        %v3286 = vpop.f32.mrf.mxu0
        %v3287 = vadd.f32 0.0, %v3286
        %v3288 = vpop.f32.mrf.mxu0
        %v3289 = vadd.f32 0.0, %v3288
        %3290 = vmatmul.bf16.gmra.mxu0 %v407
        %v3291 = vpop.f32.mrf.mxu0
        %v3292 = vadd.f32 0.0, %v3291
        %v3293 = vpop.f32.mrf.mxu0
        %v3294 = vadd.f32 0.0, %v3293
        %3295 = vmatmul.bf16.gmra.mxu0 %v410
        %v3296 = vpop.f32.mrf.mxu0
        %v3297 = vadd.f32 0.0, %v3296
        %v3298 = vpop.f32.mrf.mxu0
        %v3299 = vadd.f32 0.0, %v3298
        %3300 = vmatmul.bf16.gmra.mxu0 %v413
        %v3301 = vpop.f32.mrf.mxu0
        %v3302 = vadd.f32 0.0, %v3301
        %v3303 = vpop.f32.mrf.mxu0
        %v3304 = vadd.f32 0.0, %v3303
        %3305 = vmatmul.bf16.gmra.mxu0 %v416
        %v3306 = vpop.f32.mrf.mxu0
        %v3307 = vadd.f32 0.0, %v3306
        %v3308 = vpop.f32.mrf.mxu0
        %v3309 = vadd.f32 0.0, %v3308
        %3310 = vmatmul.bf16.gmra.mxu0 %v419
        %v3311 = vpop.f32.mrf.mxu0
        %v3312 = vadd.f32 0.0, %v3311
        %v3313 = vpop.f32.mrf.mxu0
        %v3314 = vadd.f32 0.0, %v3313
        %3315 = vmatmul.bf16.gmra.mxu0 %v422
        %v3316 = vpop.f32.mrf.mxu0
        %v3317 = vadd.f32 0.0, %v3316
        %v3318 = vpop.f32.mrf.mxu0
        %v3319 = vadd.f32 0.0, %v3318
        %3320 = vmatmul.bf16.gmra.mxu0 %v425
        %v3321 = vpop.f32.mrf.mxu0
        %v3322 = vadd.f32 0.0, %v3321
        %v3323 = vpop.f32.mrf.mxu0
        %v3324 = vadd.f32 0.0, %v3323
        %3325 = vmatmul.bf16.gmra.mxu0 %v428
        %v3326 = vpop.f32.mrf.mxu0
        %v3327 = vadd.f32 0.0, %v3326
        %v3328 = vpop.f32.mrf.mxu0
        %v3329 = vadd.f32 0.0, %v3328
        %3330 = vdwg.mxu0
        %3331 = vmatpush.bf16.msra.mxu0 %v2097
        %3332 = vmatpush.bf16.msra.mxu0 %v2092
        %3333 = vmatpush.bf16.msra.mxu0 %v2087
        %3334 = vmatpush.bf16.msra.mxu0 %v2082
        %3335 = vmatpush.bf16.msra.mxu0 %v2077
        %3336 = vmatpush.bf16.msra.mxu0 %v2072
        %3337 = vmatpush.bf16.msra.mxu0 %v2067
        %3338 = vmatpush.bf16.msra.mxu0 %v2062
        %3339 = vmatmul.bf16.gmra.mxu0 %v402
        %v3340 = vpop.f32.mrf.mxu0
        %v3341 = vadd.f32 %v3282, %v3340
        %v3342 = vpop.f32.mrf.mxu0
        %v3343 = vadd.f32 %v3284, %v3342
        %3344 = vmatmul.bf16.gmra.mxu0 %v405
        %v3345 = vpop.f32.mrf.mxu0
        %v3346 = vadd.f32 %v3287, %v3345
        %v3347 = vpop.f32.mrf.mxu0
        %v3348 = vadd.f32 %v3289, %v3347
        %3349 = vmatmul.bf16.gmra.mxu0 %v408
        %v3350 = vpop.f32.mrf.mxu0
        %v3351 = vadd.f32 %v3292, %v3350
        %v3352 = vpop.f32.mrf.mxu0
        %v3353 = vadd.f32 %v3294, %v3352
        %3354 = vmatmul.bf16.gmra.mxu0 %v411
        %v3355 = vpop.f32.mrf.mxu0
        %v3356 = vadd.f32 %v3297, %v3355
        %v3357 = vpop.f32.mrf.mxu0
        %v3358 = vadd.f32 %v3299, %v3357
        %3359 = vmatmul.bf16.gmra.mxu0 %v414
        %v3360 = vpop.f32.mrf.mxu0
        %v3361 = vadd.f32 %v3302, %v3360
        %v3362 = vpop.f32.mrf.mxu0
        %v3363 = vadd.f32 %v3304, %v3362
        %3364 = vmatmul.bf16.gmra.mxu0 %v417
        %v3365 = vpop.f32.mrf.mxu0
        %v3366 = vadd.f32 %v3307, %v3365
        %v3367 = vpop.f32.mrf.mxu0
        %v3368 = vadd.f32 %v3309, %v3367
        %3369 = vmatmul.bf16.gmra.mxu0 %v420
        %v3370 = vpop.f32.mrf.mxu0
        %v3371 = vadd.f32 %v3312, %v3370
        %v3372 = vpop.f32.mrf.mxu0
        %v3373 = vadd.f32 %v3314, %v3372
        %3374 = vmatmul.bf16.gmra.mxu0 %v423
        %v3375 = vpop.f32.mrf.mxu0
        %v3376 = vadd.f32 %v3317, %v3375
        %v3377 = vpop.f32.mrf.mxu0
        %v3378 = vadd.f32 %v3319, %v3377
        %3379 = vmatmul.bf16.gmra.mxu0 %v426
        %v3380 = vpop.f32.mrf.mxu0
        %v3381 = vadd.f32 %v3322, %v3380
        %v3382 = vpop.f32.mrf.mxu0
        %v3383 = vadd.f32 %v3324, %v3382
        %3384 = vmatmul.bf16.gmra.mxu0 %v429
        %v3385 = vpop.f32.mrf.mxu0
        %v3386 = vadd.f32 %v3327, %v3385
        %v3387 = vpop.f32.mrf.mxu0
        %v3388 = vadd.f32 %v3329, %v3387
        %3389 = vdwg.mxu0
        %3390 = vmatpush.bf16.msra.mxu0 %v2137
        %3391 = vmatpush.bf16.msra.mxu0 %v2132
        %3392 = vmatpush.bf16.msra.mxu0 %v2127
        %3393 = vmatpush.bf16.msra.mxu0 %v2122
        %3394 = vmatpush.bf16.msra.mxu0 %v2117
        %3395 = vmatpush.bf16.msra.mxu0 %v2112
        %3396 = vmatpush.bf16.msra.mxu0 %v2107
        %3397 = vmatpush.bf16.msra.mxu0 %v2102
        %3398 = vmatmul.bf16.gmra.mxu0 %v403
        %v3399 = vpop.f32.mrf.mxu0
        %v3400 = vadd.f32 %v3341, %v3399
        %v3401 = vpop.f32.mrf.mxu0
        %v3402 = vadd.f32 %v3343, %v3401
        %3403 = vmatmul.bf16.gmra.mxu0 %v406
        %v3404 = vpop.f32.mrf.mxu0
        %v3405 = vadd.f32 %v3346, %v3404
        %v3406 = vpop.f32.mrf.mxu0
        %v3407 = vadd.f32 %v3348, %v3406
        %3408 = vmatmul.bf16.gmra.mxu0 %v409
        %v3409 = vpop.f32.mrf.mxu0
        %v3410 = vadd.f32 %v3351, %v3409
        %v3411 = vpop.f32.mrf.mxu0
        %v3412 = vadd.f32 %v3353, %v3411
        %3413 = vmatmul.bf16.gmra.mxu0 %v412
        %v3414 = vpop.f32.mrf.mxu0
        %v3415 = vadd.f32 %v3356, %v3414
        %v3416 = vpop.f32.mrf.mxu0
        %v3417 = vadd.f32 %v3358, %v3416
        %3418 = vmatmul.bf16.gmra.mxu0 %v415
        %v3419 = vpop.f32.mrf.mxu0
        %v3420 = vadd.f32 %v3361, %v3419
        %v3421 = vpop.f32.mrf.mxu0
        %v3422 = vadd.f32 %v3363, %v3421
        %3423 = vmatmul.bf16.gmra.mxu0 %v418
        %v3424 = vpop.f32.mrf.mxu0
        %v3425 = vadd.f32 %v3366, %v3424
        %v3426 = vpop.f32.mrf.mxu0
        %v3427 = vadd.f32 %v3368, %v3426
        %3428 = vmatmul.bf16.gmra.mxu0 %v421
        %v3429 = vpop.f32.mrf.mxu0
        %v3430 = vadd.f32 %v3371, %v3429
        %v3431 = vpop.f32.mrf.mxu0
        %v3432 = vadd.f32 %v3373, %v3431
        %3433 = vmatmul.bf16.gmra.mxu0 %v424
        %v3434 = vpop.f32.mrf.mxu0
        %v3435 = vadd.f32 %v3376, %v3434
        %v3436 = vpop.f32.mrf.mxu0
        %v3437 = vadd.f32 %v3378, %v3436
        %3438 = vmatmul.bf16.gmra.mxu0 %v427
        %v3439 = vpop.f32.mrf.mxu0
        %v3440 = vadd.f32 %v3381, %v3439
        %v3441 = vpop.f32.mrf.mxu0
        %v3442 = vadd.f32 %v3383, %v3441
        %3443 = vmatmul.bf16.gmra.mxu0 %v430
        %v3444 = vpop.f32.mrf.mxu0
        %v3445 = vadd.f32 %v3386, %v3444
        %v3446 = vpop.f32.mrf.mxu0
        %v3447 = vadd.f32 %v3388, %v3446
        %3448 = vdwg.mxu0
        %3449 = vmatpush.bf16.msra.mxu0 %v2177
        %3450 = vmatpush.bf16.msra.mxu0 %v2172
        %3451 = vmatpush.bf16.msra.mxu0 %v2167
        %3452 = vmatpush.bf16.msra.mxu0 %v2162
        %3453 = vmatpush.bf16.msra.mxu0 %v2157
        %3454 = vmatpush.bf16.msra.mxu0 %v2152
        %3455 = vmatpush.bf16.msra.mxu0 %v2147
        %3456 = vmatpush.bf16.msra.mxu0 %v2142
        %3457 = vmatmul.bf16.gmra.mxu0 %v404
        %v3458 = vpop.f32.mrf.mxu0
        %v3459 = vadd.f32 %v3400, %v3458
        %v3460 = vpop.f32.mrf.mxu0
        %v3461 = vadd.f32 %v3402, %v3460
        %3462 = vmatmul.bf16.gmra.mxu0 %v407
        %v3463 = vpop.f32.mrf.mxu0
        %v3464 = vadd.f32 %v3405, %v3463
        %v3465 = vpop.f32.mrf.mxu0
        %v3466 = vadd.f32 %v3407, %v3465
        %3467 = vmatmul.bf16.gmra.mxu0 %v410
        %v3468 = vpop.f32.mrf.mxu0
        %v3469 = vadd.f32 %v3410, %v3468
        %v3470 = vpop.f32.mrf.mxu0
        %v3471 = vadd.f32 %v3412, %v3470
        %3472 = vmatmul.bf16.gmra.mxu0 %v413
        %v3473 = vpop.f32.mrf.mxu0
        %v3474 = vadd.f32 %v3415, %v3473
        %v3475 = vpop.f32.mrf.mxu0
        %v3476 = vadd.f32 %v3417, %v3475
        %3477 = vmatmul.bf16.gmra.mxu0 %v416
        %v3478 = vpop.f32.mrf.mxu0
        %v3479 = vadd.f32 %v3420, %v3478
        %v3480 = vpop.f32.mrf.mxu0
        %v3481 = vadd.f32 %v3422, %v3480
        %3482 = vmatmul.bf16.gmra.mxu0 %v419
        %v3483 = vpop.f32.mrf.mxu0
        %v3484 = vadd.f32 %v3425, %v3483
        %v3485 = vpop.f32.mrf.mxu0
        %v3486 = vadd.f32 %v3427, %v3485
        %3487 = vmatmul.bf16.gmra.mxu0 %v422
        %v3488 = vpop.f32.mrf.mxu0
        %v3489 = vadd.f32 %v3430, %v3488
        %v3490 = vpop.f32.mrf.mxu0
        %v3491 = vadd.f32 %v3432, %v3490
        %3492 = vmatmul.bf16.gmra.mxu0 %v425
        %v3493 = vpop.f32.mrf.mxu0
        %v3494 = vadd.f32 %v3435, %v3493
        %v3495 = vpop.f32.mrf.mxu0
        %v3496 = vadd.f32 %v3437, %v3495
        %3497 = vmatmul.bf16.gmra.mxu0 %v428
        %v3498 = vpop.f32.mrf.mxu0
        %v3499 = vadd.f32 %v3440, %v3498
        %v3500 = vpop.f32.mrf.mxu0
        %v3501 = vadd.f32 %v3442, %v3500
        %3502 = vmatmul.bf16.gmra.mxu0 %v431
        %v3503 = vpop.f32.mrf.mxu0
        %v3504 = vadd.f32 %v3445, %v3503
        %v3505 = vpop.f32.mrf.mxu0
        %v3506 = vadd.f32 %v3447, %v3505
        %3507 = vdwg.mxu0
        %3508 = vmatpush.bf16.msra.mxu0 %v2217
        %3509 = vmatpush.bf16.msra.mxu0 %v2212
        %3510 = vmatpush.bf16.msra.mxu0 %v2207
        %3511 = vmatpush.bf16.msra.mxu0 %v2202
        %3512 = vmatpush.bf16.msra.mxu0 %v2197
        %3513 = vmatpush.bf16.msra.mxu0 %v2192
        %3514 = vmatpush.bf16.msra.mxu0 %v2187
        %3515 = vmatpush.bf16.msra.mxu0 %v2182
        %3516 = vmatmul.bf16.gmra.mxu0 %v405
        %v3517 = vpop.f32.mrf.mxu0
        %v3518 = vadd.f32 %v3459, %v3517
        %v3519 = vpop.f32.mrf.mxu0
        %v3520 = vadd.f32 %v3461, %v3519
        %3521 = vmatmul.bf16.gmra.mxu0 %v408
        %v3522 = vpop.f32.mrf.mxu0
        %v3523 = vadd.f32 %v3464, %v3522
        %v3524 = vpop.f32.mrf.mxu0
        %v3525 = vadd.f32 %v3466, %v3524
        %3526 = vmatmul.bf16.gmra.mxu0 %v411
        %v3527 = vpop.f32.mrf.mxu0
        %v3528 = vadd.f32 %v3469, %v3527
        %v3529 = vpop.f32.mrf.mxu0
        %v3530 = vadd.f32 %v3471, %v3529
        %3531 = vmatmul.bf16.gmra.mxu0 %v414
        %v3532 = vpop.f32.mrf.mxu0
        %v3533 = vadd.f32 %v3474, %v3532
        %v3534 = vpop.f32.mrf.mxu0
        %v3535 = vadd.f32 %v3476, %v3534
        %3536 = vmatmul.bf16.gmra.mxu0 %v417
        %v3537 = vpop.f32.mrf.mxu0
        %v3538 = vadd.f32 %v3479, %v3537
        %v3539 = vpop.f32.mrf.mxu0
        %v3540 = vadd.f32 %v3481, %v3539
        %3541 = vmatmul.bf16.gmra.mxu0 %v420
        %v3542 = vpop.f32.mrf.mxu0
        %v3543 = vadd.f32 %v3484, %v3542
        %v3544 = vpop.f32.mrf.mxu0
        %v3545 = vadd.f32 %v3486, %v3544
        %3546 = vmatmul.bf16.gmra.mxu0 %v423
        %v3547 = vpop.f32.mrf.mxu0
        %v3548 = vadd.f32 %v3489, %v3547
        %v3549 = vpop.f32.mrf.mxu0
        %v3550 = vadd.f32 %v3491, %v3549
        %3551 = vmatmul.bf16.gmra.mxu0 %v426
        %v3552 = vpop.f32.mrf.mxu0
        %v3553 = vadd.f32 %v3494, %v3552
        %v3554 = vpop.f32.mrf.mxu0
        %v3555 = vadd.f32 %v3496, %v3554
        %3556 = vmatmul.bf16.gmra.mxu0 %v429
        %v3557 = vpop.f32.mrf.mxu0
        %v3558 = vadd.f32 %v3499, %v3557
        %v3559 = vpop.f32.mrf.mxu0
        %v3560 = vadd.f32 %v3501, %v3559
        %3561 = vmatmul.bf16.gmra.mxu0 %v432
        %v3562 = vpop.f32.mrf.mxu0
        %v3563 = vadd.f32 %v3504, %v3562
        %v3564 = vpop.f32.mrf.mxu0
        %v3565 = vadd.f32 %v3506, %v3564
        %3566 = vdwg.mxu0
        %3567 = vmatpush.bf16.msra.mxu0 %v2257
        %3568 = vmatpush.bf16.msra.mxu0 %v2252
        %3569 = vmatpush.bf16.msra.mxu0 %v2247
        %3570 = vmatpush.bf16.msra.mxu0 %v2242
        %3571 = vmatpush.bf16.msra.mxu0 %v2237
        %3572 = vmatpush.bf16.msra.mxu0 %v2232
        %3573 = vmatpush.bf16.msra.mxu0 %v2227
        %3574 = vmatpush.bf16.msra.mxu0 %v2222
        %3575 = vmatmul.bf16.gmra.mxu0 %v406
        %v3576 = vpop.f32.mrf.mxu0
        %v3577 = vadd.f32 %v3518, %v3576
        %v3578 = vpop.f32.mrf.mxu0
        %v3579 = vadd.f32 %v3520, %v3578
        %3580 = vmatmul.bf16.gmra.mxu0 %v409
        %v3581 = vpop.f32.mrf.mxu0
        %v3582 = vadd.f32 %v3523, %v3581
        %v3583 = vpop.f32.mrf.mxu0
        %v3584 = vadd.f32 %v3525, %v3583
        %3585 = vmatmul.bf16.gmra.mxu0 %v412
        %v3586 = vpop.f32.mrf.mxu0
        %v3587 = vadd.f32 %v3528, %v3586
        %v3588 = vpop.f32.mrf.mxu0
        %v3589 = vadd.f32 %v3530, %v3588
        %3590 = vmatmul.bf16.gmra.mxu0 %v415
        %v3591 = vpop.f32.mrf.mxu0
        %v3592 = vadd.f32 %v3533, %v3591
        %v3593 = vpop.f32.mrf.mxu0
        %v3594 = vadd.f32 %v3535, %v3593
        %3595 = vmatmul.bf16.gmra.mxu0 %v418
        %v3596 = vpop.f32.mrf.mxu0
        %v3597 = vadd.f32 %v3538, %v3596
        %v3598 = vpop.f32.mrf.mxu0
        %v3599 = vadd.f32 %v3540, %v3598
        %3600 = vmatmul.bf16.gmra.mxu0 %v421
        %v3601 = vpop.f32.mrf.mxu0
        %v3602 = vadd.f32 %v3543, %v3601
        %v3603 = vpop.f32.mrf.mxu0
        %v3604 = vadd.f32 %v3545, %v3603
        %3605 = vmatmul.bf16.gmra.mxu0 %v424
        %v3606 = vpop.f32.mrf.mxu0
        %v3607 = vadd.f32 %v3548, %v3606
        %v3608 = vpop.f32.mrf.mxu0
        %v3609 = vadd.f32 %v3550, %v3608
        %3610 = vmatmul.bf16.gmra.mxu0 %v427
        %v3611 = vpop.f32.mrf.mxu0
        %v3612 = vadd.f32 %v3553, %v3611
        %v3613 = vpop.f32.mrf.mxu0
        %v3614 = vadd.f32 %v3555, %v3613
        %3615 = vmatmul.bf16.gmra.mxu0 %v430
        %v3616 = vpop.f32.mrf.mxu0
        %v3617 = vadd.f32 %v3558, %v3616
        %v3618 = vpop.f32.mrf.mxu0
        %v3619 = vadd.f32 %v3560, %v3618
        %3620 = vmatmul.bf16.gmra.mxu0 %v433
        %v3621 = vpop.f32.mrf.mxu0
        %v3622 = vadd.f32 %v3563, %v3621
        %v3623 = vpop.f32.mrf.mxu0
        %v3624 = vadd.f32 %v3565, %v3623
        %3625 = vdwg.mxu0
        %3626 = vmatpush.bf16.msra.mxu0 %v2297
        %3627 = vmatpush.bf16.msra.mxu0 %v2292
        %3628 = vmatpush.bf16.msra.mxu0 %v2287
        %3629 = vmatpush.bf16.msra.mxu0 %v2282
        %3630 = vmatpush.bf16.msra.mxu0 %v2277
        %3631 = vmatpush.bf16.msra.mxu0 %v2272
        %3632 = vmatpush.bf16.msra.mxu0 %v2267
        %3633 = vmatpush.bf16.msra.mxu0 %v2262
        %3634 = vmatmul.bf16.gmra.mxu0 %v407
        %v3635 = vpop.f32.mrf.mxu0
        %v3636 = vadd.f32 %v3577, %v3635
        %v3637 = vpop.f32.mrf.mxu0
        %v3638 = vadd.f32 %v3579, %v3637
        %3639 = vmatmul.bf16.gmra.mxu0 %v410
        %v3640 = vpop.f32.mrf.mxu0
        %v3641 = vadd.f32 %v3582, %v3640
        %v3642 = vpop.f32.mrf.mxu0
        %v3643 = vadd.f32 %v3584, %v3642
        %3644 = vmatmul.bf16.gmra.mxu0 %v413
        %v3645 = vpop.f32.mrf.mxu0
        %v3646 = vadd.f32 %v3587, %v3645
        %v3647 = vpop.f32.mrf.mxu0
        %v3648 = vadd.f32 %v3589, %v3647
        %3649 = vmatmul.bf16.gmra.mxu0 %v416
        %v3650 = vpop.f32.mrf.mxu0
        %v3651 = vadd.f32 %v3592, %v3650
        %v3652 = vpop.f32.mrf.mxu0
        %v3653 = vadd.f32 %v3594, %v3652
        %3654 = vmatmul.bf16.gmra.mxu0 %v419
        %v3655 = vpop.f32.mrf.mxu0
        %v3656 = vadd.f32 %v3597, %v3655
        %v3657 = vpop.f32.mrf.mxu0
        %v3658 = vadd.f32 %v3599, %v3657
        %3659 = vmatmul.bf16.gmra.mxu0 %v422
        %v3660 = vpop.f32.mrf.mxu0
        %v3661 = vadd.f32 %v3602, %v3660
        %v3662 = vpop.f32.mrf.mxu0
        %v3663 = vadd.f32 %v3604, %v3662
        %3664 = vmatmul.bf16.gmra.mxu0 %v425
        %v3665 = vpop.f32.mrf.mxu0
        %v3666 = vadd.f32 %v3607, %v3665
        %v3667 = vpop.f32.mrf.mxu0
        %v3668 = vadd.f32 %v3609, %v3667
        %3669 = vmatmul.bf16.gmra.mxu0 %v428
        %v3670 = vpop.f32.mrf.mxu0
        %v3671 = vadd.f32 %v3612, %v3670
        %v3672 = vpop.f32.mrf.mxu0
        %v3673 = vadd.f32 %v3614, %v3672
        %3674 = vmatmul.bf16.gmra.mxu0 %v431
        %v3675 = vpop.f32.mrf.mxu0
        %v3676 = vadd.f32 %v3617, %v3675
        %v3677 = vpop.f32.mrf.mxu0
        %v3678 = vadd.f32 %v3619, %v3677
        %3679 = vmatmul.bf16.gmra.mxu0 %v434
        %v3680 = vpop.f32.mrf.mxu0
        %v3681 = vadd.f32 %v3622, %v3680
        %v3682 = vpop.f32.mrf.mxu0
        %v3683 = vadd.f32 %v3624, %v3682
        %3684 = vdwg.mxu0
        %3685 = vmatpush.bf16.msra.mxu0 %v2337
        %3686 = vmatpush.bf16.msra.mxu0 %v2332
        %3687 = vmatpush.bf16.msra.mxu0 %v2327
        %3688 = vmatpush.bf16.msra.mxu0 %v2322
        %3689 = vmatpush.bf16.msra.mxu0 %v2317
        %3690 = vmatpush.bf16.msra.mxu0 %v2312
        %3691 = vmatpush.bf16.msra.mxu0 %v2307
        %3692 = vmatpush.bf16.msra.mxu0 %v2302
        %3693 = vmatmul.bf16.gmra.mxu0 %v408
        %v3694 = vpop.f32.mrf.mxu0
        %v3695 = vadd.f32 %v3636, %v3694
        %v3696 = vpop.f32.mrf.mxu0
        %v3697 = vadd.f32 %v3638, %v3696
        %3698 = vmatmul.bf16.gmra.mxu0 %v411
        %v3699 = vpop.f32.mrf.mxu0
        %v3700 = vadd.f32 %v3641, %v3699
        %v3701 = vpop.f32.mrf.mxu0
        %v3702 = vadd.f32 %v3643, %v3701
        %3703 = vmatmul.bf16.gmra.mxu0 %v414
        %v3704 = vpop.f32.mrf.mxu0
        %v3705 = vadd.f32 %v3646, %v3704
        %v3706 = vpop.f32.mrf.mxu0
        %v3707 = vadd.f32 %v3648, %v3706
        %3708 = vmatmul.bf16.gmra.mxu0 %v417
        %v3709 = vpop.f32.mrf.mxu0
        %v3710 = vadd.f32 %v3651, %v3709
        %v3711 = vpop.f32.mrf.mxu0
        %v3712 = vadd.f32 %v3653, %v3711
        %3713 = vmatmul.bf16.gmra.mxu0 %v420
        %v3714 = vpop.f32.mrf.mxu0
        %v3715 = vadd.f32 %v3656, %v3714
        %v3716 = vpop.f32.mrf.mxu0
        %v3717 = vadd.f32 %v3658, %v3716
        %3718 = vmatmul.bf16.gmra.mxu0 %v423
        %v3719 = vpop.f32.mrf.mxu0
        %v3720 = vadd.f32 %v3661, %v3719
        %v3721 = vpop.f32.mrf.mxu0
        %v3722 = vadd.f32 %v3663, %v3721
        %3723 = vmatmul.bf16.gmra.mxu0 %v426
        %v3724 = vpop.f32.mrf.mxu0
        %v3725 = vadd.f32 %v3666, %v3724
        %v3726 = vpop.f32.mrf.mxu0
        %v3727 = vadd.f32 %v3668, %v3726
        %3728 = vmatmul.bf16.gmra.mxu0 %v429
        %v3729 = vpop.f32.mrf.mxu0
        %v3730 = vadd.f32 %v3671, %v3729
        %v3731 = vpop.f32.mrf.mxu0
        %v3732 = vadd.f32 %v3673, %v3731
        %3733 = vmatmul.bf16.gmra.mxu0 %v432
        %v3734 = vpop.f32.mrf.mxu0
        %v3735 = vadd.f32 %v3676, %v3734
        %v3736 = vpop.f32.mrf.mxu0
        %v3737 = vadd.f32 %v3678, %v3736
        %3738 = vmatmul.bf16.gmra.mxu0 %v435
        %v3739 = vpop.f32.mrf.mxu0
        %v3740 = vadd.f32 %v3681, %v3739
        %v3741 = vpop.f32.mrf.mxu0
        %v3742 = vadd.f32 %v3683, %v3741
        %3743 = vdwg.mxu0
        %3744 = vmatpush.bf16.msra.mxu0 %v2377
        %3745 = vmatpush.bf16.msra.mxu0 %v2372
        %3746 = vmatpush.bf16.msra.mxu0 %v2367
        %3747 = vmatpush.bf16.msra.mxu0 %v2362
        %3748 = vmatpush.bf16.msra.mxu0 %v2357
        %3749 = vmatpush.bf16.msra.mxu0 %v2352
        %3750 = vmatpush.bf16.msra.mxu0 %v2347
        %3751 = vmatpush.bf16.msra.mxu0 %v2342
        %3752 = vmatmul.bf16.gmra.mxu0 %v409
        %v3753 = vpop.f32.mrf.mxu0
        %v3754 = vadd.f32 %v3695, %v3753
        %v3755 = vpop.f32.mrf.mxu0
        %v3756 = vadd.f32 %v3697, %v3755
        %3757 = vmatmul.bf16.gmra.mxu0 %v412
        %v3758 = vpop.f32.mrf.mxu0
        %v3759 = vadd.f32 %v3700, %v3758
        %v3760 = vpop.f32.mrf.mxu0
        %v3761 = vadd.f32 %v3702, %v3760
        %3762 = vmatmul.bf16.gmra.mxu0 %v415
        %v3763 = vpop.f32.mrf.mxu0
        %v3764 = vadd.f32 %v3705, %v3763
        %v3765 = vpop.f32.mrf.mxu0
        %v3766 = vadd.f32 %v3707, %v3765
        %3767 = vmatmul.bf16.gmra.mxu0 %v418
        %v3768 = vpop.f32.mrf.mxu0
        %v3769 = vadd.f32 %v3710, %v3768
        %v3770 = vpop.f32.mrf.mxu0
        %v3771 = vadd.f32 %v3712, %v3770
        %3772 = vmatmul.bf16.gmra.mxu0 %v421
        %v3773 = vpop.f32.mrf.mxu0
        %v3774 = vadd.f32 %v3715, %v3773
        %v3775 = vpop.f32.mrf.mxu0
        %v3776 = vadd.f32 %v3717, %v3775
        %3777 = vmatmul.bf16.gmra.mxu0 %v424
        %v3778 = vpop.f32.mrf.mxu0
        %v3779 = vadd.f32 %v3720, %v3778
        %v3780 = vpop.f32.mrf.mxu0
        %v3781 = vadd.f32 %v3722, %v3780
        %3782 = vmatmul.bf16.gmra.mxu0 %v427
        %v3783 = vpop.f32.mrf.mxu0
        %v3784 = vadd.f32 %v3725, %v3783
        %v3785 = vpop.f32.mrf.mxu0
        %v3786 = vadd.f32 %v3727, %v3785
        %3787 = vmatmul.bf16.gmra.mxu0 %v430
        %v3788 = vpop.f32.mrf.mxu0
        %v3789 = vadd.f32 %v3730, %v3788
        %v3790 = vpop.f32.mrf.mxu0
        %v3791 = vadd.f32 %v3732, %v3790
        %3792 = vmatmul.bf16.gmra.mxu0 %v433
        %v3793 = vpop.f32.mrf.mxu0
        %v3794 = vadd.f32 %v3735, %v3793
        %v3795 = vpop.f32.mrf.mxu0
        %v3796 = vadd.f32 %v3737, %v3795
        %3797 = vmatmul.bf16.gmra.mxu0 %v436
        %v3798 = vpop.f32.mrf.mxu0
        %v3799 = vadd.f32 %v3740, %v3798
        %v3800 = vpop.f32.mrf.mxu0
        %v3801 = vadd.f32 %v3742, %v3800
        %3802 = vdwg.mxu0
        %3803 = vmatpush.bf16.msra.mxu0 %v2058
        %3804 = vmatpush.bf16.msra.mxu0 %v2053
        %3805 = vmatpush.bf16.msra.mxu0 %v2048
        %3806 = vmatpush.bf16.msra.mxu0 %v2043
        %3807 = vmatpush.bf16.msra.mxu0 %v2038
        %3808 = vmatpush.bf16.msra.mxu0 %v2033
        %3809 = vmatpush.bf16.msra.mxu0 %v2028
        %3810 = vmatpush.bf16.msra.mxu0 %v2023
        %3811 = vmatmul.bf16.gmra.mxu0 %v401
        %v3812 = vpop.f32.mrf.mxu0
        %v3813 = vadd.f32 0.0, %v3812
        %v3814 = vpop.f32.mrf.mxu0
        %v3815 = vadd.f32 0.0, %v3814
        %3816 = vmatmul.bf16.gmra.mxu0 %v404
        %v3817 = vpop.f32.mrf.mxu0
        %v3818 = vadd.f32 0.0, %v3817
        %v3819 = vpop.f32.mrf.mxu0
        %v3820 = vadd.f32 0.0, %v3819
        %3821 = vmatmul.bf16.gmra.mxu0 %v407
        %v3822 = vpop.f32.mrf.mxu0
        %v3823 = vadd.f32 0.0, %v3822
        %v3824 = vpop.f32.mrf.mxu0
        %v3825 = vadd.f32 0.0, %v3824
        %3826 = vmatmul.bf16.gmra.mxu0 %v410
        %v3827 = vpop.f32.mrf.mxu0
        %v3828 = vadd.f32 0.0, %v3827
        %v3829 = vpop.f32.mrf.mxu0
        %v3830 = vadd.f32 0.0, %v3829
        %3831 = vmatmul.bf16.gmra.mxu0 %v413
        %v3832 = vpop.f32.mrf.mxu0
        %v3833 = vadd.f32 0.0, %v3832
        %v3834 = vpop.f32.mrf.mxu0
        %v3835 = vadd.f32 0.0, %v3834
        %3836 = vmatmul.bf16.gmra.mxu0 %v416
        %v3837 = vpop.f32.mrf.mxu0
        %v3838 = vadd.f32 0.0, %v3837
        %v3839 = vpop.f32.mrf.mxu0
        %v3840 = vadd.f32 0.0, %v3839
        %3841 = vmatmul.bf16.gmra.mxu0 %v419
        %v3842 = vpop.f32.mrf.mxu0
        %v3843 = vadd.f32 0.0, %v3842
        %v3844 = vpop.f32.mrf.mxu0
        %v3845 = vadd.f32 0.0, %v3844
        %3846 = vmatmul.bf16.gmra.mxu0 %v422
        %v3847 = vpop.f32.mrf.mxu0
        %v3848 = vadd.f32 0.0, %v3847
        %v3849 = vpop.f32.mrf.mxu0
        %v3850 = vadd.f32 0.0, %v3849
        %3851 = vmatmul.bf16.gmra.mxu0 %v425
        %v3852 = vpop.f32.mrf.mxu0
        %v3853 = vadd.f32 0.0, %v3852
        %v3854 = vpop.f32.mrf.mxu0
        %v3855 = vadd.f32 0.0, %v3854
        %3856 = vmatmul.bf16.gmra.mxu0 %v428
        %v3857 = vpop.f32.mrf.mxu0
        %v3858 = vadd.f32 0.0, %v3857
        %v3859 = vpop.f32.mrf.mxu0
        %v3860 = vadd.f32 0.0, %v3859
        %3861 = vdwg.mxu0
        %3862 = vmatpush.bf16.msra.mxu0 %v2098
        %3863 = vmatpush.bf16.msra.mxu0 %v2093
        %3864 = vmatpush.bf16.msra.mxu0 %v2088
        %3865 = vmatpush.bf16.msra.mxu0 %v2083
        %3866 = vmatpush.bf16.msra.mxu0 %v2078
        %3867 = vmatpush.bf16.msra.mxu0 %v2073
        %3868 = vmatpush.bf16.msra.mxu0 %v2068
        %3869 = vmatpush.bf16.msra.mxu0 %v2063
        %3870 = vmatmul.bf16.gmra.mxu0 %v402
        %v3871 = vpop.f32.mrf.mxu0
        %v3872 = vadd.f32 %v3813, %v3871
        %v3873 = vpop.f32.mrf.mxu0
        %v3874 = vadd.f32 %v3815, %v3873
        %3875 = vmatmul.bf16.gmra.mxu0 %v405
        %v3876 = vpop.f32.mrf.mxu0
        %v3877 = vadd.f32 %v3818, %v3876
        %v3878 = vpop.f32.mrf.mxu0
        %v3879 = vadd.f32 %v3820, %v3878
        %3880 = vmatmul.bf16.gmra.mxu0 %v408
        %v3881 = vpop.f32.mrf.mxu0
        %v3882 = vadd.f32 %v3823, %v3881
        %v3883 = vpop.f32.mrf.mxu0
        %v3884 = vadd.f32 %v3825, %v3883
        %3885 = vmatmul.bf16.gmra.mxu0 %v411
        %v3886 = vpop.f32.mrf.mxu0
        %v3887 = vadd.f32 %v3828, %v3886
        %v3888 = vpop.f32.mrf.mxu0
        %v3889 = vadd.f32 %v3830, %v3888
        %3890 = vmatmul.bf16.gmra.mxu0 %v414
        %v3891 = vpop.f32.mrf.mxu0
        %v3892 = vadd.f32 %v3833, %v3891
        %v3893 = vpop.f32.mrf.mxu0
        %v3894 = vadd.f32 %v3835, %v3893
        %3895 = vmatmul.bf16.gmra.mxu0 %v417
        %v3896 = vpop.f32.mrf.mxu0
        %v3897 = vadd.f32 %v3838, %v3896
        %v3898 = vpop.f32.mrf.mxu0
        %v3899 = vadd.f32 %v3840, %v3898
        %3900 = vmatmul.bf16.gmra.mxu0 %v420
        %v3901 = vpop.f32.mrf.mxu0
        %v3902 = vadd.f32 %v3843, %v3901
        %v3903 = vpop.f32.mrf.mxu0
        %v3904 = vadd.f32 %v3845, %v3903
        %3905 = vmatmul.bf16.gmra.mxu0 %v423
        %v3906 = vpop.f32.mrf.mxu0
        %v3907 = vadd.f32 %v3848, %v3906
        %v3908 = vpop.f32.mrf.mxu0
        %v3909 = vadd.f32 %v3850, %v3908
        %3910 = vmatmul.bf16.gmra.mxu0 %v426
        %v3911 = vpop.f32.mrf.mxu0
        %v3912 = vadd.f32 %v3853, %v3911
        %v3913 = vpop.f32.mrf.mxu0
        %v3914 = vadd.f32 %v3855, %v3913
        %3915 = vmatmul.bf16.gmra.mxu0 %v429
        %v3916 = vpop.f32.mrf.mxu0
        %v3917 = vadd.f32 %v3858, %v3916
        %v3918 = vpop.f32.mrf.mxu0
        %v3919 = vadd.f32 %v3860, %v3918
        %3920 = vdwg.mxu0
        %3921 = vmatpush.bf16.msra.mxu0 %v2138
        %3922 = vmatpush.bf16.msra.mxu0 %v2133
        %3923 = vmatpush.bf16.msra.mxu0 %v2128
        %3924 = vmatpush.bf16.msra.mxu0 %v2123
        %3925 = vmatpush.bf16.msra.mxu0 %v2118
        %3926 = vmatpush.bf16.msra.mxu0 %v2113
        %3927 = vmatpush.bf16.msra.mxu0 %v2108
        %3928 = vmatpush.bf16.msra.mxu0 %v2103
        %3929 = vmatmul.bf16.gmra.mxu0 %v403
        %v3930 = vpop.f32.mrf.mxu0
        %v3931 = vadd.f32 %v3872, %v3930
        %v3932 = vpop.f32.mrf.mxu0
        %v3933 = vadd.f32 %v3874, %v3932
        %3934 = vmatmul.bf16.gmra.mxu0 %v406
        %v3935 = vpop.f32.mrf.mxu0
        %v3936 = vadd.f32 %v3877, %v3935
        %v3937 = vpop.f32.mrf.mxu0
        %v3938 = vadd.f32 %v3879, %v3937
        %3939 = vmatmul.bf16.gmra.mxu0 %v409
        %v3940 = vpop.f32.mrf.mxu0
        %v3941 = vadd.f32 %v3882, %v3940
        %v3942 = vpop.f32.mrf.mxu0
        %v3943 = vadd.f32 %v3884, %v3942
        %3944 = vmatmul.bf16.gmra.mxu0 %v412
        %v3945 = vpop.f32.mrf.mxu0
        %v3946 = vadd.f32 %v3887, %v3945
        %v3947 = vpop.f32.mrf.mxu0
        %v3948 = vadd.f32 %v3889, %v3947
        %3949 = vmatmul.bf16.gmra.mxu0 %v415
        %v3950 = vpop.f32.mrf.mxu0
        %v3951 = vadd.f32 %v3892, %v3950
        %v3952 = vpop.f32.mrf.mxu0
        %v3953 = vadd.f32 %v3894, %v3952
        %3954 = vmatmul.bf16.gmra.mxu0 %v418
        %v3955 = vpop.f32.mrf.mxu0
        %v3956 = vadd.f32 %v3897, %v3955
        %v3957 = vpop.f32.mrf.mxu0
        %v3958 = vadd.f32 %v3899, %v3957
        %3959 = vmatmul.bf16.gmra.mxu0 %v421
        %v3960 = vpop.f32.mrf.mxu0
        %v3961 = vadd.f32 %v3902, %v3960
        %v3962 = vpop.f32.mrf.mxu0
        %v3963 = vadd.f32 %v3904, %v3962
        %3964 = vmatmul.bf16.gmra.mxu0 %v424
        %v3965 = vpop.f32.mrf.mxu0
        %v3966 = vadd.f32 %v3907, %v3965
        %v3967 = vpop.f32.mrf.mxu0
        %v3968 = vadd.f32 %v3909, %v3967
        %3969 = vmatmul.bf16.gmra.mxu0 %v427
        %v3970 = vpop.f32.mrf.mxu0
        %v3971 = vadd.f32 %v3912, %v3970
        %v3972 = vpop.f32.mrf.mxu0
        %v3973 = vadd.f32 %v3914, %v3972
        %3974 = vmatmul.bf16.gmra.mxu0 %v430
        %v3975 = vpop.f32.mrf.mxu0
        %v3976 = vadd.f32 %v3917, %v3975
        %v3977 = vpop.f32.mrf.mxu0
        %v3978 = vadd.f32 %v3919, %v3977
        %3979 = vdwg.mxu0
        %3980 = vmatpush.bf16.msra.mxu0 %v2178
        %3981 = vmatpush.bf16.msra.mxu0 %v2173
        %3982 = vmatpush.bf16.msra.mxu0 %v2168
        %3983 = vmatpush.bf16.msra.mxu0 %v2163
        %3984 = vmatpush.bf16.msra.mxu0 %v2158
        %3985 = vmatpush.bf16.msra.mxu0 %v2153
        %3986 = vmatpush.bf16.msra.mxu0 %v2148
        %3987 = vmatpush.bf16.msra.mxu0 %v2143
        %3988 = vmatmul.bf16.gmra.mxu0 %v404
        %v3989 = vpop.f32.mrf.mxu0
        %v3990 = vadd.f32 %v3931, %v3989
        %v3991 = vpop.f32.mrf.mxu0
        %v3992 = vadd.f32 %v3933, %v3991
        %3993 = vmatmul.bf16.gmra.mxu0 %v407
        %v3994 = vpop.f32.mrf.mxu0
        %v3995 = vadd.f32 %v3936, %v3994
        %v3996 = vpop.f32.mrf.mxu0
        %v3997 = vadd.f32 %v3938, %v3996
        %3998 = vmatmul.bf16.gmra.mxu0 %v410
        %v3999 = vpop.f32.mrf.mxu0
        %v4000 = vadd.f32 %v3941, %v3999
        %v4001 = vpop.f32.mrf.mxu0
        %v4002 = vadd.f32 %v3943, %v4001
        %4003 = vmatmul.bf16.gmra.mxu0 %v413
        %v4004 = vpop.f32.mrf.mxu0
        %v4005 = vadd.f32 %v3946, %v4004
        %v4006 = vpop.f32.mrf.mxu0
        %v4007 = vadd.f32 %v3948, %v4006
        %4008 = vmatmul.bf16.gmra.mxu0 %v416
        %v4009 = vpop.f32.mrf.mxu0
        %v4010 = vadd.f32 %v3951, %v4009
        %v4011 = vpop.f32.mrf.mxu0
        %v4012 = vadd.f32 %v3953, %v4011
        %4013 = vmatmul.bf16.gmra.mxu0 %v419
        %v4014 = vpop.f32.mrf.mxu0
        %v4015 = vadd.f32 %v3956, %v4014
        %v4016 = vpop.f32.mrf.mxu0
        %v4017 = vadd.f32 %v3958, %v4016
        %4018 = vmatmul.bf16.gmra.mxu0 %v422
        %v4019 = vpop.f32.mrf.mxu0
        %v4020 = vadd.f32 %v3961, %v4019
        %v4021 = vpop.f32.mrf.mxu0
        %v4022 = vadd.f32 %v3963, %v4021
        %4023 = vmatmul.bf16.gmra.mxu0 %v425
        %v4024 = vpop.f32.mrf.mxu0
        %v4025 = vadd.f32 %v3966, %v4024
        %v4026 = vpop.f32.mrf.mxu0
        %v4027 = vadd.f32 %v3968, %v4026
        %4028 = vmatmul.bf16.gmra.mxu0 %v428
        %v4029 = vpop.f32.mrf.mxu0
        %v4030 = vadd.f32 %v3971, %v4029
        %v4031 = vpop.f32.mrf.mxu0
        %v4032 = vadd.f32 %v3973, %v4031
        %4033 = vmatmul.bf16.gmra.mxu0 %v431
        %v4034 = vpop.f32.mrf.mxu0
        %v4035 = vadd.f32 %v3976, %v4034
        %v4036 = vpop.f32.mrf.mxu0
        %v4037 = vadd.f32 %v3978, %v4036
        %4038 = vdwg.mxu0
        %4039 = vmatpush.bf16.msra.mxu0 %v2218
        %4040 = vmatpush.bf16.msra.mxu0 %v2213
        %4041 = vmatpush.bf16.msra.mxu0 %v2208
        %4042 = vmatpush.bf16.msra.mxu0 %v2203
        %4043 = vmatpush.bf16.msra.mxu0 %v2198
        %4044 = vmatpush.bf16.msra.mxu0 %v2193
        %4045 = vmatpush.bf16.msra.mxu0 %v2188
        %4046 = vmatpush.bf16.msra.mxu0 %v2183
        %4047 = vmatmul.bf16.gmra.mxu0 %v405
        %v4048 = vpop.f32.mrf.mxu0
        %v4049 = vadd.f32 %v3990, %v4048
        %v4050 = vpop.f32.mrf.mxu0
        %v4051 = vadd.f32 %v3992, %v4050
        %4052 = vmatmul.bf16.gmra.mxu0 %v408
        %v4053 = vpop.f32.mrf.mxu0
        %v4054 = vadd.f32 %v3995, %v4053
        %v4055 = vpop.f32.mrf.mxu0
        %v4056 = vadd.f32 %v3997, %v4055
        %4057 = vmatmul.bf16.gmra.mxu0 %v411
        %v4058 = vpop.f32.mrf.mxu0
        %v4059 = vadd.f32 %v4000, %v4058
        %v4060 = vpop.f32.mrf.mxu0
        %v4061 = vadd.f32 %v4002, %v4060
        %4062 = vmatmul.bf16.gmra.mxu0 %v414
        %v4063 = vpop.f32.mrf.mxu0
        %v4064 = vadd.f32 %v4005, %v4063
        %v4065 = vpop.f32.mrf.mxu0
        %v4066 = vadd.f32 %v4007, %v4065
        %4067 = vmatmul.bf16.gmra.mxu0 %v417
        %v4068 = vpop.f32.mrf.mxu0
        %v4069 = vadd.f32 %v4010, %v4068
        %v4070 = vpop.f32.mrf.mxu0
        %v4071 = vadd.f32 %v4012, %v4070
        %4072 = vmatmul.bf16.gmra.mxu0 %v420
        %v4073 = vpop.f32.mrf.mxu0
        %v4074 = vadd.f32 %v4015, %v4073
        %v4075 = vpop.f32.mrf.mxu0
        %v4076 = vadd.f32 %v4017, %v4075
        %4077 = vmatmul.bf16.gmra.mxu0 %v423
        %v4078 = vpop.f32.mrf.mxu0
        %v4079 = vadd.f32 %v4020, %v4078
        %v4080 = vpop.f32.mrf.mxu0
        %v4081 = vadd.f32 %v4022, %v4080
        %4082 = vmatmul.bf16.gmra.mxu0 %v426
        %v4083 = vpop.f32.mrf.mxu0
        %v4084 = vadd.f32 %v4025, %v4083
        %v4085 = vpop.f32.mrf.mxu0
        %v4086 = vadd.f32 %v4027, %v4085
        %4087 = vmatmul.bf16.gmra.mxu0 %v429
        %v4088 = vpop.f32.mrf.mxu0
        %v4089 = vadd.f32 %v4030, %v4088
        %v4090 = vpop.f32.mrf.mxu0
        %v4091 = vadd.f32 %v4032, %v4090
        %4092 = vmatmul.bf16.gmra.mxu0 %v432
        %v4093 = vpop.f32.mrf.mxu0
        %v4094 = vadd.f32 %v4035, %v4093
        %v4095 = vpop.f32.mrf.mxu0
        %v4096 = vadd.f32 %v4037, %v4095
        %4097 = vdwg.mxu0
        %4098 = vmatpush.bf16.msra.mxu0 %v2258
        %4099 = vmatpush.bf16.msra.mxu0 %v2253
        %4100 = vmatpush.bf16.msra.mxu0 %v2248
        %4101 = vmatpush.bf16.msra.mxu0 %v2243
        %4102 = vmatpush.bf16.msra.mxu0 %v2238
        %4103 = vmatpush.bf16.msra.mxu0 %v2233
        %4104 = vmatpush.bf16.msra.mxu0 %v2228
        %4105 = vmatpush.bf16.msra.mxu0 %v2223
        %4106 = vmatmul.bf16.gmra.mxu0 %v406
        %v4107 = vpop.f32.mrf.mxu0
        %v4108 = vadd.f32 %v4049, %v4107
        %v4109 = vpop.f32.mrf.mxu0
        %v4110 = vadd.f32 %v4051, %v4109
        %4111 = vmatmul.bf16.gmra.mxu0 %v409
        %v4112 = vpop.f32.mrf.mxu0
        %v4113 = vadd.f32 %v4054, %v4112
        %v4114 = vpop.f32.mrf.mxu0
        %v4115 = vadd.f32 %v4056, %v4114
        %4116 = vmatmul.bf16.gmra.mxu0 %v412
        %v4117 = vpop.f32.mrf.mxu0
        %v4118 = vadd.f32 %v4059, %v4117
        %v4119 = vpop.f32.mrf.mxu0
        %v4120 = vadd.f32 %v4061, %v4119
        %4121 = vmatmul.bf16.gmra.mxu0 %v415
        %v4122 = vpop.f32.mrf.mxu0
        %v4123 = vadd.f32 %v4064, %v4122
        %v4124 = vpop.f32.mrf.mxu0
        %v4125 = vadd.f32 %v4066, %v4124
        %4126 = vmatmul.bf16.gmra.mxu0 %v418
        %v4127 = vpop.f32.mrf.mxu0
        %v4128 = vadd.f32 %v4069, %v4127
        %v4129 = vpop.f32.mrf.mxu0
        %v4130 = vadd.f32 %v4071, %v4129
        %4131 = vmatmul.bf16.gmra.mxu0 %v421
        %v4132 = vpop.f32.mrf.mxu0
        %v4133 = vadd.f32 %v4074, %v4132
        %v4134 = vpop.f32.mrf.mxu0
        %v4135 = vadd.f32 %v4076, %v4134
        %4136 = vmatmul.bf16.gmra.mxu0 %v424
        %v4137 = vpop.f32.mrf.mxu0
        %v4138 = vadd.f32 %v4079, %v4137
        %v4139 = vpop.f32.mrf.mxu0
        %v4140 = vadd.f32 %v4081, %v4139
        %4141 = vmatmul.bf16.gmra.mxu0 %v427
        %v4142 = vpop.f32.mrf.mxu0
        %v4143 = vadd.f32 %v4084, %v4142
        %v4144 = vpop.f32.mrf.mxu0
        %v4145 = vadd.f32 %v4086, %v4144
        %4146 = vmatmul.bf16.gmra.mxu0 %v430
        %v4147 = vpop.f32.mrf.mxu0
        %v4148 = vadd.f32 %v4089, %v4147
        %v4149 = vpop.f32.mrf.mxu0
        %v4150 = vadd.f32 %v4091, %v4149
        %4151 = vmatmul.bf16.gmra.mxu0 %v433
        %v4152 = vpop.f32.mrf.mxu0
        %v4153 = vadd.f32 %v4094, %v4152
        %v4154 = vpop.f32.mrf.mxu0
        %v4155 = vadd.f32 %v4096, %v4154
        %4156 = vdwg.mxu0
        %4157 = vmatpush.bf16.msra.mxu0 %v2298
        %4158 = vmatpush.bf16.msra.mxu0 %v2293
        %4159 = vmatpush.bf16.msra.mxu0 %v2288
        %4160 = vmatpush.bf16.msra.mxu0 %v2283
        %4161 = vmatpush.bf16.msra.mxu0 %v2278
        %4162 = vmatpush.bf16.msra.mxu0 %v2273
        %4163 = vmatpush.bf16.msra.mxu0 %v2268
        %4164 = vmatpush.bf16.msra.mxu0 %v2263
        %4165 = vmatmul.bf16.gmra.mxu0 %v407
        %v4166 = vpop.f32.mrf.mxu0
        %v4167 = vadd.f32 %v4108, %v4166
        %v4168 = vpop.f32.mrf.mxu0
        %v4169 = vadd.f32 %v4110, %v4168
        %4170 = vmatmul.bf16.gmra.mxu0 %v410
        %v4171 = vpop.f32.mrf.mxu0
        %v4172 = vadd.f32 %v4113, %v4171
        %v4173 = vpop.f32.mrf.mxu0
        %v4174 = vadd.f32 %v4115, %v4173
        %4175 = vmatmul.bf16.gmra.mxu0 %v413
        %v4176 = vpop.f32.mrf.mxu0
        %v4177 = vadd.f32 %v4118, %v4176
        %v4178 = vpop.f32.mrf.mxu0
        %v4179 = vadd.f32 %v4120, %v4178
        %4180 = vmatmul.bf16.gmra.mxu0 %v416
        %v4181 = vpop.f32.mrf.mxu0
        %v4182 = vadd.f32 %v4123, %v4181
        %v4183 = vpop.f32.mrf.mxu0
        %v4184 = vadd.f32 %v4125, %v4183
        %4185 = vmatmul.bf16.gmra.mxu0 %v419
        %v4186 = vpop.f32.mrf.mxu0
        %v4187 = vadd.f32 %v4128, %v4186
        %v4188 = vpop.f32.mrf.mxu0
        %v4189 = vadd.f32 %v4130, %v4188
        %4190 = vmatmul.bf16.gmra.mxu0 %v422
        %v4191 = vpop.f32.mrf.mxu0
        %v4192 = vadd.f32 %v4133, %v4191
        %v4193 = vpop.f32.mrf.mxu0
        %v4194 = vadd.f32 %v4135, %v4193
        %4195 = vmatmul.bf16.gmra.mxu0 %v425
        %v4196 = vpop.f32.mrf.mxu0
        %v4197 = vadd.f32 %v4138, %v4196
        %v4198 = vpop.f32.mrf.mxu0
        %v4199 = vadd.f32 %v4140, %v4198
        %4200 = vmatmul.bf16.gmra.mxu0 %v428
        %v4201 = vpop.f32.mrf.mxu0
        %v4202 = vadd.f32 %v4143, %v4201
        %v4203 = vpop.f32.mrf.mxu0
        %v4204 = vadd.f32 %v4145, %v4203
        %4205 = vmatmul.bf16.gmra.mxu0 %v431
        %v4206 = vpop.f32.mrf.mxu0
        %v4207 = vadd.f32 %v4148, %v4206
        %v4208 = vpop.f32.mrf.mxu0
        %v4209 = vadd.f32 %v4150, %v4208
        %4210 = vmatmul.bf16.gmra.mxu0 %v434
        %v4211 = vpop.f32.mrf.mxu0
        %v4212 = vadd.f32 %v4153, %v4211
        %v4213 = vpop.f32.mrf.mxu0
        %v4214 = vadd.f32 %v4155, %v4213
        %4215 = vdwg.mxu0
        %4216 = vmatpush.bf16.msra.mxu0 %v2338
        %4217 = vmatpush.bf16.msra.mxu0 %v2333
        %4218 = vmatpush.bf16.msra.mxu0 %v2328
        %4219 = vmatpush.bf16.msra.mxu0 %v2323
        %4220 = vmatpush.bf16.msra.mxu0 %v2318
        %4221 = vmatpush.bf16.msra.mxu0 %v2313
        %4222 = vmatpush.bf16.msra.mxu0 %v2308
        %4223 = vmatpush.bf16.msra.mxu0 %v2303
        %4224 = vmatmul.bf16.gmra.mxu0 %v408
        %v4225 = vpop.f32.mrf.mxu0
        %v4226 = vadd.f32 %v4167, %v4225
        %v4227 = vpop.f32.mrf.mxu0
        %v4228 = vadd.f32 %v4169, %v4227
        %4229 = vmatmul.bf16.gmra.mxu0 %v411
        %v4230 = vpop.f32.mrf.mxu0
        %v4231 = vadd.f32 %v4172, %v4230
        %v4232 = vpop.f32.mrf.mxu0
        %v4233 = vadd.f32 %v4174, %v4232
        %4234 = vmatmul.bf16.gmra.mxu0 %v414
        %v4235 = vpop.f32.mrf.mxu0
        %v4236 = vadd.f32 %v4177, %v4235
        %v4237 = vpop.f32.mrf.mxu0
        %v4238 = vadd.f32 %v4179, %v4237
        %4239 = vmatmul.bf16.gmra.mxu0 %v417
        %v4240 = vpop.f32.mrf.mxu0
        %v4241 = vadd.f32 %v4182, %v4240
        %v4242 = vpop.f32.mrf.mxu0
        %v4243 = vadd.f32 %v4184, %v4242
        %4244 = vmatmul.bf16.gmra.mxu0 %v420
        %v4245 = vpop.f32.mrf.mxu0
        %v4246 = vadd.f32 %v4187, %v4245
        %v4247 = vpop.f32.mrf.mxu0
        %v4248 = vadd.f32 %v4189, %v4247
        %4249 = vmatmul.bf16.gmra.mxu0 %v423
        %v4250 = vpop.f32.mrf.mxu0
        %v4251 = vadd.f32 %v4192, %v4250
        %v4252 = vpop.f32.mrf.mxu0
        %v4253 = vadd.f32 %v4194, %v4252
        %4254 = vmatmul.bf16.gmra.mxu0 %v426
        %v4255 = vpop.f32.mrf.mxu0
        %v4256 = vadd.f32 %v4197, %v4255
        %v4257 = vpop.f32.mrf.mxu0
        %v4258 = vadd.f32 %v4199, %v4257
        %4259 = vmatmul.bf16.gmra.mxu0 %v429
        %v4260 = vpop.f32.mrf.mxu0
        %v4261 = vadd.f32 %v4202, %v4260
        %v4262 = vpop.f32.mrf.mxu0
        %v4263 = vadd.f32 %v4204, %v4262
        %4264 = vmatmul.bf16.gmra.mxu0 %v432
        %v4265 = vpop.f32.mrf.mxu0
        %v4266 = vadd.f32 %v4207, %v4265
        %v4267 = vpop.f32.mrf.mxu0
        %v4268 = vadd.f32 %v4209, %v4267
        %4269 = vmatmul.bf16.gmra.mxu0 %v435
        %v4270 = vpop.f32.mrf.mxu0
        %v4271 = vadd.f32 %v4212, %v4270
        %v4272 = vpop.f32.mrf.mxu0
        %v4273 = vadd.f32 %v4214, %v4272
        %4274 = vdwg.mxu0
        %4275 = vmatpush.bf16.msra.mxu0 %v2378
        %4276 = vmatpush.bf16.msra.mxu0 %v2373
        %4277 = vmatpush.bf16.msra.mxu0 %v2368
        %4278 = vmatpush.bf16.msra.mxu0 %v2363
        %4279 = vmatpush.bf16.msra.mxu0 %v2358
        %4280 = vmatpush.bf16.msra.mxu0 %v2353
        %4281 = vmatpush.bf16.msra.mxu0 %v2348
        %4282 = vmatpush.bf16.msra.mxu0 %v2343
        %4283 = vmatmul.bf16.gmra.mxu0 %v409
        %v4284 = vpop.f32.mrf.mxu0
        %v4285 = vadd.f32 %v4226, %v4284
        %v4286 = vpop.f32.mrf.mxu0
        %v4287 = vadd.f32 %v4228, %v4286
        %4288 = vmatmul.bf16.gmra.mxu0 %v412
        %v4289 = vpop.f32.mrf.mxu0
        %v4290 = vadd.f32 %v4231, %v4289
        %v4291 = vpop.f32.mrf.mxu0
        %v4292 = vadd.f32 %v4233, %v4291
        %4293 = vmatmul.bf16.gmra.mxu0 %v415
        %v4294 = vpop.f32.mrf.mxu0
        %v4295 = vadd.f32 %v4236, %v4294
        %v4296 = vpop.f32.mrf.mxu0
        %v4297 = vadd.f32 %v4238, %v4296
        %4298 = vmatmul.bf16.gmra.mxu0 %v418
        %v4299 = vpop.f32.mrf.mxu0
        %v4300 = vadd.f32 %v4241, %v4299
        %v4301 = vpop.f32.mrf.mxu0
        %v4302 = vadd.f32 %v4243, %v4301
        %4303 = vmatmul.bf16.gmra.mxu0 %v421
        %v4304 = vpop.f32.mrf.mxu0
        %v4305 = vadd.f32 %v4246, %v4304
        %v4306 = vpop.f32.mrf.mxu0
        %v4307 = vadd.f32 %v4248, %v4306
        %4308 = vmatmul.bf16.gmra.mxu0 %v424
        %v4309 = vpop.f32.mrf.mxu0
        %v4310 = vadd.f32 %v4251, %v4309
        %v4311 = vpop.f32.mrf.mxu0
        %v4312 = vadd.f32 %v4253, %v4311
        %4313 = vmatmul.bf16.gmra.mxu0 %v427
        %v4314 = vpop.f32.mrf.mxu0
        %v4315 = vadd.f32 %v4256, %v4314
        %v4316 = vpop.f32.mrf.mxu0
        %v4317 = vadd.f32 %v4258, %v4316
        %4318 = vmatmul.bf16.gmra.mxu0 %v430
        %v4319 = vpop.f32.mrf.mxu0
        %v4320 = vadd.f32 %v4261, %v4319
        %v4321 = vpop.f32.mrf.mxu0
        %v4322 = vadd.f32 %v4263, %v4321
        %4323 = vmatmul.bf16.gmra.mxu0 %v433
        %v4324 = vpop.f32.mrf.mxu0
        %v4325 = vadd.f32 %v4266, %v4324
        %v4326 = vpop.f32.mrf.mxu0
        %v4327 = vadd.f32 %v4268, %v4326
        %4328 = vmatmul.bf16.gmra.mxu0 %v436
        %v4329 = vpop.f32.mrf.mxu0
        %v4330 = vadd.f32 %v4271, %v4329
        %v4331 = vpop.f32.mrf.mxu0
        %v4332 = vadd.f32 %v4273, %v4331
        %4333 = vdwg.mxu0
        %4334 = vmatpush.bf16.msra.mxu0 %v2059
        %4335 = vmatpush.bf16.msra.mxu0 %v2054
        %4336 = vmatpush.bf16.msra.mxu0 %v2049
        %4337 = vmatpush.bf16.msra.mxu0 %v2044
        %4338 = vmatpush.bf16.msra.mxu0 %v2039
        %4339 = vmatpush.bf16.msra.mxu0 %v2034
        %4340 = vmatpush.bf16.msra.mxu0 %v2029
        %4341 = vmatpush.bf16.msra.mxu0 %v2024
        %4342 = vmatmul.bf16.gmra.mxu0 %v401
        %v4343 = vpop.f32.mrf.mxu0
        %v4344 = vadd.f32 0.0, %v4343
        %v4345 = vpop.f32.mrf.mxu0
        %v4346 = vadd.f32 0.0, %v4345
        %4347 = vmatmul.bf16.gmra.mxu0 %v404
        %v4348 = vpop.f32.mrf.mxu0
        %v4349 = vadd.f32 0.0, %v4348
        %v4350 = vpop.f32.mrf.mxu0
        %v4351 = vadd.f32 0.0, %v4350
        %4352 = vmatmul.bf16.gmra.mxu0 %v407
        %v4353 = vpop.f32.mrf.mxu0
        %v4354 = vadd.f32 0.0, %v4353
        %v4355 = vpop.f32.mrf.mxu0
        %v4356 = vadd.f32 0.0, %v4355
        %4357 = vmatmul.bf16.gmra.mxu0 %v410
        %v4358 = vpop.f32.mrf.mxu0
        %v4359 = vadd.f32 0.0, %v4358
        %v4360 = vpop.f32.mrf.mxu0
        %v4361 = vadd.f32 0.0, %v4360
        %4362 = vmatmul.bf16.gmra.mxu0 %v413
        %v4363 = vpop.f32.mrf.mxu0
        %v4364 = vadd.f32 0.0, %v4363
        %v4365 = vpop.f32.mrf.mxu0
        %v4366 = vadd.f32 0.0, %v4365
        %4367 = vmatmul.bf16.gmra.mxu0 %v416
        %v4368 = vpop.f32.mrf.mxu0
        %v4369 = vadd.f32 0.0, %v4368
        %v4370 = vpop.f32.mrf.mxu0
        %v4371 = vadd.f32 0.0, %v4370
        %4372 = vmatmul.bf16.gmra.mxu0 %v419
        %v4373 = vpop.f32.mrf.mxu0
        %v4374 = vadd.f32 0.0, %v4373
        %v4375 = vpop.f32.mrf.mxu0
        %v4376 = vadd.f32 0.0, %v4375
        %4377 = vmatmul.bf16.gmra.mxu0 %v422
        %v4378 = vpop.f32.mrf.mxu0
        %v4379 = vadd.f32 0.0, %v4378
        %v4380 = vpop.f32.mrf.mxu0
        %v4381 = vadd.f32 0.0, %v4380
        %4382 = vmatmul.bf16.gmra.mxu0 %v425
        %v4383 = vpop.f32.mrf.mxu0
        %v4384 = vadd.f32 0.0, %v4383
        %v4385 = vpop.f32.mrf.mxu0
        %v4386 = vadd.f32 0.0, %v4385
        %4387 = vmatmul.bf16.gmra.mxu0 %v428
        %v4388 = vpop.f32.mrf.mxu0
        %v4389 = vadd.f32 0.0, %v4388
        %v4390 = vpop.f32.mrf.mxu0
        %v4391 = vadd.f32 0.0, %v4390
        %4392 = vdwg.mxu0
        %4393 = vmatpush.bf16.msra.mxu0 %v2099
        %4394 = vmatpush.bf16.msra.mxu0 %v2094
        %4395 = vmatpush.bf16.msra.mxu0 %v2089
        %4396 = vmatpush.bf16.msra.mxu0 %v2084
        %4397 = vmatpush.bf16.msra.mxu0 %v2079
        %4398 = vmatpush.bf16.msra.mxu0 %v2074
        %4399 = vmatpush.bf16.msra.mxu0 %v2069
        %4400 = vmatpush.bf16.msra.mxu0 %v2064
        %4401 = vmatmul.bf16.gmra.mxu0 %v402
        %v4402 = vpop.f32.mrf.mxu0
        %v4403 = vadd.f32 %v4344, %v4402
        %v4404 = vpop.f32.mrf.mxu0
        %v4405 = vadd.f32 %v4346, %v4404
        %4406 = vmatmul.bf16.gmra.mxu0 %v405
        %v4407 = vpop.f32.mrf.mxu0
        %v4408 = vadd.f32 %v4349, %v4407
        %v4409 = vpop.f32.mrf.mxu0
        %v4410 = vadd.f32 %v4351, %v4409
        %4411 = vmatmul.bf16.gmra.mxu0 %v408
        %v4412 = vpop.f32.mrf.mxu0
        %v4413 = vadd.f32 %v4354, %v4412
        %v4414 = vpop.f32.mrf.mxu0
        %v4415 = vadd.f32 %v4356, %v4414
        %4416 = vmatmul.bf16.gmra.mxu0 %v411
        %v4417 = vpop.f32.mrf.mxu0
        %v4418 = vadd.f32 %v4359, %v4417
        %v4419 = vpop.f32.mrf.mxu0
        %v4420 = vadd.f32 %v4361, %v4419
        %4421 = vmatmul.bf16.gmra.mxu0 %v414
        %v4422 = vpop.f32.mrf.mxu0
        %v4423 = vadd.f32 %v4364, %v4422
        %v4424 = vpop.f32.mrf.mxu0
        %v4425 = vadd.f32 %v4366, %v4424
        %4426 = vmatmul.bf16.gmra.mxu0 %v417
        %v4427 = vpop.f32.mrf.mxu0
        %v4428 = vadd.f32 %v4369, %v4427
        %v4429 = vpop.f32.mrf.mxu0
        %v4430 = vadd.f32 %v4371, %v4429
        %4431 = vmatmul.bf16.gmra.mxu0 %v420
        %v4432 = vpop.f32.mrf.mxu0
        %v4433 = vadd.f32 %v4374, %v4432
        %v4434 = vpop.f32.mrf.mxu0
        %v4435 = vadd.f32 %v4376, %v4434
        %4436 = vmatmul.bf16.gmra.mxu0 %v423
        %v4437 = vpop.f32.mrf.mxu0
        %v4438 = vadd.f32 %v4379, %v4437
        %v4439 = vpop.f32.mrf.mxu0
        %v4440 = vadd.f32 %v4381, %v4439
        %4441 = vmatmul.bf16.gmra.mxu0 %v426
        %v4442 = vpop.f32.mrf.mxu0
        %v4443 = vadd.f32 %v4384, %v4442
        %v4444 = vpop.f32.mrf.mxu0
        %v4445 = vadd.f32 %v4386, %v4444
        %4446 = vmatmul.bf16.gmra.mxu0 %v429
        %v4447 = vpop.f32.mrf.mxu0
        %v4448 = vadd.f32 %v4389, %v4447
        %v4449 = vpop.f32.mrf.mxu0
        %v4450 = vadd.f32 %v4391, %v4449
        %4451 = vdwg.mxu0
        %4452 = vmatpush.bf16.msra.mxu0 %v2139
        %4453 = vmatpush.bf16.msra.mxu0 %v2134
        %4454 = vmatpush.bf16.msra.mxu0 %v2129
        %4455 = vmatpush.bf16.msra.mxu0 %v2124
        %4456 = vmatpush.bf16.msra.mxu0 %v2119
        %4457 = vmatpush.bf16.msra.mxu0 %v2114
        %4458 = vmatpush.bf16.msra.mxu0 %v2109
        %4459 = vmatpush.bf16.msra.mxu0 %v2104
        %4460 = vmatmul.bf16.gmra.mxu0 %v403
        %v4461 = vpop.f32.mrf.mxu0
        %v4462 = vadd.f32 %v4403, %v4461
        %v4463 = vpop.f32.mrf.mxu0
        %v4464 = vadd.f32 %v4405, %v4463
        %4465 = vmatmul.bf16.gmra.mxu0 %v406
        %v4466 = vpop.f32.mrf.mxu0
        %v4467 = vadd.f32 %v4408, %v4466
        %v4468 = vpop.f32.mrf.mxu0
        %v4469 = vadd.f32 %v4410, %v4468
        %4470 = vmatmul.bf16.gmra.mxu0 %v409
        %v4471 = vpop.f32.mrf.mxu0
        %v4472 = vadd.f32 %v4413, %v4471
        %v4473 = vpop.f32.mrf.mxu0
        %v4474 = vadd.f32 %v4415, %v4473
        %4475 = vmatmul.bf16.gmra.mxu0 %v412
        %v4476 = vpop.f32.mrf.mxu0
        %v4477 = vadd.f32 %v4418, %v4476
        %v4478 = vpop.f32.mrf.mxu0
        %v4479 = vadd.f32 %v4420, %v4478
        %4480 = vmatmul.bf16.gmra.mxu0 %v415
        %v4481 = vpop.f32.mrf.mxu0
        %v4482 = vadd.f32 %v4423, %v4481
        %v4483 = vpop.f32.mrf.mxu0
        %v4484 = vadd.f32 %v4425, %v4483
        %4485 = vmatmul.bf16.gmra.mxu0 %v418
        %v4486 = vpop.f32.mrf.mxu0
        %v4487 = vadd.f32 %v4428, %v4486
        %v4488 = vpop.f32.mrf.mxu0
        %v4489 = vadd.f32 %v4430, %v4488
        %4490 = vmatmul.bf16.gmra.mxu0 %v421
        %v4491 = vpop.f32.mrf.mxu0
        %v4492 = vadd.f32 %v4433, %v4491
        %v4493 = vpop.f32.mrf.mxu0
        %v4494 = vadd.f32 %v4435, %v4493
        %4495 = vmatmul.bf16.gmra.mxu0 %v424
        %v4496 = vpop.f32.mrf.mxu0
        %v4497 = vadd.f32 %v4438, %v4496
        %v4498 = vpop.f32.mrf.mxu0
        %v4499 = vadd.f32 %v4440, %v4498
        %4500 = vmatmul.bf16.gmra.mxu0 %v427
        %v4501 = vpop.f32.mrf.mxu0
        %v4502 = vadd.f32 %v4443, %v4501
        %v4503 = vpop.f32.mrf.mxu0
        %v4504 = vadd.f32 %v4445, %v4503
        %4505 = vmatmul.bf16.gmra.mxu0 %v430
        %v4506 = vpop.f32.mrf.mxu0
        %v4507 = vadd.f32 %v4448, %v4506
        %v4508 = vpop.f32.mrf.mxu0
        %v4509 = vadd.f32 %v4450, %v4508
        %4510 = vdwg.mxu0
        %4511 = vmatpush.bf16.msra.mxu0 %v2179
        %4512 = vmatpush.bf16.msra.mxu0 %v2174
        %4513 = vmatpush.bf16.msra.mxu0 %v2169
        %4514 = vmatpush.bf16.msra.mxu0 %v2164
        %4515 = vmatpush.bf16.msra.mxu0 %v2159
        %4516 = vmatpush.bf16.msra.mxu0 %v2154
        %4517 = vmatpush.bf16.msra.mxu0 %v2149
        %4518 = vmatpush.bf16.msra.mxu0 %v2144
        %4519 = vmatmul.bf16.gmra.mxu0 %v404
        %v4520 = vpop.f32.mrf.mxu0
        %v4521 = vadd.f32 %v4462, %v4520
        %v4522 = vpop.f32.mrf.mxu0
        %v4523 = vadd.f32 %v4464, %v4522
        %4524 = vmatmul.bf16.gmra.mxu0 %v407
        %v4525 = vpop.f32.mrf.mxu0
        %v4526 = vadd.f32 %v4467, %v4525
        %v4527 = vpop.f32.mrf.mxu0
        %v4528 = vadd.f32 %v4469, %v4527
        %4529 = vmatmul.bf16.gmra.mxu0 %v410
        %v4530 = vpop.f32.mrf.mxu0
        %v4531 = vadd.f32 %v4472, %v4530
        %v4532 = vpop.f32.mrf.mxu0
        %v4533 = vadd.f32 %v4474, %v4532
        %4534 = vmatmul.bf16.gmra.mxu0 %v413
        %v4535 = vpop.f32.mrf.mxu0
        %v4536 = vadd.f32 %v4477, %v4535
        %v4537 = vpop.f32.mrf.mxu0
        %v4538 = vadd.f32 %v4479, %v4537
        %4539 = vmatmul.bf16.gmra.mxu0 %v416
        %v4540 = vpop.f32.mrf.mxu0
        %v4541 = vadd.f32 %v4482, %v4540
        %v4542 = vpop.f32.mrf.mxu0
        %v4543 = vadd.f32 %v4484, %v4542
        %4544 = vmatmul.bf16.gmra.mxu0 %v419
        %v4545 = vpop.f32.mrf.mxu0
        %v4546 = vadd.f32 %v4487, %v4545
        %v4547 = vpop.f32.mrf.mxu0
        %v4548 = vadd.f32 %v4489, %v4547
        %4549 = vmatmul.bf16.gmra.mxu0 %v422
        %v4550 = vpop.f32.mrf.mxu0
        %v4551 = vadd.f32 %v4492, %v4550
        %v4552 = vpop.f32.mrf.mxu0
        %v4553 = vadd.f32 %v4494, %v4552
        %4554 = vmatmul.bf16.gmra.mxu0 %v425
        %v4555 = vpop.f32.mrf.mxu0
        %v4556 = vadd.f32 %v4497, %v4555
        %v4557 = vpop.f32.mrf.mxu0
        %v4558 = vadd.f32 %v4499, %v4557
        %4559 = vmatmul.bf16.gmra.mxu0 %v428
        %v4560 = vpop.f32.mrf.mxu0
        %v4561 = vadd.f32 %v4502, %v4560
        %v4562 = vpop.f32.mrf.mxu0
        %v4563 = vadd.f32 %v4504, %v4562
        %4564 = vmatmul.bf16.gmra.mxu0 %v431
        %v4565 = vpop.f32.mrf.mxu0
        %v4566 = vadd.f32 %v4507, %v4565
        %v4567 = vpop.f32.mrf.mxu0
        %v4568 = vadd.f32 %v4509, %v4567
        %4569 = vdwg.mxu0
        %4570 = vmatpush.bf16.msra.mxu0 %v2219
        %4571 = vmatpush.bf16.msra.mxu0 %v2214
        %4572 = vmatpush.bf16.msra.mxu0 %v2209
        %4573 = vmatpush.bf16.msra.mxu0 %v2204
        %4574 = vmatpush.bf16.msra.mxu0 %v2199
        %4575 = vmatpush.bf16.msra.mxu0 %v2194
        %4576 = vmatpush.bf16.msra.mxu0 %v2189
        %4577 = vmatpush.bf16.msra.mxu0 %v2184
        %4578 = vmatmul.bf16.gmra.mxu0 %v405
        %v4579 = vpop.f32.mrf.mxu0
        %v4580 = vadd.f32 %v4521, %v4579
        %v4581 = vpop.f32.mrf.mxu0
        %v4582 = vadd.f32 %v4523, %v4581
        %4583 = vmatmul.bf16.gmra.mxu0 %v408
        %v4584 = vpop.f32.mrf.mxu0
        %v4585 = vadd.f32 %v4526, %v4584
        %v4586 = vpop.f32.mrf.mxu0
        %v4587 = vadd.f32 %v4528, %v4586
        %4588 = vmatmul.bf16.gmra.mxu0 %v411
        %v4589 = vpop.f32.mrf.mxu0
        %v4590 = vadd.f32 %v4531, %v4589
        %v4591 = vpop.f32.mrf.mxu0
        %v4592 = vadd.f32 %v4533, %v4591
        %4593 = vmatmul.bf16.gmra.mxu0 %v414
        %v4594 = vpop.f32.mrf.mxu0
        %v4595 = vadd.f32 %v4536, %v4594
        %v4596 = vpop.f32.mrf.mxu0
        %v4597 = vadd.f32 %v4538, %v4596
        %4598 = vmatmul.bf16.gmra.mxu0 %v417
        %v4599 = vpop.f32.mrf.mxu0
        %v4600 = vadd.f32 %v4541, %v4599
        %v4601 = vpop.f32.mrf.mxu0
        %v4602 = vadd.f32 %v4543, %v4601
        %4603 = vmatmul.bf16.gmra.mxu0 %v420
        %v4604 = vpop.f32.mrf.mxu0
        %v4605 = vadd.f32 %v4546, %v4604
        %v4606 = vpop.f32.mrf.mxu0
        %v4607 = vadd.f32 %v4548, %v4606
        %4608 = vmatmul.bf16.gmra.mxu0 %v423
        %v4609 = vpop.f32.mrf.mxu0
        %v4610 = vadd.f32 %v4551, %v4609
        %v4611 = vpop.f32.mrf.mxu0
        %v4612 = vadd.f32 %v4553, %v4611
        %4613 = vmatmul.bf16.gmra.mxu0 %v426
        %v4614 = vpop.f32.mrf.mxu0
        %v4615 = vadd.f32 %v4556, %v4614
        %v4616 = vpop.f32.mrf.mxu0
        %v4617 = vadd.f32 %v4558, %v4616
        %4618 = vmatmul.bf16.gmra.mxu0 %v429
        %v4619 = vpop.f32.mrf.mxu0
        %v4620 = vadd.f32 %v4561, %v4619
        %v4621 = vpop.f32.mrf.mxu0
        %v4622 = vadd.f32 %v4563, %v4621
        %4623 = vmatmul.bf16.gmra.mxu0 %v432
        %v4624 = vpop.f32.mrf.mxu0
        %v4625 = vadd.f32 %v4566, %v4624
        %v4626 = vpop.f32.mrf.mxu0
        %v4627 = vadd.f32 %v4568, %v4626
        %4628 = vdwg.mxu0
        %4629 = vmatpush.bf16.msra.mxu0 %v2259
        %4630 = vmatpush.bf16.msra.mxu0 %v2254
        %4631 = vmatpush.bf16.msra.mxu0 %v2249
        %4632 = vmatpush.bf16.msra.mxu0 %v2244
        %4633 = vmatpush.bf16.msra.mxu0 %v2239
        %4634 = vmatpush.bf16.msra.mxu0 %v2234
        %4635 = vmatpush.bf16.msra.mxu0 %v2229
        %4636 = vmatpush.bf16.msra.mxu0 %v2224
        %4637 = vmatmul.bf16.gmra.mxu0 %v406
        %v4638 = vpop.f32.mrf.mxu0
        %v4639 = vadd.f32 %v4580, %v4638
        %v4640 = vpop.f32.mrf.mxu0
        %v4641 = vadd.f32 %v4582, %v4640
        %4642 = vmatmul.bf16.gmra.mxu0 %v409
        %v4643 = vpop.f32.mrf.mxu0
        %v4644 = vadd.f32 %v4585, %v4643
        %v4645 = vpop.f32.mrf.mxu0
        %v4646 = vadd.f32 %v4587, %v4645
        %4647 = vmatmul.bf16.gmra.mxu0 %v412
        %v4648 = vpop.f32.mrf.mxu0
        %v4649 = vadd.f32 %v4590, %v4648
        %v4650 = vpop.f32.mrf.mxu0
        %v4651 = vadd.f32 %v4592, %v4650
        %4652 = vmatmul.bf16.gmra.mxu0 %v415
        %v4653 = vpop.f32.mrf.mxu0
        %v4654 = vadd.f32 %v4595, %v4653
        %v4655 = vpop.f32.mrf.mxu0
        %v4656 = vadd.f32 %v4597, %v4655
        %4657 = vmatmul.bf16.gmra.mxu0 %v418
        %v4658 = vpop.f32.mrf.mxu0
        %v4659 = vadd.f32 %v4600, %v4658
        %v4660 = vpop.f32.mrf.mxu0
        %v4661 = vadd.f32 %v4602, %v4660
        %4662 = vmatmul.bf16.gmra.mxu0 %v421
        %v4663 = vpop.f32.mrf.mxu0
        %v4664 = vadd.f32 %v4605, %v4663
        %v4665 = vpop.f32.mrf.mxu0
        %v4666 = vadd.f32 %v4607, %v4665
        %4667 = vmatmul.bf16.gmra.mxu0 %v424
        %v4668 = vpop.f32.mrf.mxu0
        %v4669 = vadd.f32 %v4610, %v4668
        %v4670 = vpop.f32.mrf.mxu0
        %v4671 = vadd.f32 %v4612, %v4670
        %4672 = vmatmul.bf16.gmra.mxu0 %v427
        %v4673 = vpop.f32.mrf.mxu0
        %v4674 = vadd.f32 %v4615, %v4673
        %v4675 = vpop.f32.mrf.mxu0
        %v4676 = vadd.f32 %v4617, %v4675
        %4677 = vmatmul.bf16.gmra.mxu0 %v430
        %v4678 = vpop.f32.mrf.mxu0
        %v4679 = vadd.f32 %v4620, %v4678
        %v4680 = vpop.f32.mrf.mxu0
        %v4681 = vadd.f32 %v4622, %v4680
        %4682 = vmatmul.bf16.gmra.mxu0 %v433
        %v4683 = vpop.f32.mrf.mxu0
        %v4684 = vadd.f32 %v4625, %v4683
        %v4685 = vpop.f32.mrf.mxu0
        %v4686 = vadd.f32 %v4627, %v4685
        %4687 = vdwg.mxu0
        %4688 = vmatpush.bf16.msra.mxu0 %v2299
        %4689 = vmatpush.bf16.msra.mxu0 %v2294
        %4690 = vmatpush.bf16.msra.mxu0 %v2289
        %4691 = vmatpush.bf16.msra.mxu0 %v2284
        %4692 = vmatpush.bf16.msra.mxu0 %v2279
        %4693 = vmatpush.bf16.msra.mxu0 %v2274
        %4694 = vmatpush.bf16.msra.mxu0 %v2269
        %4695 = vmatpush.bf16.msra.mxu0 %v2264
        %4696 = vmatmul.bf16.gmra.mxu0 %v407
        %v4697 = vpop.f32.mrf.mxu0
        %v4698 = vadd.f32 %v4639, %v4697
        %v4699 = vpop.f32.mrf.mxu0
        %v4700 = vadd.f32 %v4641, %v4699
        %4701 = vmatmul.bf16.gmra.mxu0 %v410
        %v4702 = vpop.f32.mrf.mxu0
        %v4703 = vadd.f32 %v4644, %v4702
        %v4704 = vpop.f32.mrf.mxu0
        %v4705 = vadd.f32 %v4646, %v4704
        %4706 = vmatmul.bf16.gmra.mxu0 %v413
        %v4707 = vpop.f32.mrf.mxu0
        %v4708 = vadd.f32 %v4649, %v4707
        %v4709 = vpop.f32.mrf.mxu0
        %v4710 = vadd.f32 %v4651, %v4709
        %4711 = vmatmul.bf16.gmra.mxu0 %v416
        %v4712 = vpop.f32.mrf.mxu0
        %v4713 = vadd.f32 %v4654, %v4712
        %v4714 = vpop.f32.mrf.mxu0
        %v4715 = vadd.f32 %v4656, %v4714
        %4716 = vmatmul.bf16.gmra.mxu0 %v419
        %v4717 = vpop.f32.mrf.mxu0
        %v4718 = vadd.f32 %v4659, %v4717
        %v4719 = vpop.f32.mrf.mxu0
        %v4720 = vadd.f32 %v4661, %v4719
        %4721 = vmatmul.bf16.gmra.mxu0 %v422
        %v4722 = vpop.f32.mrf.mxu0
        %v4723 = vadd.f32 %v4664, %v4722
        %v4724 = vpop.f32.mrf.mxu0
        %v4725 = vadd.f32 %v4666, %v4724
        %4726 = vmatmul.bf16.gmra.mxu0 %v425
        %v4727 = vpop.f32.mrf.mxu0
        %v4728 = vadd.f32 %v4669, %v4727
        %v4729 = vpop.f32.mrf.mxu0
        %v4730 = vadd.f32 %v4671, %v4729
        %4731 = vmatmul.bf16.gmra.mxu0 %v428
        %v4732 = vpop.f32.mrf.mxu0
        %v4733 = vadd.f32 %v4674, %v4732
        %v4734 = vpop.f32.mrf.mxu0
        %v4735 = vadd.f32 %v4676, %v4734
        %4736 = vmatmul.bf16.gmra.mxu0 %v431
        %v4737 = vpop.f32.mrf.mxu0
        %v4738 = vadd.f32 %v4679, %v4737
        %v4739 = vpop.f32.mrf.mxu0
        %v4740 = vadd.f32 %v4681, %v4739
        %4741 = vmatmul.bf16.gmra.mxu0 %v434
        %v4742 = vpop.f32.mrf.mxu0
        %v4743 = vadd.f32 %v4684, %v4742
        %v4744 = vpop.f32.mrf.mxu0
        %v4745 = vadd.f32 %v4686, %v4744
        %4746 = vdwg.mxu0
        %4747 = vmatpush.bf16.msra.mxu0 %v2339
        %4748 = vmatpush.bf16.msra.mxu0 %v2334
        %4749 = vmatpush.bf16.msra.mxu0 %v2329
        %4750 = vmatpush.bf16.msra.mxu0 %v2324
        %4751 = vmatpush.bf16.msra.mxu0 %v2319
        %4752 = vmatpush.bf16.msra.mxu0 %v2314
        %4753 = vmatpush.bf16.msra.mxu0 %v2309
        %4754 = vmatpush.bf16.msra.mxu0 %v2304
        %4755 = vmatmul.bf16.gmra.mxu0 %v408
        %v4756 = vpop.f32.mrf.mxu0
        %v4757 = vadd.f32 %v4698, %v4756
        %v4758 = vpop.f32.mrf.mxu0
        %v4759 = vadd.f32 %v4700, %v4758
        %4760 = vmatmul.bf16.gmra.mxu0 %v411
        %v4761 = vpop.f32.mrf.mxu0
        %v4762 = vadd.f32 %v4703, %v4761
        %v4763 = vpop.f32.mrf.mxu0
        %v4764 = vadd.f32 %v4705, %v4763
        %4765 = vmatmul.bf16.gmra.mxu0 %v414
        %v4766 = vpop.f32.mrf.mxu0
        %v4767 = vadd.f32 %v4708, %v4766
        %v4768 = vpop.f32.mrf.mxu0
        %v4769 = vadd.f32 %v4710, %v4768
        %4770 = vmatmul.bf16.gmra.mxu0 %v417
        %v4771 = vpop.f32.mrf.mxu0
        %v4772 = vadd.f32 %v4713, %v4771
        %v4773 = vpop.f32.mrf.mxu0
        %v4774 = vadd.f32 %v4715, %v4773
        %4775 = vmatmul.bf16.gmra.mxu0 %v420
        %v4776 = vpop.f32.mrf.mxu0
        %v4777 = vadd.f32 %v4718, %v4776
        %v4778 = vpop.f32.mrf.mxu0
        %v4779 = vadd.f32 %v4720, %v4778
        %4780 = vmatmul.bf16.gmra.mxu0 %v423
        %v4781 = vpop.f32.mrf.mxu0
        %v4782 = vadd.f32 %v4723, %v4781
        %v4783 = vpop.f32.mrf.mxu0
        %v4784 = vadd.f32 %v4725, %v4783
        %4785 = vmatmul.bf16.gmra.mxu0 %v426
        %v4786 = vpop.f32.mrf.mxu0
        %v4787 = vadd.f32 %v4728, %v4786
        %v4788 = vpop.f32.mrf.mxu0
        %v4789 = vadd.f32 %v4730, %v4788
        %4790 = vmatmul.bf16.gmra.mxu0 %v429
        %v4791 = vpop.f32.mrf.mxu0
        %v4792 = vadd.f32 %v4733, %v4791
        %v4793 = vpop.f32.mrf.mxu0
        %v4794 = vadd.f32 %v4735, %v4793
        %4795 = vmatmul.bf16.gmra.mxu0 %v432
        %v4796 = vpop.f32.mrf.mxu0
        %v4797 = vadd.f32 %v4738, %v4796
        %v4798 = vpop.f32.mrf.mxu0
        %v4799 = vadd.f32 %v4740, %v4798
        %4800 = vmatmul.bf16.gmra.mxu0 %v435
        %v4801 = vpop.f32.mrf.mxu0
        %v4802 = vadd.f32 %v4743, %v4801
        %v4803 = vpop.f32.mrf.mxu0
        %v4804 = vadd.f32 %v4745, %v4803
        %4805 = vdwg.mxu0
        %4806 = vmatpush.bf16.msra.mxu0 %v2379
        %4807 = vmatpush.bf16.msra.mxu0 %v2374
        %4808 = vmatpush.bf16.msra.mxu0 %v2369
        %4809 = vmatpush.bf16.msra.mxu0 %v2364
        %4810 = vmatpush.bf16.msra.mxu0 %v2359
        %4811 = vmatpush.bf16.msra.mxu0 %v2354
        %4812 = vmatpush.bf16.msra.mxu0 %v2349
        %4813 = vmatpush.bf16.msra.mxu0 %v2344
        %4814 = vmatmul.bf16.gmra.mxu0 %v409
        %v4815 = vpop.f32.mrf.mxu0
        %v4816 = vadd.f32 %v4757, %v4815
        %v4817 = vpop.f32.mrf.mxu0
        %v4818 = vadd.f32 %v4759, %v4817
        %4819 = vmatmul.bf16.gmra.mxu0 %v412
        %v4820 = vpop.f32.mrf.mxu0
        %v4821 = vadd.f32 %v4762, %v4820
        %v4822 = vpop.f32.mrf.mxu0
        %v4823 = vadd.f32 %v4764, %v4822
        %4824 = vmatmul.bf16.gmra.mxu0 %v415
        %v4825 = vpop.f32.mrf.mxu0
        %v4826 = vadd.f32 %v4767, %v4825
        %v4827 = vpop.f32.mrf.mxu0
        %v4828 = vadd.f32 %v4769, %v4827
        %4829 = vmatmul.bf16.gmra.mxu0 %v418
        %v4830 = vpop.f32.mrf.mxu0
        %v4831 = vadd.f32 %v4772, %v4830
        %v4832 = vpop.f32.mrf.mxu0
        %v4833 = vadd.f32 %v4774, %v4832
        %4834 = vmatmul.bf16.gmra.mxu0 %v421
        %v4835 = vpop.f32.mrf.mxu0
        %v4836 = vadd.f32 %v4777, %v4835
        %v4837 = vpop.f32.mrf.mxu0
        %v4838 = vadd.f32 %v4779, %v4837
        %4839 = vmatmul.bf16.gmra.mxu0 %v424
        %v4840 = vpop.f32.mrf.mxu0
        %v4841 = vadd.f32 %v4782, %v4840
        %v4842 = vpop.f32.mrf.mxu0
        %v4843 = vadd.f32 %v4784, %v4842
        %4844 = vmatmul.bf16.gmra.mxu0 %v427
        %v4845 = vpop.f32.mrf.mxu0
        %v4846 = vadd.f32 %v4787, %v4845
        %v4847 = vpop.f32.mrf.mxu0
        %v4848 = vadd.f32 %v4789, %v4847
        %4849 = vmatmul.bf16.gmra.mxu0 %v430
        %v4850 = vpop.f32.mrf.mxu0
        %v4851 = vadd.f32 %v4792, %v4850
        %v4852 = vpop.f32.mrf.mxu0
        %v4853 = vadd.f32 %v4794, %v4852
        %4854 = vmatmul.bf16.gmra.mxu0 %v433
        %v4855 = vpop.f32.mrf.mxu0
        %v4856 = vadd.f32 %v4797, %v4855
        %v4857 = vpop.f32.mrf.mxu0
        %v4858 = vadd.f32 %v4799, %v4857
        %4859 = vmatmul.bf16.gmra.mxu0 %v436
        %v4860 = vpop.f32.mrf.mxu0
        %v4861 = vadd.f32 %v4802, %v4860
        %v4862 = vpop.f32.mrf.mxu0
        %v4863 = vadd.f32 %v4804, %v4862
        %4864 = vdwg.mxu0
        %4865 = vmatpush.bf16.msra.mxu0 %v2060
        %4866 = vmatpush.bf16.msra.mxu0 %v2055
        %4867 = vmatpush.bf16.msra.mxu0 %v2050
        %4868 = vmatpush.bf16.msra.mxu0 %v2045
        %4869 = vmatpush.bf16.msra.mxu0 %v2040
        %4870 = vmatpush.bf16.msra.mxu0 %v2035
        %4871 = vmatpush.bf16.msra.mxu0 %v2030
        %4872 = vmatpush.bf16.msra.mxu0 %v2025
        %4873 = vmatmul.bf16.gmra.mxu0 %v401
        %v4874 = vpop.f32.mrf.mxu0
        %v4875 = vadd.f32 0.0, %v4874
        %v4876 = vpop.f32.mrf.mxu0
        %v4877 = vadd.f32 0.0, %v4876
        %4878 = vmatmul.bf16.gmra.mxu0 %v404
        %v4879 = vpop.f32.mrf.mxu0
        %v4880 = vadd.f32 0.0, %v4879
        %v4881 = vpop.f32.mrf.mxu0
        %v4882 = vadd.f32 0.0, %v4881
        %4883 = vmatmul.bf16.gmra.mxu0 %v407
        %v4884 = vpop.f32.mrf.mxu0
        %v4885 = vadd.f32 0.0, %v4884
        %v4886 = vpop.f32.mrf.mxu0
        %v4887 = vadd.f32 0.0, %v4886
        %4888 = vmatmul.bf16.gmra.mxu0 %v410
        %v4889 = vpop.f32.mrf.mxu0
        %v4890 = vadd.f32 0.0, %v4889
        %v4891 = vpop.f32.mrf.mxu0
        %v4892 = vadd.f32 0.0, %v4891
        %4893 = vmatmul.bf16.gmra.mxu0 %v413
        %v4894 = vpop.f32.mrf.mxu0
        %v4895 = vadd.f32 0.0, %v4894
        %v4896 = vpop.f32.mrf.mxu0
        %v4897 = vadd.f32 0.0, %v4896
        %4898 = vmatmul.bf16.gmra.mxu0 %v416
        %v4899 = vpop.f32.mrf.mxu0
        %v4900 = vadd.f32 0.0, %v4899
        %v4901 = vpop.f32.mrf.mxu0
        %v4902 = vadd.f32 0.0, %v4901
        %4903 = vmatmul.bf16.gmra.mxu0 %v419
        %v4904 = vpop.f32.mrf.mxu0
        %v4905 = vadd.f32 0.0, %v4904
        %v4906 = vpop.f32.mrf.mxu0
        %v4907 = vadd.f32 0.0, %v4906
        %4908 = vmatmul.bf16.gmra.mxu0 %v422
        %v4909 = vpop.f32.mrf.mxu0
        %v4910 = vadd.f32 0.0, %v4909
        %v4911 = vpop.f32.mrf.mxu0
        %v4912 = vadd.f32 0.0, %v4911
        %4913 = vmatmul.bf16.gmra.mxu0 %v425
        %v4914 = vpop.f32.mrf.mxu0
        %v4915 = vadd.f32 0.0, %v4914
        %v4916 = vpop.f32.mrf.mxu0
        %v4917 = vadd.f32 0.0, %v4916
        %4918 = vmatmul.bf16.gmra.mxu0 %v428
        %v4919 = vpop.f32.mrf.mxu0
        %v4920 = vadd.f32 0.0, %v4919
        %v4921 = vpop.f32.mrf.mxu0
        %v4922 = vadd.f32 0.0, %v4921
        %4923 = vdwg.mxu0
        %4924 = vmatpush.bf16.msra.mxu0 %v2100
        %4925 = vmatpush.bf16.msra.mxu0 %v2095
        %4926 = vmatpush.bf16.msra.mxu0 %v2090
        %4927 = vmatpush.bf16.msra.mxu0 %v2085
        %4928 = vmatpush.bf16.msra.mxu0 %v2080
        %4929 = vmatpush.bf16.msra.mxu0 %v2075
        %4930 = vmatpush.bf16.msra.mxu0 %v2070
        %4931 = vmatpush.bf16.msra.mxu0 %v2065
        %4932 = vmatmul.bf16.gmra.mxu0 %v402
        %v4933 = vpop.f32.mrf.mxu0
        %v4934 = vadd.f32 %v4875, %v4933
        %v4935 = vpop.f32.mrf.mxu0
        %v4936 = vadd.f32 %v4877, %v4935
        %4937 = vmatmul.bf16.gmra.mxu0 %v405
        %v4938 = vpop.f32.mrf.mxu0
        %v4939 = vadd.f32 %v4880, %v4938
        %v4940 = vpop.f32.mrf.mxu0
        %v4941 = vadd.f32 %v4882, %v4940
        %4942 = vmatmul.bf16.gmra.mxu0 %v408
        %v4943 = vpop.f32.mrf.mxu0
        %v4944 = vadd.f32 %v4885, %v4943
        %v4945 = vpop.f32.mrf.mxu0
        %v4946 = vadd.f32 %v4887, %v4945
        %4947 = vmatmul.bf16.gmra.mxu0 %v411
        %v4948 = vpop.f32.mrf.mxu0
        %v4949 = vadd.f32 %v4890, %v4948
        %v4950 = vpop.f32.mrf.mxu0
        %v4951 = vadd.f32 %v4892, %v4950
        %4952 = vmatmul.bf16.gmra.mxu0 %v414
        %v4953 = vpop.f32.mrf.mxu0
        %v4954 = vadd.f32 %v4895, %v4953
        %v4955 = vpop.f32.mrf.mxu0
        %v4956 = vadd.f32 %v4897, %v4955
        %4957 = vmatmul.bf16.gmra.mxu0 %v417
        %v4958 = vpop.f32.mrf.mxu0
        %v4959 = vadd.f32 %v4900, %v4958
        %v4960 = vpop.f32.mrf.mxu0
        %v4961 = vadd.f32 %v4902, %v4960
        %4962 = vmatmul.bf16.gmra.mxu0 %v420
        %v4963 = vpop.f32.mrf.mxu0
        %v4964 = vadd.f32 %v4905, %v4963
        %v4965 = vpop.f32.mrf.mxu0
        %v4966 = vadd.f32 %v4907, %v4965
        %4967 = vmatmul.bf16.gmra.mxu0 %v423
        %v4968 = vpop.f32.mrf.mxu0
        %v4969 = vadd.f32 %v4910, %v4968
        %v4970 = vpop.f32.mrf.mxu0
        %v4971 = vadd.f32 %v4912, %v4970
        %4972 = vmatmul.bf16.gmra.mxu0 %v426
        %v4973 = vpop.f32.mrf.mxu0
        %v4974 = vadd.f32 %v4915, %v4973
        %v4975 = vpop.f32.mrf.mxu0
        %v4976 = vadd.f32 %v4917, %v4975
        %4977 = vmatmul.bf16.gmra.mxu0 %v429
        %v4978 = vpop.f32.mrf.mxu0
        %v4979 = vadd.f32 %v4920, %v4978
        %v4980 = vpop.f32.mrf.mxu0
        %v4981 = vadd.f32 %v4922, %v4980
        %4982 = vdwg.mxu0
        %4983 = vmatpush.bf16.msra.mxu0 %v2140
        %4984 = vmatpush.bf16.msra.mxu0 %v2135
        %4985 = vmatpush.bf16.msra.mxu0 %v2130
        %4986 = vmatpush.bf16.msra.mxu0 %v2125
        %4987 = vmatpush.bf16.msra.mxu0 %v2120
        %4988 = vmatpush.bf16.msra.mxu0 %v2115
        %4989 = vmatpush.bf16.msra.mxu0 %v2110
        %4990 = vmatpush.bf16.msra.mxu0 %v2105
        %4991 = vmatmul.bf16.gmra.mxu0 %v403
        %v4992 = vpop.f32.mrf.mxu0
        %v4993 = vadd.f32 %v4934, %v4992
        %v4994 = vpop.f32.mrf.mxu0
        %v4995 = vadd.f32 %v4936, %v4994
        %4996 = vmatmul.bf16.gmra.mxu0 %v406
        %v4997 = vpop.f32.mrf.mxu0
        %v4998 = vadd.f32 %v4939, %v4997
        %v4999 = vpop.f32.mrf.mxu0
        %v5000 = vadd.f32 %v4941, %v4999
        %5001 = vmatmul.bf16.gmra.mxu0 %v409
        %v5002 = vpop.f32.mrf.mxu0
        %v5003 = vadd.f32 %v4944, %v5002
        %v5004 = vpop.f32.mrf.mxu0
        %v5005 = vadd.f32 %v4946, %v5004
        %5006 = vmatmul.bf16.gmra.mxu0 %v412
        %v5007 = vpop.f32.mrf.mxu0
        %v5008 = vadd.f32 %v4949, %v5007
        %v5009 = vpop.f32.mrf.mxu0
        %v5010 = vadd.f32 %v4951, %v5009
        %5011 = vmatmul.bf16.gmra.mxu0 %v415
        %v5012 = vpop.f32.mrf.mxu0
        %v5013 = vadd.f32 %v4954, %v5012
        %v5014 = vpop.f32.mrf.mxu0
        %v5015 = vadd.f32 %v4956, %v5014
        %5016 = vmatmul.bf16.gmra.mxu0 %v418
        %v5017 = vpop.f32.mrf.mxu0
        %v5018 = vadd.f32 %v4959, %v5017
        %v5019 = vpop.f32.mrf.mxu0
        %v5020 = vadd.f32 %v4961, %v5019
        %5021 = vmatmul.bf16.gmra.mxu0 %v421
        %v5022 = vpop.f32.mrf.mxu0
        %v5023 = vadd.f32 %v4964, %v5022
        %v5024 = vpop.f32.mrf.mxu0
        %v5025 = vadd.f32 %v4966, %v5024
        %5026 = vmatmul.bf16.gmra.mxu0 %v424
        %v5027 = vpop.f32.mrf.mxu0
        %v5028 = vadd.f32 %v4969, %v5027
        %v5029 = vpop.f32.mrf.mxu0
        %v5030 = vadd.f32 %v4971, %v5029
        %5031 = vmatmul.bf16.gmra.mxu0 %v427
        %v5032 = vpop.f32.mrf.mxu0
        %v5033 = vadd.f32 %v4974, %v5032
        %v5034 = vpop.f32.mrf.mxu0
        %v5035 = vadd.f32 %v4976, %v5034
        %5036 = vmatmul.bf16.gmra.mxu0 %v430
        %v5037 = vpop.f32.mrf.mxu0
        %v5038 = vadd.f32 %v4979, %v5037
        %v5039 = vpop.f32.mrf.mxu0
        %v5040 = vadd.f32 %v4981, %v5039
        %5041 = vdwg.mxu0
        %5042 = vmatpush.bf16.msra.mxu0 %v2180
        %5043 = vmatpush.bf16.msra.mxu0 %v2175
        %5044 = vmatpush.bf16.msra.mxu0 %v2170
        %5045 = vmatpush.bf16.msra.mxu0 %v2165
        %5046 = vmatpush.bf16.msra.mxu0 %v2160
        %5047 = vmatpush.bf16.msra.mxu0 %v2155
        %5048 = vmatpush.bf16.msra.mxu0 %v2150
        %5049 = vmatpush.bf16.msra.mxu0 %v2145
        %5050 = vmatmul.bf16.gmra.mxu0 %v404
        %v5051 = vpop.f32.mrf.mxu0
        %v5052 = vadd.f32 %v4993, %v5051
        %v5053 = vpop.f32.mrf.mxu0
        %v5054 = vadd.f32 %v4995, %v5053
        %5055 = vmatmul.bf16.gmra.mxu0 %v407
        %v5056 = vpop.f32.mrf.mxu0
        %v5057 = vadd.f32 %v4998, %v5056
        %v5058 = vpop.f32.mrf.mxu0
        %v5059 = vadd.f32 %v5000, %v5058
        %5060 = vmatmul.bf16.gmra.mxu0 %v410
        %v5061 = vpop.f32.mrf.mxu0
        %v5062 = vadd.f32 %v5003, %v5061
        %v5063 = vpop.f32.mrf.mxu0
        %v5064 = vadd.f32 %v5005, %v5063
        %5065 = vmatmul.bf16.gmra.mxu0 %v413
        %v5066 = vpop.f32.mrf.mxu0
        %v5067 = vadd.f32 %v5008, %v5066
        %v5068 = vpop.f32.mrf.mxu0
        %v5069 = vadd.f32 %v5010, %v5068
        %5070 = vmatmul.bf16.gmra.mxu0 %v416
        %v5071 = vpop.f32.mrf.mxu0
        %v5072 = vadd.f32 %v5013, %v5071
        %v5073 = vpop.f32.mrf.mxu0
        %v5074 = vadd.f32 %v5015, %v5073
        %5075 = vmatmul.bf16.gmra.mxu0 %v419
        %v5076 = vpop.f32.mrf.mxu0
        %v5077 = vadd.f32 %v5018, %v5076
        %v5078 = vpop.f32.mrf.mxu0
        %v5079 = vadd.f32 %v5020, %v5078
        %5080 = vmatmul.bf16.gmra.mxu0 %v422
        %v5081 = vpop.f32.mrf.mxu0
        %v5082 = vadd.f32 %v5023, %v5081
        %v5083 = vpop.f32.mrf.mxu0
        %v5084 = vadd.f32 %v5025, %v5083
        %5085 = vmatmul.bf16.gmra.mxu0 %v425
        %v5086 = vpop.f32.mrf.mxu0
        %v5087 = vadd.f32 %v5028, %v5086
        %v5088 = vpop.f32.mrf.mxu0
        %v5089 = vadd.f32 %v5030, %v5088
        %5090 = vmatmul.bf16.gmra.mxu0 %v428
        %v5091 = vpop.f32.mrf.mxu0
        %v5092 = vadd.f32 %v5033, %v5091
        %v5093 = vpop.f32.mrf.mxu0
        %v5094 = vadd.f32 %v5035, %v5093
        %5095 = vmatmul.bf16.gmra.mxu0 %v431
        %v5096 = vpop.f32.mrf.mxu0
        %v5097 = vadd.f32 %v5038, %v5096
        %v5098 = vpop.f32.mrf.mxu0
        %v5099 = vadd.f32 %v5040, %v5098
        %5100 = vdwg.mxu0
        %5101 = vmatpush.bf16.msra.mxu0 %v2220
        %5102 = vmatpush.bf16.msra.mxu0 %v2215
        %5103 = vmatpush.bf16.msra.mxu0 %v2210
        %5104 = vmatpush.bf16.msra.mxu0 %v2205
        %5105 = vmatpush.bf16.msra.mxu0 %v2200
        %5106 = vmatpush.bf16.msra.mxu0 %v2195
        %5107 = vmatpush.bf16.msra.mxu0 %v2190
        %5108 = vmatpush.bf16.msra.mxu0 %v2185
        %5109 = vmatmul.bf16.gmra.mxu0 %v405
        %v5110 = vpop.f32.mrf.mxu0
        %v5111 = vadd.f32 %v5052, %v5110
        %v5112 = vpop.f32.mrf.mxu0
        %v5113 = vadd.f32 %v5054, %v5112
        %5114 = vmatmul.bf16.gmra.mxu0 %v408
        %v5115 = vpop.f32.mrf.mxu0
        %v5116 = vadd.f32 %v5057, %v5115
        %v5117 = vpop.f32.mrf.mxu0
        %v5118 = vadd.f32 %v5059, %v5117
        %5119 = vmatmul.bf16.gmra.mxu0 %v411
        %v5120 = vpop.f32.mrf.mxu0
        %v5121 = vadd.f32 %v5062, %v5120
        %v5122 = vpop.f32.mrf.mxu0
        %v5123 = vadd.f32 %v5064, %v5122
        %5124 = vmatmul.bf16.gmra.mxu0 %v414
        %v5125 = vpop.f32.mrf.mxu0
        %v5126 = vadd.f32 %v5067, %v5125
        %v5127 = vpop.f32.mrf.mxu0
        %v5128 = vadd.f32 %v5069, %v5127
        %5129 = vmatmul.bf16.gmra.mxu0 %v417
        %v5130 = vpop.f32.mrf.mxu0
        %v5131 = vadd.f32 %v5072, %v5130
        %v5132 = vpop.f32.mrf.mxu0
        %v5133 = vadd.f32 %v5074, %v5132
        %5134 = vmatmul.bf16.gmra.mxu0 %v420
        %v5135 = vpop.f32.mrf.mxu0
        %v5136 = vadd.f32 %v5077, %v5135
        %v5137 = vpop.f32.mrf.mxu0
        %v5138 = vadd.f32 %v5079, %v5137
        %5139 = vmatmul.bf16.gmra.mxu0 %v423
        %v5140 = vpop.f32.mrf.mxu0
        %v5141 = vadd.f32 %v5082, %v5140
        %v5142 = vpop.f32.mrf.mxu0
        %v5143 = vadd.f32 %v5084, %v5142
        %5144 = vmatmul.bf16.gmra.mxu0 %v426
        %v5145 = vpop.f32.mrf.mxu0
        %v5146 = vadd.f32 %v5087, %v5145
        %v5147 = vpop.f32.mrf.mxu0
        %v5148 = vadd.f32 %v5089, %v5147
        %5149 = vmatmul.bf16.gmra.mxu0 %v429
        %v5150 = vpop.f32.mrf.mxu0
        %v5151 = vadd.f32 %v5092, %v5150
        %v5152 = vpop.f32.mrf.mxu0
        %v5153 = vadd.f32 %v5094, %v5152
        %5154 = vmatmul.bf16.gmra.mxu0 %v432
        %v5155 = vpop.f32.mrf.mxu0
        %v5156 = vadd.f32 %v5097, %v5155
        %v5157 = vpop.f32.mrf.mxu0
        %v5158 = vadd.f32 %v5099, %v5157
        %5159 = vdwg.mxu0
        %5160 = vmatpush.bf16.msra.mxu0 %v2260
        %5161 = vmatpush.bf16.msra.mxu0 %v2255
        %5162 = vmatpush.bf16.msra.mxu0 %v2250
        %5163 = vmatpush.bf16.msra.mxu0 %v2245
        %5164 = vmatpush.bf16.msra.mxu0 %v2240
        %5165 = vmatpush.bf16.msra.mxu0 %v2235
        %5166 = vmatpush.bf16.msra.mxu0 %v2230
        %5167 = vmatpush.bf16.msra.mxu0 %v2225
        %5168 = vmatmul.bf16.gmra.mxu0 %v406
        %v5169 = vpop.f32.mrf.mxu0
        %v5170 = vadd.f32 %v5111, %v5169
        %v5171 = vpop.f32.mrf.mxu0
        %v5172 = vadd.f32 %v5113, %v5171
        %5173 = vmatmul.bf16.gmra.mxu0 %v409
        %v5174 = vpop.f32.mrf.mxu0
        %v5175 = vadd.f32 %v5116, %v5174
        %v5176 = vpop.f32.mrf.mxu0
        %v5177 = vadd.f32 %v5118, %v5176
        %5178 = vmatmul.bf16.gmra.mxu0 %v412
        %v5179 = vpop.f32.mrf.mxu0
        %v5180 = vadd.f32 %v5121, %v5179
        %v5181 = vpop.f32.mrf.mxu0
        %v5182 = vadd.f32 %v5123, %v5181
        %5183 = vmatmul.bf16.gmra.mxu0 %v415
        %v5184 = vpop.f32.mrf.mxu0
        %v5185 = vadd.f32 %v5126, %v5184
        %v5186 = vpop.f32.mrf.mxu0
        %v5187 = vadd.f32 %v5128, %v5186
        %5188 = vmatmul.bf16.gmra.mxu0 %v418
        %v5189 = vpop.f32.mrf.mxu0
        %v5190 = vadd.f32 %v5131, %v5189
        %v5191 = vpop.f32.mrf.mxu0
        %v5192 = vadd.f32 %v5133, %v5191
        %5193 = vmatmul.bf16.gmra.mxu0 %v421
        %v5194 = vpop.f32.mrf.mxu0
        %v5195 = vadd.f32 %v5136, %v5194
        %v5196 = vpop.f32.mrf.mxu0
        %v5197 = vadd.f32 %v5138, %v5196
        %5198 = vmatmul.bf16.gmra.mxu0 %v424
        %v5199 = vpop.f32.mrf.mxu0
        %v5200 = vadd.f32 %v5141, %v5199
        %v5201 = vpop.f32.mrf.mxu0
        %v5202 = vadd.f32 %v5143, %v5201
        %5203 = vmatmul.bf16.gmra.mxu0 %v427
        %v5204 = vpop.f32.mrf.mxu0
        %v5205 = vadd.f32 %v5146, %v5204
        %v5206 = vpop.f32.mrf.mxu0
        %v5207 = vadd.f32 %v5148, %v5206
        %5208 = vmatmul.bf16.gmra.mxu0 %v430
        %v5209 = vpop.f32.mrf.mxu0
        %v5210 = vadd.f32 %v5151, %v5209
        %v5211 = vpop.f32.mrf.mxu0
        %v5212 = vadd.f32 %v5153, %v5211
        %5213 = vmatmul.bf16.gmra.mxu0 %v433
        %v5214 = vpop.f32.mrf.mxu0
        %v5215 = vadd.f32 %v5156, %v5214
        %v5216 = vpop.f32.mrf.mxu0
        %v5217 = vadd.f32 %v5158, %v5216
        %5218 = vdwg.mxu0
        %5219 = vmatpush.bf16.msra.mxu0 %v2300
        %5220 = vmatpush.bf16.msra.mxu0 %v2295
        %5221 = vmatpush.bf16.msra.mxu0 %v2290
        %5222 = vmatpush.bf16.msra.mxu0 %v2285
        %5223 = vmatpush.bf16.msra.mxu0 %v2280
        %5224 = vmatpush.bf16.msra.mxu0 %v2275
        %5225 = vmatpush.bf16.msra.mxu0 %v2270
        %5226 = vmatpush.bf16.msra.mxu0 %v2265
        %5227 = vmatmul.bf16.gmra.mxu0 %v407
        %v5228 = vpop.f32.mrf.mxu0
        %v5229 = vadd.f32 %v5170, %v5228
        %v5230 = vpop.f32.mrf.mxu0
        %v5231 = vadd.f32 %v5172, %v5230
        %5232 = vmatmul.bf16.gmra.mxu0 %v410
        %v5233 = vpop.f32.mrf.mxu0
        %v5234 = vadd.f32 %v5175, %v5233
        %v5235 = vpop.f32.mrf.mxu0
        %v5236 = vadd.f32 %v5177, %v5235
        %5237 = vmatmul.bf16.gmra.mxu0 %v413
        %v5238 = vpop.f32.mrf.mxu0
        %v5239 = vadd.f32 %v5180, %v5238
        %v5240 = vpop.f32.mrf.mxu0
        %v5241 = vadd.f32 %v5182, %v5240
        %5242 = vmatmul.bf16.gmra.mxu0 %v416
        %v5243 = vpop.f32.mrf.mxu0
        %v5244 = vadd.f32 %v5185, %v5243
        %v5245 = vpop.f32.mrf.mxu0
        %v5246 = vadd.f32 %v5187, %v5245
        %5247 = vmatmul.bf16.gmra.mxu0 %v419
        %v5248 = vpop.f32.mrf.mxu0
        %v5249 = vadd.f32 %v5190, %v5248
        %v5250 = vpop.f32.mrf.mxu0
        %v5251 = vadd.f32 %v5192, %v5250
        %5252 = vmatmul.bf16.gmra.mxu0 %v422
        %v5253 = vpop.f32.mrf.mxu0
        %v5254 = vadd.f32 %v5195, %v5253
        %v5255 = vpop.f32.mrf.mxu0
        %v5256 = vadd.f32 %v5197, %v5255
        %5257 = vmatmul.bf16.gmra.mxu0 %v425
        %v5258 = vpop.f32.mrf.mxu0
        %v5259 = vadd.f32 %v5200, %v5258
        %v5260 = vpop.f32.mrf.mxu0
        %v5261 = vadd.f32 %v5202, %v5260
        %5262 = vmatmul.bf16.gmra.mxu0 %v428
        %v5263 = vpop.f32.mrf.mxu0
        %v5264 = vadd.f32 %v5205, %v5263
        %v5265 = vpop.f32.mrf.mxu0
        %v5266 = vadd.f32 %v5207, %v5265
        %5267 = vmatmul.bf16.gmra.mxu0 %v431
        %v5268 = vpop.f32.mrf.mxu0
        %v5269 = vadd.f32 %v5210, %v5268
        %v5270 = vpop.f32.mrf.mxu0
        %v5271 = vadd.f32 %v5212, %v5270
        %5272 = vmatmul.bf16.gmra.mxu0 %v434
        %v5273 = vpop.f32.mrf.mxu0
        %v5274 = vadd.f32 %v5215, %v5273
        %v5275 = vpop.f32.mrf.mxu0
        %v5276 = vadd.f32 %v5217, %v5275
        %5277 = vdwg.mxu0
        %5278 = vmatpush.bf16.msra.mxu0 %v2340
        %5279 = vmatpush.bf16.msra.mxu0 %v2335
        %5280 = vmatpush.bf16.msra.mxu0 %v2330
        %5281 = vmatpush.bf16.msra.mxu0 %v2325
        %5282 = vmatpush.bf16.msra.mxu0 %v2320
        %5283 = vmatpush.bf16.msra.mxu0 %v2315
        %5284 = vmatpush.bf16.msra.mxu0 %v2310
        %5285 = vmatpush.bf16.msra.mxu0 %v2305
        %5286 = vmatmul.bf16.gmra.mxu0 %v408
        %v5287 = vpop.f32.mrf.mxu0
        %v5288 = vadd.f32 %v5229, %v5287
        %v5289 = vpop.f32.mrf.mxu0
        %v5290 = vadd.f32 %v5231, %v5289
        %5291 = vmatmul.bf16.gmra.mxu0 %v411
        %v5292 = vpop.f32.mrf.mxu0
        %v5293 = vadd.f32 %v5234, %v5292
        %v5294 = vpop.f32.mrf.mxu0
        %v5295 = vadd.f32 %v5236, %v5294
        %5296 = vmatmul.bf16.gmra.mxu0 %v414
        %v5297 = vpop.f32.mrf.mxu0
        %v5298 = vadd.f32 %v5239, %v5297
        %v5299 = vpop.f32.mrf.mxu0
        %v5300 = vadd.f32 %v5241, %v5299
        %5301 = vmatmul.bf16.gmra.mxu0 %v417
        %v5302 = vpop.f32.mrf.mxu0
        %v5303 = vadd.f32 %v5244, %v5302
        %v5304 = vpop.f32.mrf.mxu0
        %v5305 = vadd.f32 %v5246, %v5304
        %5306 = vmatmul.bf16.gmra.mxu0 %v420
        %v5307 = vpop.f32.mrf.mxu0
        %v5308 = vadd.f32 %v5249, %v5307
        %v5309 = vpop.f32.mrf.mxu0
        %v5310 = vadd.f32 %v5251, %v5309
        %5311 = vmatmul.bf16.gmra.mxu0 %v423
        %v5312 = vpop.f32.mrf.mxu0
        %v5313 = vadd.f32 %v5254, %v5312
        %v5314 = vpop.f32.mrf.mxu0
        %v5315 = vadd.f32 %v5256, %v5314
        %5316 = vmatmul.bf16.gmra.mxu0 %v426
        %v5317 = vpop.f32.mrf.mxu0
        %v5318 = vadd.f32 %v5259, %v5317
        %v5319 = vpop.f32.mrf.mxu0
        %v5320 = vadd.f32 %v5261, %v5319
        %5321 = vmatmul.bf16.gmra.mxu0 %v429
        %v5322 = vpop.f32.mrf.mxu0
        %v5323 = vadd.f32 %v5264, %v5322
        %v5324 = vpop.f32.mrf.mxu0
        %v5325 = vadd.f32 %v5266, %v5324
        %5326 = vmatmul.bf16.gmra.mxu0 %v432
        %v5327 = vpop.f32.mrf.mxu0
        %v5328 = vadd.f32 %v5269, %v5327
        %v5329 = vpop.f32.mrf.mxu0
        %v5330 = vadd.f32 %v5271, %v5329
        %5331 = vmatmul.bf16.gmra.mxu0 %v435
        %v5332 = vpop.f32.mrf.mxu0
        %v5333 = vadd.f32 %v5274, %v5332
        %v5334 = vpop.f32.mrf.mxu0
        %v5335 = vadd.f32 %v5276, %v5334
        %5336 = vdwg.mxu0
        %5337 = vmatpush.bf16.msra.mxu0 %v2380
        %5338 = vmatpush.bf16.msra.mxu0 %v2375
        %5339 = vmatpush.bf16.msra.mxu0 %v2370
        %5340 = vmatpush.bf16.msra.mxu0 %v2365
        %5341 = vmatpush.bf16.msra.mxu0 %v2360
        %5342 = vmatpush.bf16.msra.mxu0 %v2355
        %5343 = vmatpush.bf16.msra.mxu0 %v2350
        %5344 = vmatpush.bf16.msra.mxu0 %v2345
        %5345 = vmatmul.bf16.gmra.mxu0 %v409
        %v5346 = vpop.f32.mrf.mxu0
        %v5347 = vadd.f32 %v5288, %v5346
        %v5348 = vpop.f32.mrf.mxu0
        %v5349 = vadd.f32 %v5290, %v5348
        %5350 = vmatmul.bf16.gmra.mxu0 %v412
        %v5351 = vpop.f32.mrf.mxu0
        %v5352 = vadd.f32 %v5293, %v5351
        %v5353 = vpop.f32.mrf.mxu0
        %v5354 = vadd.f32 %v5295, %v5353
        %5355 = vmatmul.bf16.gmra.mxu0 %v415
        %v5356 = vpop.f32.mrf.mxu0
        %v5357 = vadd.f32 %v5298, %v5356
        %v5358 = vpop.f32.mrf.mxu0
        %v5359 = vadd.f32 %v5300, %v5358
        %5360 = vmatmul.bf16.gmra.mxu0 %v418
        %v5361 = vpop.f32.mrf.mxu0
        %v5362 = vadd.f32 %v5303, %v5361
        %v5363 = vpop.f32.mrf.mxu0
        %v5364 = vadd.f32 %v5305, %v5363
        %5365 = vmatmul.bf16.gmra.mxu0 %v421
        %v5366 = vpop.f32.mrf.mxu0
        %v5367 = vadd.f32 %v5308, %v5366
        %v5368 = vpop.f32.mrf.mxu0
        %v5369 = vadd.f32 %v5310, %v5368
        %5370 = vmatmul.bf16.gmra.mxu0 %v424
        %v5371 = vpop.f32.mrf.mxu0
        %v5372 = vadd.f32 %v5313, %v5371
        %v5373 = vpop.f32.mrf.mxu0
        %v5374 = vadd.f32 %v5315, %v5373
        %5375 = vmatmul.bf16.gmra.mxu0 %v427
        %v5376 = vpop.f32.mrf.mxu0
        %v5377 = vadd.f32 %v5318, %v5376
        %v5378 = vpop.f32.mrf.mxu0
        %v5379 = vadd.f32 %v5320, %v5378
        %5380 = vmatmul.bf16.gmra.mxu0 %v430
        %v5381 = vpop.f32.mrf.mxu0
        %v5382 = vadd.f32 %v5323, %v5381
        %v5383 = vpop.f32.mrf.mxu0
        %v5384 = vadd.f32 %v5325, %v5383
        %5385 = vmatmul.bf16.gmra.mxu0 %v433
        %v5386 = vpop.f32.mrf.mxu0
        %v5387 = vadd.f32 %v5328, %v5386
        %v5388 = vpop.f32.mrf.mxu0
        %v5389 = vadd.f32 %v5330, %v5388
        %5390 = vmatmul.bf16.gmra.mxu0 %v436
        %v5391 = vpop.f32.mrf.mxu0
        %v5392 = vadd.f32 %v5333, %v5391
        %v5393 = vpop.f32.mrf.mxu0
        %v5394 = vadd.f32 %v5335, %v5393
        %5395 = vdwg.mxu0
        %5396 = vst [vmem:[%s153] sm:$0xff] %v3223
        %5397 = vst [vmem:[%s153 + $0x8] sm:$0xff] %v3754
        %5398 = vst [vmem:[%s153 + $0x10] sm:$0xff] %v4285
        %5399 = vst [vmem:[%s153 + $0x18] sm:$0xff] %v4816
        %5400 = vst [vmem:[%s153 + $0x20] sm:$0xff] %v5347
        %5401 = vst [vmem:[%s153 + $0x28] sm:$0xff] %v3225
        %5402 = vst [vmem:[%s153 + $0x30] sm:$0xff] %v3756
        %5403 = vst [vmem:[%s153 + $0x38] sm:$0xff] %v4287
        %5404 = vst [vmem:[%s153 + $0x40] sm:$0xff] %v4818
        %5405 = vst [vmem:[%s153 + $0x48] sm:$0xff] %v5349
        %5406 = vst [vmem:[%s153 + $0x50] sm:$0xff] %v3228
        %5407 = vst [vmem:[%s153 + $0x58] sm:$0xff] %v3759
        %5408 = vst [vmem:[%s153 + $0x60] sm:$0xff] %v4290
        %5409 = vst [vmem:[%s153 + $0x68] sm:$0xff] %v4821
        %5410 = vst [vmem:[%s153 + $0x70] sm:$0xff] %v5352
        %5411 = vst [vmem:[%s153 + $0x78] sm:$0xff] %v3230
        %5412 = vst [vmem:[%s153 + $0x80] sm:$0xff] %v3761
        %5413 = vst [vmem:[%s153 + $0x88] sm:$0xff] %v4292
        %5414 = vst [vmem:[%s153 + $0x90] sm:$0xff] %v4823
        %5415 = vst [vmem:[%s153 + $0x98] sm:$0xff] %v5354
        %5416 = vst [vmem:[%s153 + $0xa0] sm:$0xff] %v3233
        %5417 = vst [vmem:[%s153 + $0xa8] sm:$0xff] %v3764
        %5418 = vst [vmem:[%s153 + $0xb0] sm:$0xff] %v4295
        %5419 = vst [vmem:[%s153 + $0xb8] sm:$0xff] %v4826
        %5420 = vst [vmem:[%s153 + $0xc0] sm:$0xff] %v5357
        %5421 = vst [vmem:[%s153 + $0xc8] sm:$0xff] %v3235
        %5422 = vst [vmem:[%s153 + $0xd0] sm:$0xff] %v3766
        %5423 = vst [vmem:[%s153 + $0xd8] sm:$0xff] %v4297
        %5424 = vst [vmem:[%s153 + $0xe0] sm:$0xff] %v4828
        %5425 = vst [vmem:[%s153 + $0xe8] sm:$0xff] %v5359
        %5426 = vst [vmem:[%s153 + $0xf0] sm:$0xff] %v3238
        %5427 = vst [vmem:[%s153 + $0xf8] sm:$0xff] %v3769
        %5428 = vst [vmem:[%s153 + $0x100] sm:$0xff] %v4300
        %5429 = vst [vmem:[%s153 + $0x108] sm:$0xff] %v4831
        %5430 = vst [vmem:[%s153 + $0x110] sm:$0xff] %v5362
        %5431 = vst [vmem:[%s153 + $0x118] sm:$0xff] %v3240
        %5432 = vst [vmem:[%s153 + $0x120] sm:$0xff] %v3771
        %5433 = vst [vmem:[%s153 + $0x128] sm:$0xff] %v4302
        %5434 = vst [vmem:[%s153 + $0x130] sm:$0xff] %v4833
        %5435 = vst [vmem:[%s153 + $0x138] sm:$0xff] %v5364
        %5436 = vst [vmem:[%s153 + $0x140] sm:$0xff] %v3243
        %5437 = vst [vmem:[%s153 + $0x148] sm:$0xff] %v3774
        %5438 = vst [vmem:[%s153 + $0x150] sm:$0xff] %v4305
        %5439 = vst [vmem:[%s153 + $0x158] sm:$0xff] %v4836
        %5440 = vst [vmem:[%s153 + $0x160] sm:$0xff] %v5367
        %5441 = vst [vmem:[%s153 + $0x168] sm:$0xff] %v3245
        %5442 = vst [vmem:[%s153 + $0x170] sm:$0xff] %v3776
        %5443 = vst [vmem:[%s153 + $0x178] sm:$0xff] %v4307
        %5444 = vst [vmem:[%s153 + $0x180] sm:$0xff] %v4838
        %5445 = vst [vmem:[%s153 + $0x188] sm:$0xff] %v5369
        %5446 = vst [vmem:[%s153 + $0x190] sm:$0xff] %v3248
        %5447 = vst [vmem:[%s153 + $0x198] sm:$0xff] %v3779
        %5448 = vst [vmem:[%s153 + $0x1a0] sm:$0xff] %v4310
        %5449 = vst [vmem:[%s153 + $0x1a8] sm:$0xff] %v4841
        %5450 = vst [vmem:[%s153 + $0x1b0] sm:$0xff] %v5372
        %5451 = vst [vmem:[%s153 + $0x1b8] sm:$0xff] %v3250
        %5452 = vst [vmem:[%s153 + $0x1c0] sm:$0xff] %v3781
        %5453 = vst [vmem:[%s153 + $0x1c8] sm:$0xff] %v4312
        %5454 = vst [vmem:[%s153 + $0x1d0] sm:$0xff] %v4843
        %5455 = vst [vmem:[%s153 + $0x1d8] sm:$0xff] %v5374
        %5456 = vst [vmem:[%s153 + $0x1e0] sm:$0xff] %v3253
        %5457 = vst [vmem:[%s153 + $0x1e8] sm:$0xff] %v3784
        %5458 = vst [vmem:[%s153 + $0x1f0] sm:$0xff] %v4315
        %5459 = vst [vmem:[%s153 + $0x1f8] sm:$0xff] %v4846
        %5460 = vst [vmem:[%s153 + $0x200] sm:$0xff] %v5377
        %5461 = vst [vmem:[%s153 + $0x208] sm:$0xff] %v3255
        %5462 = vst [vmem:[%s153 + $0x210] sm:$0xff] %v3786
        %5463 = vst [vmem:[%s153 + $0x218] sm:$0xff] %v4317
        %5464 = vst [vmem:[%s153 + $0x220] sm:$0xff] %v4848
        %5465 = vst [vmem:[%s153 + $0x228] sm:$0xff] %v5379
        %5466 = vst [vmem:[%s153 + $0x230] sm:$0xff] %v3258
        %5467 = vst [vmem:[%s153 + $0x238] sm:$0xff] %v3789
        %5468 = vst [vmem:[%s153 + $0x240] sm:$0xff] %v4320
        %5469 = vst [vmem:[%s153 + $0x248] sm:$0xff] %v4851
        %5470 = vst [vmem:[%s153 + $0x250] sm:$0xff] %v5382
        %5471 = vst [vmem:[%s153 + $0x258] sm:$0xff] %v3260
        %5472 = vst [vmem:[%s153 + $0x260] sm:$0xff] %v3791
        %5473 = vst [vmem:[%s153 + $0x268] sm:$0xff] %v4322
        %5474 = vst [vmem:[%s153 + $0x270] sm:$0xff] %v4853
        %5475 = vst [vmem:[%s153 + $0x278] sm:$0xff] %v5384
        %5476 = vst [vmem:[%s153 + $0x280] sm:$0xff] %v3263
        %5477 = vst [vmem:[%s153 + $0x288] sm:$0xff] %v3794
        %5478 = vst [vmem:[%s153 + $0x290] sm:$0xff] %v4325
        %5479 = vst [vmem:[%s153 + $0x298] sm:$0xff] %v4856
        %5480 = vst [vmem:[%s153 + $0x2a0] sm:$0xff] %v5387
        %5481 = vst [vmem:[%s153 + $0x2a8] sm:$0xff] %v3265
        %5482 = vst [vmem:[%s153 + $0x2b0] sm:$0xff] %v3796
        %5483 = vst [vmem:[%s153 + $0x2b8] sm:$0xff] %v4327
        %5484 = vst [vmem:[%s153 + $0x2c0] sm:$0xff] %v4858
        %5485 = vst [vmem:[%s153 + $0x2c8] sm:$0xff] %v5389
        %5486 = vst [vmem:[%s153 + $0x2d0] sm:$0xff] %v3268
        %5487 = vst [vmem:[%s153 + $0x2d8] sm:$0xff] %v3799
        %5488 = vst [vmem:[%s153 + $0x2e0] sm:$0xff] %v4330
        %5489 = vst [vmem:[%s153 + $0x2e8] sm:$0xff] %v4861
        %5490 = vst [vmem:[%s153 + $0x2f0] sm:$0xff] %v5392
        %5491 = vst [vmem:[%s153 + $0x2f8] sm:$0xff] %v3270
        %5492 = vst [vmem:[%s153 + $0x300] sm:$0xff] %v3801
        %5493 = vst [vmem:[%s153 + $0x308] sm:$0xff] %v4332
        %5494 = vst [vmem:[%s153 + $0x310] sm:$0xff] %v4863
        %5495 = vst [vmem:[%s153 + $0x318] sm:$0xff] %v5394
        %s5496 = sand.u32 %s72, 1
        %s5497 = scalar_lea.sflag [#allocation4], %s5496
        %s5498 = sand.u32 %s72, 1
        %s5499 = smul.addr %s5498, 800
        %s5500 = scalar_lea.vmem [#allocation5], %s5499
        // Predicated region
        $region33: #{tpu_custom_call.1} parent=27 // pred_check
          %p5501 = pneg %p82
        $region34: #{tpu_custom_call.1} parent=27 // pred_check_branch
          %5503 = sbr.rel (%p5501) target = $region36
        $region35: #{tpu_custom_call.1} parent=27 // pred_region
          %5505 = vsyncadd %s5497, 0
          %s5506 = smul.addr %s17, 100
          %s5507 = smul.addr %s5506, 8
          %s5508 = scalar_lea.hbm %s2, %s5507
          %s5509 = sshll.u32 %s5500, 4
          %s5510 = int_to_ptr.vmem [resolvable:$true] %s5509
          %s5511 = sshll.u32 %s5508, 4
          %s5512 = int_to_ptr.hbm [resolvable:$true] %s5511
          %5517 = dma.vmem_to_hbm [thread:$0]  %s5510, 12800, %s5512, %s5497, 640, 640, 40
        $region36: #{tpu_custom_call.1} parent=27 // pred_fallthru
          _
      $region28: #{tpu_custom_call.1} parent=5 // pred_fallthru
        _
      %p5518 = scmp.le.s32.totalorder 2, %s12
      // Predicated region
      $region37: #{tpu_custom_call.1} parent=5 // pred_check
        %p5519 = pneg %p5518
      $region38: #{tpu_custom_call.1} parent=5 // pred_check_branch
        %5521 = sbr.rel (%p5519) target = $region40
      $region39: #{tpu_custom_call.1} parent=5 // pred_region
        %s5522 = ssub.s32 %s12, 2
        // Predicated region
        $region41: #{tpu_custom_call.1} parent=39 // pred_check
          %p5523 = pneg %p88
        $region42: #{tpu_custom_call.1} parent=39 // pred_check_branch
          %5525 = sbr.rel (%p5523) target = $region44
        $region43: #{tpu_custom_call.1} parent=39 // pred_region
          %s5526 = sand.u32 %s73, 1
          %s5527 = scalar_lea.sflag [#allocation4], %s5526
          %s5528 = sand.u32 %s73, 1
          %s5529 = smul.addr %s5528, 800
          %s5530 = scalar_lea.vmem [#allocation5], %s5529
          %5532 = dma.done %s5527, 12800
        $region44: #{tpu_custom_call.1} parent=39 // pred_fallthru
          _
      $region40: #{tpu_custom_call.1} parent=5 // pred_fallthru
        _
    $region6: #{tpu_custom_call.1} parent=1 // loop_footer
      %s16 = sadd.s32 1, %s12
    $region7: #{tpu_custom_call.1} parent=1 // loop_footer_branch
      %11 = sbr.rel target = $region3
    $region8: #{tpu_custom_call.1} parent=1 // loop_exit
      _
    %5533 = vsyncpa [#allocation3], 1
    %s5534 = scalar_lea.sflag [#allocation3], 1
    %5535 = vsyncpa %s5534, 1
    %5536 = vsyncpa [#allocation4], 1
    %s5537 = scalar_lea.sflag [#allocation4], 1
    %5538 = vsyncpa %s5537, 1

</llo_original>
